<compile_context>
chip_gen: v7x
topology: tpu7x:2x2x1
jax: 0.10.0
libtpu: 0.0.40
codegen_flags: <defaults>
</compile_context>

<pallas_src>
import functools

import jax
import jax.numpy as jnp
import numpy as np
from jax.experimental import pallas as pl
from jax.experimental.pallas import tpu as pltpu


# ----------------------------------------------------------------------------
# Host-side helpers
# ----------------------------------------------------------------------------
def _bilinear_matrix(in_size: int, out_size: int) -> jnp.ndarray:
    """(out_size, in_size) matrix reproducing F.interpolate(mode='bilinear',
    align_corners=False) along one axis.  Every row sums to 1 (needed for the
    bias hoist in segformer_decoder_forward)."""
    scale = in_size / out_size
    dst = jnp.arange(out_size, dtype=jnp.float32)
    src = jnp.maximum((dst + 0.5) * scale - 0.5, 0.0)      # PyTorch clamps negatives
    i0f = jnp.floor(src)
    lam = src - i0f
    i0 = jnp.clip(i0f.astype(jnp.int32), 0, in_size - 1)
    i1 = jnp.clip(i0 + 1, 0, in_size - 1)
    oh0 = jax.nn.one_hot(i0, in_size, dtype=jnp.float32)
    oh1 = jax.nn.one_hot(i1, in_size, dtype=jnp.float32)
    return (1.0 - lam)[:, None] * oh0 + lam[:, None] * oh1


def _pick_tile(n: int, cap: int) -> int:
    """Tile size for a second-minor blocked dim: a divisor of n that is either
    the full dim or a multiple of 8 (the (8,128) rule), capped at `cap`.
    Falls back to the full dimension if no legal divisor exists below the cap."""
    if n <= cap:
        return n
    for d in range(min(cap, n), 0, -1):
        if n % d == 0 and d % 8 == 0:
            return d
    return n


# ----------------------------------------------------------------------------
# Fused decoder kernel
#   grid = (B, Hout//th, L), level axis innermost ("arbitrary").
#   acc_ref (VMEM, f32, (th, Wout*NC)) accumulates the logits tile over levels.
# ----------------------------------------------------------------------------
def _decoder_kernel(x_ref, wc_ref, rh_ref, rw_ref, bias_ref, o_ref, acc_ref):
    lvl = pl.program_id(2)
    n_lvl = pl.num_programs(2)
    Hmax, Wmax, Cmax = x_ref.shape
    Wout = rw_ref.shape[0]
    NC = wc_ref.shape[1]

    @pl.when(lvl == 0)
    def _init():
        acc_ref[...] = jnp.zeros_like(acc_ref)

    # 1) channel projection fused with this level's slice of the final MLP:
    #    (Hmax*Wmax, Cmax) @ (Cmax, NC) on the MXU, f32 accumulation.
    #    (leading-dim merge of the x block is layout-free: Wmax % 8 == 0)
    x2 = x_ref[...].reshape(Hmax * Wmax, Cmax)
    y = jnp.dot(x2, wc_ref[...], preferred_element_type=jnp.float32)
    y3 = y.reshape(Hmax, Wmax, NC)                        # leading-dim split

    # 2) W-axis bilinear resize: batched matmul over the Hmax input rows with the
    #    small f32 (Wout, Wmax) matrix (resize coefficients kept in f32).
    rwb = jnp.broadcast_to(rw_ref[...][None], (Hmax, Wout, Wmax))
    q = jnp.einsum('how,hwc->hoc', rwb, y3,
                   preferred_element_type=jnp.float32)    # (Hmax, Wout, NC) f32

    # 3) H-axis bilinear resize for this tile of output rows: ONE wide MXU matmul
    #    (th, Hmax) @ (Hmax, Wout*NC), accumulated in VMEM (NC % 128 == 0 keeps
    #    the merged trailing dim lane-dense).
    q2 = q.reshape(Hmax, Wout * NC)
    acc_ref[...] += jnp.dot(rh_ref[...], q2, preferred_element_type=jnp.float32)

    @pl.when(lvl == n_lvl - 1)
    def _writeout():
        o_ref[...] = (acc_ref[...] + bias_ref[...]).astype(o_ref.dtype)


# ----------------------------------------------------------------------------
# Full SegFormerDecoder forward
# ----------------------------------------------------------------------------
def segformer_decoder_forward(features, blk_ws, blk_bs, mlp_w, mlp_b, out_dims,
                              compute_dtype=None, h_tile=64):
    """features[l]: (B, H_l, W_l, Cin_l) channels-last.
    blk_ws[l]: (Cin_l, Cout); blk_bs[l]: (Cout,)
    mlp_w: (num_blocks*Cout, num_classes); mlp_b: (num_classes,)
    compute_dtype: e.g. jnp.bfloat16 -> the channel matmul feeds the MXU in bf16
    (resize matrices and all accumulation stay f32)."""
    Hout, Wout = out_dims
    B = features[0].shape[0]
    num_classes = mlp_w.shape[1]
    cout = blk_ws[0].shape[1]

    # lane-dense class dim (multiple of 128); true classes sliced out at the end.
    NC = ((num_classes + 127) // 128) * 128
    Hmax = max(int(f.shape[1]) for f in features)
    Wmax = ((max(int(f.shape[2]) for f in features) + 7) // 8) * 8
    Cmax = max(int(f.shape[3]) for f in features)

    cd = compute_dtype if compute_dtype is not None else features[0].dtype

    mlp_w_pad = jnp.pad(mlp_w, ((0, 0), (0, NC - num_classes))).astype(jnp.float32)
    bias = jnp.pad(mlp_b, (0, NC - num_classes)).astype(jnp.float32)

    xs, wcs, rhs, rws = [], [], [], []
    for l, (x, w, b) in enumerate(zip(features, blk_ws, blk_bs)):
        _, Hin, Win, Cin = x.shape
        m_l = mlp_w_pad[l * cout:(l + 1) * cout, :]               # (Cout, NC)
        wc = jnp.dot(w.astype(jnp.float32), m_l)                  # (Cin, NC) combined
        bias = bias + jnp.dot(b.astype(jnp.float32), m_l)         # bias hoisted through
                                                                  # the resize (rows sum to 1)
        wcs.append(jnp.pad(wc, ((0, Cmax - Cin), (0, 0))).astype(cd))
        xs.append(jnp.pad(x, ((0, 0), (0, Hmax - Hin), (0, Wmax - Win),
                              (0, Cmax - Cin))).astype(cd))
        rhs.append(jnp.pad(_bilinear_matrix(Hin, Hout), ((0, 0), (0, Hmax - Hin))))
        rws.append(jnp.pad(_bilinear_matrix(Win, Wout), ((0, 0), (0, Wmax - Win))))

    x_all = jnp.stack(xs)                                # (L, B, Hmax, Wmax, Cmax)
    wc_all = jnp.stack(wcs)                              # (L, Cmax, NC)
    rh_all = jnp.stack(rhs).astype(jnp.float32)          # (L, Hout, Hmax)
    rw_all = jnp.stack(rws).astype(jnp.float32)          # (L, Wout, Wmax)
    bias_t = jnp.tile(bias, Wout).reshape(1, Wout * NC)  # (1, Wout*NC) f32

    th = _pick_tile(Hout, h_tile)
    WNC = Wout * NC
    grid = (B, Hout // th, len(features))                # level axis innermost

    out = pl.pallas_call(
        _decoder_kernel,
        out_shape=jax.ShapeDtypeStruct((B, Hout, WNC), jnp.float32),
        grid=grid,
        in_specs=[
            pl.BlockSpec((None, None, Hmax, Wmax, Cmax),
                         lambda b, i, l: (l, b, 0, 0, 0)),
            pl.BlockSpec((None, Cmax, NC), lambda b, i, l: (l, 0, 0)),
            pl.BlockSpec((None, th, Hmax), lambda b, i, l: (l, i, 0)),
            pl.BlockSpec((None, Wout, Wmax), lambda b, i, l: (l, 0, 0)),
            pl.BlockSpec((1, WNC), lambda b, i, l: (0, 0)),
        ],
        out_specs=pl.BlockSpec((None, th, WNC), lambda b, i, l: (b, i, 0)),
        scratch_shapes=[pltpu.VMEM((th, WNC), jnp.float32)],
        compiler_params=pltpu.CompilerParams(
            dimension_semantics=("parallel", "parallel", "arbitrary"),
            vmem_limit_bytes=64 * 1024 * 1024),          # sized for v7x physical VMEM
    )(x_all, wc_all, rh_all, rw_all, bias_t)

    # Free host-side view change + slice off the class padding.
    return out.reshape(B, Hout, Wout, NC)[..., :num_classes]


# ----------------------------------------------------------------------------
# Pure-JAX reference mirroring the PyTorch op order (for correctness check only)
# ----------------------------------------------------------------------------
def reference_forward(features, blk_ws, blk_bs, mlp_w, mlp_b, out_dims):
    Hout, Wout = out_dims
    outs = []
    for x, w, b in zip(features, blk_ws, blk_bs):
        y = jnp.einsum('bhwc,cd->bhwd', x, w, precision='highest') + b
        rh = _bilinear_matrix(x.shape[1], Hout)
        rw = _bilinear_matrix(x.shape[2], Wout)
        y = jnp.einsum('oh,bhwc->bowc', rh, y, precision='highest')
        y = jnp.einsum('ow,bhwc->bhoc', rw, y, precision='highest')
        outs.append(y)
    cat = jnp.concatenate(outs, axis=-1)
    return jnp.einsum('bhwk,kn->bhwn', cat, mlp_w, precision='highest') + mlp_b


# ----------------------------------------------------------------------------
if __name__ == "__main__":
    key = jax.random.PRNGKey(0)

    # Module config (small, consistent with the PyTorch module)
    B = 2
    out_dims = (16, 16)
    num_blocks = 3
    channel_ins = [4, 8, 16]
    channel_out = 32
    num_classes = 8
    spatials = [(16, 16), (8, 8), (4, 4)]   # feature pyramid spatial sizes

    keys = jax.random.split(key, 2 * num_blocks + 2 + num_blocks)
    k_idx = 0

    # Deterministic synthetic parameters (weights stored as (in, out), i.e.
    # the transpose of PyTorch's nn.Linear weight).
    blk_ws, blk_bs = [], []
    for cin in channel_ins:
        w = jax.random.normal(keys[k_idx], (cin, channel_out), jnp.float32) * 0.1
        k_idx += 1
        b = jax.random.normal(keys[k_idx], (channel_out,), jnp.float32) * 0.1
        k_idx += 1
        blk_ws.append(w)
        blk_bs.append(b)
    mlp_w = jax.random.normal(keys[k_idx],
                              (num_blocks * channel_out, num_classes),
                              jnp.float32) * 0.1
    k_idx += 1
    mlp_b = jax.random.normal(keys[k_idx], (num_classes,), jnp.float32) * 0.1
    k_idx += 1

    # Deterministic synthetic input features, channels-last (B, H, W, C).
    features = []
    for (h, w_sp), cin in zip(spatials, channel_ins):
        features.append(jax.random.normal(keys[k_idx], (B, h, w_sp, cin),
                                          jnp.float32))
        k_idx += 1

    # f32 path
    fwd_f32 = jax.jit(functools.partial(segformer_decoder_forward,
                                        out_dims=out_dims))
    out = jax.block_until_ready(fwd_f32(features, blk_ws, blk_bs, mlp_w, mlp_b))

    ref = jax.block_until_ready(
        reference_forward(features, blk_ws, blk_bs, mlp_w, mlp_b, out_dims))

    assert out.shape == (B, out_dims[0], out_dims[1], num_classes), out.shape
    assert np.allclose(np.asarray(out), np.asarray(ref), rtol=1e-2, atol=1e-2), (
        "f32 mismatch vs reference: max abs err "
        f"{np.max(np.abs(np.asarray(out) - np.asarray(ref)))}")

    # bf16 MXU path (channel matmul in bf16, resize matrices + accumulation f32).
    fwd_bf16 = jax.jit(functools.partial(segformer_decoder_forward,
                                         out_dims=out_dims,
                                         compute_dtype=jnp.bfloat16))
    out_bf = jax.block_until_ready(
        fwd_bf16(features, blk_ws, blk_bs, mlp_w, mlp_b))
    assert out_bf.shape == out.shape
    assert np.allclose(np.asarray(out_bf), np.asarray(ref), rtol=0.1, atol=0.1), (
        "bf16 mismatch vs reference: max abs err "
        f"{np.max(np.abs(np.asarray(out_bf) - np.asarray(ref)))}")

    print("KERNEL_OK")
</pallas_src>

<mosaic_0001>
module attributes {stable_mosaic.version = 11 : i64} {
  func.func @_decoder_kernel(%arg0: i32, %arg1: i32, %arg2: i32, %arg3: memref<1x1x16x16x16xf32, #tpu.memory_space<vmem>>, %arg4: memref<1x16x128xf32, #tpu.memory_space<vmem>>, %arg5: memref<1x16x16xf32, #tpu.memory_space<vmem>>, %arg6: memref<1x16x16xf32, #tpu.memory_space<vmem>>, %arg7: memref<1x2048xf32, #tpu.memory_space<vmem>>, %arg8: memref<1x16x2048xf32, #tpu.memory_space<vmem>>, %arg9: memref<16x2048xf32, #tpu.memory_space<vmem>>) attributes {dimension_semantics = [#tpu.dimension_semantics<parallel>, #tpu.dimension_semantics<parallel>, #tpu.dimension_semantics<arbitrary>], iteration_bounds = array<i64: 2, 1, 3>, scalar_prefetch = 0 : i64, scratch_operands = 1 : i64, tpu.core_type = #tpu.core_type<tc>, window_params = [{transform_indices = @transform_0, window_bounds = array<i64: 1, 1, 16, 16, 16>}, {transform_indices = @transform_1, window_bounds = array<i64: 1, 16, 128>}, {transform_indices = @transform_2, window_bounds = array<i64: 1, 16, 16>}, {transform_indices = @transform_3, window_bounds = array<i64: 1, 16, 16>}, {pipeline_mode = #tpu.pipeline_mode<synchronous>, transform_indices = @transform_4, window_bounds = array<i64: 1, 2048>}, {transform_indices = @transform_5, window_bounds = array<i64: 1, 16, 2048>}]} {
    %c0_i32 = arith.constant 0 : i32
    %0 = arith.cmpi eq, %arg2, %c0_i32 : i32
    %1 = arith.extui %0 : i1 to i32
    %c0_i32_0 = arith.constant 0 : i32
    %2 = arith.cmpi ne, %1, %c0_i32_0 : i32
    scf.if %2 {
      %cst_21 = arith.constant 0.000000e+00 : f32
      %26 = vector.broadcast %cst_21 : f32 to vector<16x2048xf32>
      %c0_22 = arith.constant 0 : index
      %c0_23 = arith.constant 0 : index
      %27 = vector.load %arg9[%c0_22, %c0_23] : memref<16x2048xf32, #tpu.memory_space<vmem>>, vector<16x2048xf32>
      tpu.vector_store %arg9[%c0_22, %c0_23], %26 {strides = array<i32>} : memref<16x2048xf32, #tpu.memory_space<vmem>>, vector<16x2048xf32>,
    } else {
    }
    %c0 = arith.constant 0 : index
    %c0_1 = arith.constant 0 : index
    %c0_2 = arith.constant 0 : index
    %c0_3 = arith.constant 0 : index
    %c0_4 = arith.constant 0 : index
    %3 = vector.load %arg3[%c0, %c0_1, %c0_2, %c0_3, %c0_4] : memref<1x1x16x16x16xf32, #tpu.memory_space<vmem>>, vector<1x1x16x16x16xf32>
    %4 = vector.shape_cast %3 : vector<1x1x16x16x16xf32> to vector<16x16x16xf32>
    %5 = vector.shape_cast %4 : vector<16x16x16xf32> to vector<256x16xf32>
    %c0_5 = arith.constant 0 : index
    %c0_6 = arith.constant 0 : index
    %c0_7 = arith.constant 0 : index
    %6 = vector.load %arg4[%c0_5, %c0_6, %c0_7] : memref<1x16x128xf32, #tpu.memory_space<vmem>>, vector<1x16x128xf32>
    %7 = vector.shape_cast %6 : vector<1x16x128xf32> to vector<16x128xf32>
    %cst = arith.constant dense<0.000000e+00> : vector<256x128xf32>
    %8 = tpu.matmul %5, %7, %cst {dimension_numbers = #tpu.dot_dimension_numbers<[1], [0], [0], [1], [0, 0, 1, 1], [], []>} : vector<256x16xf32>, vector<16x128xf32>, vector<256x128xf32> -> vector<256x128xf32>
    %9 = vector.shape_cast %8 : vector<256x128xf32> to vector<16x16x128xf32>
    %c0_8 = arith.constant 0 : index
    %c0_9 = arith.constant 0 : index
    %c0_10 = arith.constant 0 : index
    %10 = vector.load %arg6[%c0_8, %c0_9, %c0_10] : memref<1x16x16xf32, #tpu.memory_space<vmem>>, vector<1x16x16xf32>
    %11 = vector.shape_cast %10 : vector<1x16x16xf32> to vector<16x16xf32>
    %12 = vector.shape_cast %11 : vector<16x16xf32> to vector<1x16x16xf32>
    %13 = vector.shape_cast %12 : vector<1x16x16xf32> to vector<1x16x16xf32>
    %14 = vector.broadcast %13 : vector<1x16x16xf32> to vector<16x16x16xf32>
    "tpu.trace_start"() <{level = 10 : i32, message = "how,hwc->hoc"}> : () -> ()
    %cst_11 = arith.constant dense<0.000000e+00> : vector<16x16x128xf32>
    %15 = tpu.matmul %14, %9, %cst_11 {dimension_numbers = #tpu.dot_dimension_numbers<[2], [1], [1], [2], [0, 0, 0, 1, 1, 2], [0], [0]>} : vector<16x16x16xf32>, vector<16x16x128xf32>, vector<16x16x128xf32> -> vector<16x16x128xf32>
    "tpu.trace_stop"() : () -> ()
    %16 = vector.shape_cast %15 : vector<16x16x128xf32> to vector<16x2048xf32>
    %c0_12 = arith.constant 0 : index
    %c0_13 = arith.constant 0 : index
    %17 = vector.load %arg9[%c0_12, %c0_13] : memref<16x2048xf32, #tpu.memory_space<vmem>>, vector<16x2048xf32>
    %c0_14 = arith.constant 0 : index
    %c0_15 = arith.constant 0 : index
    %c0_16 = arith.constant 0 : index
    %18 = vector.load %arg5[%c0_14, %c0_15, %c0_16] : memref<1x16x16xf32, #tpu.memory_space<vmem>>, vector<1x16x16xf32>
    %19 = vector.shape_cast %18 : vector<1x16x16xf32> to vector<16x16xf32>
    %cst_17 = arith.constant dense<0.000000e+00> : vector<16x2048xf32>
    %20 = tpu.matmul %19, %16, %cst_17 {dimension_numbers = #tpu.dot_dimension_numbers<[1], [0], [0], [1], [0, 0, 1, 1], [], []>} : vector<16x16xf32>, vector<16x2048xf32>, vector<16x2048xf32> -> vector<16x2048xf32>
    %21 = arith.addf %17, %20 : vector<16x2048xf32>
    %c0_18 = arith.constant 0 : index
    %c0_19 = arith.constant 0 : index
    %22 = vector.load %arg9[%c0_18, %c0_19] : memref<16x2048xf32, #tpu.memory_space<vmem>>, vector<16x2048xf32>
    tpu.vector_store %arg9[%c0_18, %c0_19], %21 {strides = array<i32>} : memref<16x2048xf32, #tpu.memory_space<vmem>>, vector<16x2048xf32>,
    %c2_i32 = arith.constant 2 : i32
    %23 = arith.cmpi eq, %arg2, %c2_i32 : i32
    %24 = arith.extui %23 : i1 to i32
    %c0_i32_20 = arith.constant 0 : i32
    %25 = arith.cmpi ne, %24, %c0_i32_20 : i32
    scf.if %25 {
      %c0_21 = arith.constant 0 : index
      %c0_22 = arith.constant 0 : index
      %26 = vector.load %arg9[%c0_21, %c0_22] : memref<16x2048xf32, #tpu.memory_space<vmem>>, vector<16x2048xf32>
      %c0_23 = arith.constant 0 : index
      %c0_24 = arith.constant 0 : index
      %27 = vector.load %arg7[%c0_23, %c0_24] : memref<1x2048xf32, #tpu.memory_space<vmem>>, vector<1x2048xf32>
      %28 = vector.broadcast %27 : vector<1x2048xf32> to vector<16x2048xf32>
      %29 = arith.addf %26, %28 : vector<16x2048xf32>
      %c0_25 = arith.constant 0 : index
      %c0_26 = arith.constant 0 : index
      %c0_27 = arith.constant 0 : index
      %30 = vector.load %arg8[%c0_25, %c0_26, %c0_27] : memref<1x16x2048xf32, #tpu.memory_space<vmem>>, vector<1x16x2048xf32>
      %31 = vector.shape_cast %30 : vector<1x16x2048xf32> to vector<16x2048xf32>
      %32 = vector.shape_cast %29 : vector<16x2048xf32> to vector<1x16x2048xf32>
      tpu.vector_store %arg8[%c0_25, %c0_26, %c0_27], %32 {strides = array<i32>} : memref<1x16x2048xf32, #tpu.memory_space<vmem>>, vector<1x16x2048xf32>,
    } else {
    }
    return
  }
  func.func @transform_0(%arg0: i32, %arg1: i32, %arg2: i32) -> (i32, i32, i32, i32, i32) {
    %c0_i32 = arith.constant 0 : i32
    %c0_i32_0 = arith.constant 0 : i32
    %c0_i32_1 = arith.constant 0 : i32
    %c0_i32_2 = arith.constant 0 : i32
    return %arg2, %arg0, %c0_i32, %c0_i32_0, %c0_i32_1 : i32, i32, i32, i32, i32
  }
  func.func @transform_1(%arg0: i32, %arg1: i32, %arg2: i32) -> (i32, i32, i32) {
    %c0_i32 = arith.constant 0 : i32
    %c0_i32_0 = arith.constant 0 : i32
    %c0_i32_1 = arith.constant 0 : i32
    return %arg2, %c0_i32, %c0_i32_0 : i32, i32, i32
  }
  func.func @transform_2(%arg0: i32, %arg1: i32, %arg2: i32) -> (i32, i32, i32) {
    %c0_i32 = arith.constant 0 : i32
    %c0_i32_0 = arith.constant 0 : i32
    return %arg2, %arg1, %c0_i32 : i32, i32, i32
  }
  func.func @transform_3(%arg0: i32, %arg1: i32, %arg2: i32) -> (i32, i32, i32) {
    %c0_i32 = arith.constant 0 : i32
    %c0_i32_0 = arith.constant 0 : i32
    %c0_i32_1 = arith.constant 0 : i32
    return %arg2, %c0_i32, %c0_i32_0 : i32, i32, i32
  }
  func.func @transform_4(%arg0: i32, %arg1: i32, %arg2: i32) -> (i32, i32) {
    %c0_i32 = arith.constant 0 : i32
    %c0_i32_0 = arith.constant 0 : i32
    %c0_i32_1 = arith.constant 0 : i32
    return %c0_i32, %c0_i32_0 : i32, i32
  }
  func.func @transform_5(%arg0: i32, %arg1: i32, %arg2: i32) -> (i32, i32, i32) {
    %c0_i32 = arith.constant 0 : i32
    %c0_i32_0 = arith.constant 0 : i32
    return %arg0, %arg1, %c0_i32 : i32, i32, i32
  }
}

</mosaic_0001>

<llo_original>
// kernel: tile.8
$region0: #{tile.8}
  #allocation2 [shape = 's32[1]{0}', space=sflag, size = 0x4, scoped, tag = 'scoped memory for tile.8']
  %s0 = inlined_call_operand.vmem [shape: f32[128], index: 0, kind: input, shape index: {}]
  %s1 = inlined_call_operand.hbm [shape: f32[16,128], index: 1, kind: output, shape index: {}]
  $region1: #{tile.8} parent=0
    #allocation0 [shape = 'u8[8192]{0}', space=vmem, size = 0x2000, scoped, tag = 'operand span for operand 1']
    #allocation1 [shape = 's32[1]{0}', space=sflag, size = 0x4, scoped, tag = 'scoped memory for tile.8']
    %2 = vsyncpa [#allocation1], 0
    // Predicated region
    $region2: #{tile.8} parent=1 // pred_check
      _
    $region3: #{tile.8} parent=1 // pred_check_branch
      %4 = sbr.rel (0) target = $region5
    $region4: #{tile.8} parent=1 // pred_region
      _
    $region5: #{tile.8} parent=1 // pred_fallthru
      _
    %v5 = vld [vmem:[%s0] ss:$0 sm:$0xff]
    %6 = vst [vmem:[#allocation0] sm:$0xff] %v5
    %s7 = scalar_lea.vmem [#allocation0], 8
    %8 = vst [vmem:[%s7] sm:$0xff] %v5
    %s10 = ssub.s32 256, 256
    %11 = vsyncadd [#allocation1], %s10
    %s12 = sshll.u32 [#allocation0], 4
    %s13 = int_to_ptr.vmem [resolvable:$true] %s12
    %18 = dma.vmem_to_hbm [thread:$0]  %s13, 256, %s1, [#allocation1], 128, 128, 8
    %19 = dma.done [#allocation1], 256
    %20 = vsyncpa [#allocation1], 1

// kernel: segformer_decoder_forward.1
$region0: #{segformer_decoder_forward.1}
  #allocation0 [shape = 'u32[]', space=smem, size = 0x4, offset = 0x4, fixed_abs, tag = 'smem constant byte address 0x4 - core index']
  #allocation1 [shape = 'u32[144,128]{1,0:T(1,128)}', space=vmem, size = 0x12000, scoped, tag = 'internal scratch']
  #allocation2 [shape = 'f32[16,2048]{1,0:T(8,128)}', space=vmem, size = 0x20000, scoped, tag = 'scratch operand']
  %s0 = inlined_call_operand.hbm [shape: f32[3,2,16,16,16], index: 0, kind: input, shape index: {}]
  %s1 = inlined_call_operand.hbm [shape: f32[3,16,128], index: 1, kind: input, shape index: {}]
  %s2 = inlined_call_operand.hbm [shape: f32[3,16,16], index: 2, kind: input, shape index: {}, may-alias: {2,3}]
  %s3 = inlined_call_operand.hbm [shape: f32[3,16,16], index: 3, kind: input, shape index: {}, may-alias: {2,3}]
  %s4 = inlined_call_operand.hbm [shape: f32[1,2048], index: 4, kind: input, shape index: {}]
  %s5 = inlined_call_operand.hbm [shape: f32[2,16,2048], index: 5, kind: output, shape index: {}]
  %s6 = sld [smem:[#allocation0]]
  $region81: #{segformer_decoder_forward.1} parent=0
    _
  %s8 = ssub.s32 1, %s6
  %s9 = scalar_select 0, %s8, %s6
  $region1: #{segformer_decoder_forward.1} parent=0
    #allocation3 [shape = 'u8[262144]{0}', space=vmem, size = 0x40000, scoped, tag = 'input window, operand 0']
    #allocation4 [shape = 's32[2]{0}', space=sflag, size = 0x8, scoped, tag = 'scoped memory for segformer_decoder_forward.1']
    #allocation5 [shape = 's32[2]{0}', space=sflag, size = 0x8, scoped, tag = 'scoped memory for segformer_decoder_forward.1']
    #allocation6 [shape = 'u8[16384]{0}', space=vmem, size = 0x4000, scoped, tag = 'input window, operand 1']
    #allocation7 [shape = 's32[2]{0}', space=sflag, size = 0x8, scoped, tag = 'scoped memory for segformer_decoder_forward.1']
    #allocation8 [shape = 'u8[16384]{0}', space=vmem, size = 0x4000, scoped, tag = 'input window, operand 2']
    #allocation9 [shape = 'u8[16384]{0}', space=vmem, size = 0x4000, scoped, tag = 'input window, operand 3']
    #allocation10 [shape = 's32[2]{0}', space=sflag, size = 0x8, scoped, tag = 'scoped memory for segformer_decoder_forward.1']
    #allocation11 [shape = 'u8[8192]{0}', space=vmem, size = 0x2000, scoped, tag = 'input window, operand 4, single buffered']
    #allocation12 [shape = 'u8[262144]{0}', space=vmem, size = 0x40000, scoped, tag = 'output window, operand 0']
    %10 = vsyncpa [#allocation4], 0
    %s11 = scalar_lea.sflag [#allocation4], 1
    %12 = vsyncpa %s11, 0
    %13 = vsyncpa [#allocation7], 0
    %s14 = scalar_lea.sflag [#allocation7], 1
    %15 = vsyncpa %s14, 0
    %16 = vsyncpa [#allocation10], 0
    %s17 = scalar_lea.sflag [#allocation10], 1
    %18 = vsyncpa %s17, 0
    %19 = vsyncpa [#allocation5], 0
    %s20 = scalar_lea.sflag [#allocation5], 1
    %21 = vsyncpa %s20, 0
    loop: start=0, step=1, limit=8
    $region2: #{segformer_decoder_forward.1} parent=1 // loop_pre_header
      _
    $region3: #{segformer_decoder_forward.1} parent=1 // loop_header
      %s23 = sphi 0, %s27
      %p24 = scmp.ge.s32.totalorder %s23, 8
      %s30 = sphi 0, %s49
      %s31 = sphi 0, %s45
      %s32 = sphi 0, %s41
      %s33 = sphi 0, %s30
      %s34 = sphi 0, %s31
      %s35 = sphi 0, %s32
      %s36 = sphi 0, %s33
      %s37 = sphi 0, %s34
      %s38 = sphi 0, %s35
      %s54 = sphi 0, %s56
      %s57 = sphi 0, %s54
      %s58 = sphi 0, %s57
      %s74 = sphi 0, %s58
      %s80 = sphi 0, %s82
      %s83 = sphi 0, %s80
      %s84 = sphi 0, %s83
      %s100 = sphi 0, %s84
      %s108 = sphi 0, %s110
      %s111 = sphi 0, %s108
      %s112 = sphi 0, %s111
      %s128 = sphi 0, %s112
      %s134 = sphi 0, %s136
      %s137 = sphi 0, %s134
      %s138 = sphi 0, %s137
      %s154 = sphi 0, %s138
      %s158 = sphi 0, %s158
      %s160 = sphi 0, %s158
      %s161 = sphi 0, %s160
      %s175 = sphi 0, %s161
      %s183 = sphi 0, %s185
      %s186 = sphi 0, %s183
      %s187 = sphi 0, %s186
      %s203 = sphi 0, %s187
    $region4: #{segformer_decoder_forward.1} parent=1 // loop_header_branch
      %26 = sbr.rel (%p24) target = $region8
    $region5: #{segformer_decoder_forward.1} parent=1 // loop_body
      %s28 = ssub.s32 %s23, 1
      %s29 = ssub.s32 %s23, 2
      %s39 = sadd.s32 1, %s32
      %p40 = scmp.ge.s32.totalorder %s39, 3
      %s41 = scalar_select %p40, 0, %s39
      %s42 = sadd.s32 1, %s31
      %s43 = scalar_select %p40, %s42, %s31
      %p44 = scmp.ge.s32.totalorder %s43, 1
      %s45 = scalar_select %p44, 0, %s43
      %s46 = sadd.s32 1, %s30
      %s47 = scalar_select %p44, %s46, %s30
      %p48 = scmp.ge.s32.totalorder %s47, 2
      %s49 = scalar_select %p48, 0, %s47
      %s50 = ssub.s32 %s32, %s41
      %s51 = ssub.s32 %s30, %s49
      %s52 = sor.u32 %s50, %s51
      %p53 = scmp.eq.s32.totalorder %s52, 0
      %s55 = sadd.s32 %s54, 1
      %s56 = scalar_select %p53, %s54, %s55
      %p59 = pneg %p53
      %p60 = scmp.eq.s32.totalorder %s23, 5
      %p61 = por %p59, %p60
      %p62 = scmp.ne.s32.totalorder %s54, %s57
      %p63 = scmp.eq.s32.totalorder %s23, 0
      %p64 = por %p62, %p63
      %p65 = scmp.ne.s32.totalorder %s54, %s57
      %p66 = scmp.eq.s32.totalorder %s28, 5
      %p67 = por %p65, %p66
      %p68 = scmp.ne.s32.totalorder %s57, %s58
      %p69 = scmp.eq.s32.totalorder %s28, 0
      %p70 = por %p68, %p69
      %p71 = scmp.ne.s32.totalorder %s57, %s58
      %p72 = scmp.eq.s32.totalorder %s29, 5
      %p73 = por %p71, %p72
      %p75 = scmp.ne.s32.totalorder %s58, %s74
      %p76 = scmp.eq.s32.totalorder %s29, 0
      %p77 = por %p75, %p76
      %s78 = ssub.s32 %s32, %s41
      %p79 = scmp.eq.s32.totalorder %s78, 0
      %s81 = sadd.s32 %s80, 1
      %s82 = scalar_select %p79, %s80, %s81
      %p85 = pneg %p79
      %p86 = scmp.eq.s32.totalorder %s23, 5
      %p87 = por %p85, %p86
      %p88 = scmp.ne.s32.totalorder %s80, %s83
      %p89 = scmp.eq.s32.totalorder %s23, 0
      %p90 = por %p88, %p89
      %p91 = scmp.ne.s32.totalorder %s80, %s83
      %p92 = scmp.eq.s32.totalorder %s28, 5
      %p93 = por %p91, %p92
      %p94 = scmp.ne.s32.totalorder %s83, %s84
      %p95 = scmp.eq.s32.totalorder %s28, 0
      %p96 = por %p94, %p95
      %p97 = scmp.ne.s32.totalorder %s83, %s84
      %p98 = scmp.eq.s32.totalorder %s29, 5
      %p99 = por %p97, %p98
      %p101 = scmp.ne.s32.totalorder %s84, %s100
      %p102 = scmp.eq.s32.totalorder %s29, 0
      %p103 = por %p101, %p102
      %s104 = ssub.s32 %s32, %s41
      %s105 = ssub.s32 %s31, %s45
      %s106 = sor.u32 %s104, %s105
      %p107 = scmp.eq.s32.totalorder %s106, 0
      %s109 = sadd.s32 %s108, 1
      %s110 = scalar_select %p107, %s108, %s109
      %p113 = pneg %p107
      %p114 = scmp.eq.s32.totalorder %s23, 5
      %p115 = por %p113, %p114
      %p116 = scmp.ne.s32.totalorder %s108, %s111
      %p117 = scmp.eq.s32.totalorder %s23, 0
      %p118 = por %p116, %p117
      %p119 = scmp.ne.s32.totalorder %s108, %s111
      %p120 = scmp.eq.s32.totalorder %s28, 5
      %p121 = por %p119, %p120
      %p122 = scmp.ne.s32.totalorder %s111, %s112
      %p123 = scmp.eq.s32.totalorder %s28, 0
      %p124 = por %p122, %p123
      %p125 = scmp.ne.s32.totalorder %s111, %s112
      %p126 = scmp.eq.s32.totalorder %s29, 5
      %p127 = por %p125, %p126
      %p129 = scmp.ne.s32.totalorder %s112, %s128
      %p130 = scmp.eq.s32.totalorder %s29, 0
      %p131 = por %p129, %p130
      %s132 = ssub.s32 %s32, %s41
      %p133 = scmp.eq.s32.totalorder %s132, 0
      %s135 = sadd.s32 %s134, 1
      %s136 = scalar_select %p133, %s134, %s135
      %p139 = pneg %p133
      %p140 = scmp.eq.s32.totalorder %s23, 5
      %p141 = por %p139, %p140
      %p142 = scmp.ne.s32.totalorder %s134, %s137
      %p143 = scmp.eq.s32.totalorder %s23, 0
      %p144 = por %p142, %p143
      %p145 = scmp.ne.s32.totalorder %s134, %s137
      %p146 = scmp.eq.s32.totalorder %s28, 5
      %p147 = por %p145, %p146
      %p148 = scmp.ne.s32.totalorder %s137, %s138
      %p149 = scmp.eq.s32.totalorder %s28, 0
      %p150 = por %p148, %p149
      %p151 = scmp.ne.s32.totalorder %s137, %s138
      %p152 = scmp.eq.s32.totalorder %s29, 5
      %p153 = por %p151, %p152
      %p155 = scmp.ne.s32.totalorder %s138, %s154
      %p156 = scmp.eq.s32.totalorder %s29, 0
      %p157 = por %p155, %p156
      %s159 = sadd.s32 %s158, 1
      %p162 = scmp.eq.s32.totalorder %s23, 5
      %p163 = scmp.ne.s32.totalorder %s158, %s160
      %p164 = scmp.eq.s32.totalorder %s23, 0
      %p165 = por %p163, %p164
      %p166 = scmp.ne.s32.totalorder %s158, %s160
      %p167 = scmp.eq.s32.totalorder %s28, 5
      %p168 = por %p166, %p167
      %p169 = scmp.ne.s32.totalorder %s160, %s161
      %p170 = scmp.eq.s32.totalorder %s28, 0
      %p171 = por %p169, %p170
      %p172 = scmp.ne.s32.totalorder %s160, %s161
      %p173 = scmp.eq.s32.totalorder %s29, 5
      %p174 = por %p172, %p173
      %p176 = scmp.ne.s32.totalorder %s161, %s175
      %p177 = scmp.eq.s32.totalorder %s29, 0
      %p178 = por %p176, %p177
      %s179 = ssub.s32 %s30, %s49
      %s180 = ssub.s32 %s31, %s45
      %s181 = sor.u32 %s179, %s180
      %p182 = scmp.eq.s32.totalorder %s181, 0
      %s184 = sadd.s32 %s183, 1
      %s185 = scalar_select %p182, %s183, %s184
      %p188 = pneg %p182
      %p189 = scmp.eq.s32.totalorder %s23, 5
      %p190 = por %p188, %p189
      %p191 = scmp.ne.s32.totalorder %s183, %s186
      %p192 = scmp.eq.s32.totalorder %s23, 0
      %p193 = por %p191, %p192
      %p194 = scmp.ne.s32.totalorder %s183, %s186
      %p195 = scmp.eq.s32.totalorder %s28, 5
      %p196 = por %p194, %p195
      %p197 = scmp.ne.s32.totalorder %s186, %s187
      %p198 = scmp.eq.s32.totalorder %s28, 0
      %p199 = por %p197, %p198
      %p200 = scmp.ne.s32.totalorder %s186, %s187
      %p201 = scmp.eq.s32.totalorder %s29, 5
      %p202 = por %p200, %p201
      %p204 = scmp.ne.s32.totalorder %s187, %s203
      %p205 = scmp.eq.s32.totalorder %s29, 0
      %p206 = por %p204, %p205
      %p207 = scmp.le.s32.totalorder 1, %s23
      %p208 = scmp.lt.s32.totalorder %s23, 7
      %p209 = pnand %p207, %p208
      %p210 = pneg %p209
      // Predicated region
      $region9: #{segformer_decoder_forward.1} parent=5 // pred_check
        _
      $region10: #{segformer_decoder_forward.1} parent=5 // pred_check_branch
        %212 = sbr.rel (%p209) target = $region12
      $region11: #{segformer_decoder_forward.1} parent=5 // pred_region
        %s213 = ssub.s32 %s23, 1
        // Predicated region
        $region13: #{segformer_decoder_forward.1} parent=11 // pred_check
          %p214 = pneg %p171
        $region14: #{segformer_decoder_forward.1} parent=11 // pred_check_branch
          %216 = sbr.rel (%p214) target = $region16
        $region15: #{segformer_decoder_forward.1} parent=11 // pred_region
          %s218 = ssub.s32 256, 256
          %219 = vsyncadd [#allocation10], %s218
          %s221 = sshll.u32 [#allocation11], 4
          %s222 = int_to_ptr.vmem [resolvable:$true] %s221
          %224 = dma.hbm_to_vmem [thread:$0]  %s4, 256, %s222, [#allocation10]
        $region16: #{segformer_decoder_forward.1} parent=11 // pred_fallthru
          _
      $region12: #{segformer_decoder_forward.1} parent=5 // pred_fallthru
        _
      %p225 = scmp.lt.s32.totalorder %s23, 6
      // Predicated region
      $region17: #{segformer_decoder_forward.1} parent=5 // pred_check
        %p226 = pneg %p225
      $region18: #{segformer_decoder_forward.1} parent=5 // pred_check_branch
        %228 = sbr.rel (%p226) target = $region20
      $region19: #{segformer_decoder_forward.1} parent=5 // pred_region
        // Predicated region
        $region21: #{segformer_decoder_forward.1} parent=19 // pred_check
          %p229 = pneg %p64
        $region22: #{segformer_decoder_forward.1} parent=19 // pred_check_branch
          %231 = sbr.rel (%p229) target = $region24
        $region23: #{segformer_decoder_forward.1} parent=19 // pred_region
          %s232 = sand.u32 %s54, 1
          %s233 = scalar_lea.sflag [#allocation4], %s232
          %s234 = sand.u32 %s54, 1
          %s235 = smul.addr %s234, 256
          %s236 = scalar_lea.vmem [#allocation3], %s235
          %s238 = ssub.s32 4096, 4096
          %239 = vsyncadd %s233, %s238
          %s240 = smul.addr %s30, 32
          %s241 = smul.addr %s32, 64
          %s242 = sadd.s32 %s240, %s241
          %s243 = smul.addr %s242, 128
          %s244 = scalar_lea.hbm %s0, %s243
          %s245 = sshll.u32 %s236, 4
          %s246 = int_to_ptr.vmem [resolvable:$true] %s245
          %251 = dma.hbm_to_vmem [thread:$0]  %s244, 4096, %s246, %s233, 128, 128, 8
        $region24: #{segformer_decoder_forward.1} parent=19 // pred_fallthru
          _
        // Predicated region
        $region25: #{segformer_decoder_forward.1} parent=19 // pred_check
          %p252 = pneg %p90
        $region26: #{segformer_decoder_forward.1} parent=19 // pred_check_branch
          %254 = sbr.rel (%p252) target = $region28
        $region27: #{segformer_decoder_forward.1} parent=19 // pred_region
          %s255 = sand.u32 %s23, 1
          %s256 = scalar_lea.sflag [#allocation7], %s255
          %s257 = sand.u32 %s80, 1
          %s258 = smul.addr %s257, 16
          %s259 = scalar_lea.vmem [#allocation6], %s258
          %s261 = ssub.s32 256, 256
          %262 = vsyncadd %s256, %s261
          %s263 = smul.addr %s32, 2
          %s264 = smul.addr %s263, 128
          %s265 = scalar_lea.hbm %s1, %s264
          %s266 = sshll.u32 %s259, 4
          %s267 = int_to_ptr.vmem [resolvable:$true] %s266
          %272 = dma.hbm_to_vmem [thread:$0]  %s265, 256, %s267, %s256, 128, 128, 8
        $region28: #{segformer_decoder_forward.1} parent=19 // pred_fallthru
          _
        // Predicated region
        $region29: #{segformer_decoder_forward.1} parent=19 // pred_check
          %p273 = pneg %p118
        $region30: #{segformer_decoder_forward.1} parent=19 // pred_check_branch
          %275 = sbr.rel (%p273) target = $region32
        $region31: #{segformer_decoder_forward.1} parent=19 // pred_region
          %s276 = sand.u32 %s23, 1
          %s277 = scalar_lea.sflag [#allocation7], %s276
          %s278 = sand.u32 %s108, 1
          %s279 = smul.addr %s278, 16
          %s280 = scalar_lea.vmem [#allocation8], %s279
          %s281 = smul.u32 2, %s31
          %s283 = ssub.s32 256, 256
          %284 = vsyncadd %s277, %s283
          %s285 = smul.addr %s32, 2
          %s286 = sadd.s32 %s281, %s285
          %s287 = smul.addr %s286, 128
          %s288 = scalar_lea.hbm %s2, %s287
          %s289 = sshll.u32 %s280, 4
          %s290 = int_to_ptr.vmem [resolvable:$true] %s289
          %295 = dma.hbm_to_vmem [thread:$0]  %s288, 256, %s290, %s277, 128, 128, 8
        $region32: #{segformer_decoder_forward.1} parent=19 // pred_fallthru
          _
        // Predicated region
        $region33: #{segformer_decoder_forward.1} parent=19 // pred_check
          %p296 = pneg %p144
        $region34: #{segformer_decoder_forward.1} parent=19 // pred_check_branch
          %298 = sbr.rel (%p296) target = $region36
        $region35: #{segformer_decoder_forward.1} parent=19 // pred_region
          %s299 = sand.u32 %s23, 1
          %s300 = scalar_lea.sflag [#allocation10], %s299
          %s301 = sand.u32 %s134, 1
          %s302 = smul.addr %s301, 16
          %s303 = scalar_lea.vmem [#allocation9], %s302
          %s305 = ssub.s32 256, 256
          %306 = vsyncadd %s300, %s305
          %s307 = smul.addr %s32, 2
          %s308 = smul.addr %s307, 128
          %s309 = scalar_lea.hbm %s3, %s308
          %s310 = sshll.u32 %s303, 4
          %s311 = int_to_ptr.vmem [resolvable:$true] %s310
          %316 = dma.hbm_to_vmem [thread:$0]  %s309, 256, %s311, %s300, 128, 128, 8
        $region36: #{segformer_decoder_forward.1} parent=19 // pred_fallthru
          _
      $region20: #{segformer_decoder_forward.1} parent=5 // pred_fallthru
        _
      %p317 = scmp.le.s32.totalorder 1, %s23
      %p318 = scmp.lt.s32.totalorder %s23, 7
      %p319 = pnand %p317, %p318
      %p320 = pneg %p319
      // Predicated region
      $region37: #{segformer_decoder_forward.1} parent=5 // pred_check
        _
      $region38: #{segformer_decoder_forward.1} parent=5 // pred_check_branch
        %322 = sbr.rel (%p319) target = $region40
      $region39: #{segformer_decoder_forward.1} parent=5 // pred_region
        %s323 = ssub.s32 %s23, 1
        %s324 = sand.u32 %s57, 1
        %s325 = scalar_lea.sflag [#allocation4], %s324
        %s326 = sand.u32 %s57, 1
        %s327 = smul.addr %s326, 256
        %s328 = scalar_lea.vmem [#allocation3], %s327
        // Predicated region
        $region41: #{segformer_decoder_forward.1} parent=39 // pred_check
          %p329 = pneg %p70
        $region42: #{segformer_decoder_forward.1} parent=39 // pred_check_branch
          %331 = sbr.rel (%p329) target = $region44
        $region43: #{segformer_decoder_forward.1} parent=39 // pred_region
          %332 = dma.done %s325, 4096
        $region44: #{segformer_decoder_forward.1} parent=39 // pred_fallthru
          _
        %s333 = sand.u32 %s28, 1
        %s334 = scalar_lea.sflag [#allocation7], %s333
        %s335 = sand.u32 %s83, 1
        %s336 = smul.addr %s335, 16
        %s337 = scalar_lea.vmem [#allocation6], %s336
        // Predicated region
        $region45: #{segformer_decoder_forward.1} parent=39 // pred_check
          %p338 = pneg %p96
        $region46: #{segformer_decoder_forward.1} parent=39 // pred_check_branch
          %340 = sbr.rel (%p338) target = $region48
        $region47: #{segformer_decoder_forward.1} parent=39 // pred_region
          %341 = dma.done %s334, 256
        $region48: #{segformer_decoder_forward.1} parent=39 // pred_fallthru
          _
        %s342 = sand.u32 %s28, 1
        %s343 = scalar_lea.sflag [#allocation7], %s342
        %s344 = sand.u32 %s111, 1
        %s345 = smul.addr %s344, 16
        %s346 = scalar_lea.vmem [#allocation8], %s345
        // Predicated region
        $region49: #{segformer_decoder_forward.1} parent=39 // pred_check
          %p347 = pneg %p124
        $region50: #{segformer_decoder_forward.1} parent=39 // pred_check_branch
          %349 = sbr.rel (%p347) target = $region52
        $region51: #{segformer_decoder_forward.1} parent=39 // pred_region
          %350 = dma.done %s343, 256
        $region52: #{segformer_decoder_forward.1} parent=39 // pred_fallthru
          _
        %s351 = sand.u32 %s28, 1
        %s352 = scalar_lea.sflag [#allocation10], %s351
        %s353 = sand.u32 %s137, 1
        %s354 = smul.addr %s353, 16
        %s355 = scalar_lea.vmem [#allocation9], %s354
        // Predicated region
        $region53: #{segformer_decoder_forward.1} parent=39 // pred_check
          %p356 = pneg %p150
        $region54: #{segformer_decoder_forward.1} parent=39 // pred_check_branch
          %358 = sbr.rel (%p356) target = $region56
        $region55: #{segformer_decoder_forward.1} parent=39 // pred_region
          %359 = dma.done %s352, 256
        $region56: #{segformer_decoder_forward.1} parent=39 // pred_fallthru
          _
        // Predicated region
        $region57: #{segformer_decoder_forward.1} parent=39 // pred_check
          %p360 = pneg %p171
        $region58: #{segformer_decoder_forward.1} parent=39 // pred_check_branch
          %362 = sbr.rel (%p360) target = $region60
        $region59: #{segformer_decoder_forward.1} parent=39 // pred_region
          %363 = dma.done [#allocation10], 256
        $region60: #{segformer_decoder_forward.1} parent=39 // pred_fallthru
          _
        %s364 = sand.u32 %s57, 1
        %s365 = scalar_lea.sflag [#allocation4], %s364
        %s366 = sand.u32 %s57, 1
        %s367 = smul.addr %s366, 256
        %s368 = scalar_lea.vmem [#allocation3], %s367
        %p369 = pneg %p70
        %p370 = pneg %p67
        %s371 = sand.u32 %s28, 1
        %s372 = scalar_lea.sflag [#allocation7], %s371
        %s373 = sand.u32 %s83, 1
        %s374 = smul.addr %s373, 16
        %s375 = scalar_lea.vmem [#allocation6], %s374
        %p376 = pneg %p96
        %p377 = pneg %p93
        %s378 = sand.u32 %s28, 1
        %s379 = scalar_lea.sflag [#allocation7], %s378
        %s380 = sand.u32 %s111, 1
        %s381 = smul.addr %s380, 16
        %s382 = scalar_lea.vmem [#allocation8], %s381
        %p383 = pneg %p124
        %p384 = pneg %p121
        %s385 = sand.u32 %s28, 1
        %s386 = scalar_lea.sflag [#allocation10], %s385
        %s387 = sand.u32 %s137, 1
        %s388 = smul.addr %s387, 16
        %s389 = scalar_lea.vmem [#allocation9], %s388
        %p390 = pneg %p150
        %p391 = pneg %p147
        %p392 = pneg %p171
        %p393 = pneg %p168
        %p394 = pneg %p199
        %p395 = pneg %p196
        %s396 = sand.u32 %s186, 1
        %s397 = scalar_lea.sflag [#allocation5], %s396
        %s398 = sand.u32 %s186, 1
        %s399 = smul.addr %s398, 256
        %s400 = scalar_lea.vmem [#allocation12], %s399
        %s401 = smul.u32 2, %s34
        %s402 = smul.u32 2, %s34
        %p403 = scmp.eq.s32.totalorder %s35, 0
        // Predicated region
        $region61: #{segformer_decoder_forward.1} parent=39 // pred_check
          %p404 = pneg %p403
        $region62: #{segformer_decoder_forward.1} parent=39 // pred_check_branch
          %406 = sbr.rel (%p404) target = $region64
        $region63: #{segformer_decoder_forward.1} parent=39 // pred_region
          %407 = vst [vmem:[#allocation2] sm:$0xff] 0.0
          %408 = vst [vmem:[#allocation2 + $0x8] sm:$0xff] 0.0
          %409 = vst [vmem:[#allocation2 + $0x10] sm:$0xff] 0.0
          %410 = vst [vmem:[#allocation2 + $0x18] sm:$0xff] 0.0
          %411 = vst [vmem:[#allocation2 + $0x20] sm:$0xff] 0.0
          %412 = vst [vmem:[#allocation2 + $0x28] sm:$0xff] 0.0
          %413 = vst [vmem:[#allocation2 + $0x30] sm:$0xff] 0.0
          %414 = vst [vmem:[#allocation2 + $0x38] sm:$0xff] 0.0
          %415 = vst [vmem:[#allocation2 + $0x40] sm:$0xff] 0.0
          %416 = vst [vmem:[#allocation2 + $0x48] sm:$0xff] 0.0
          %417 = vst [vmem:[#allocation2 + $0x50] sm:$0xff] 0.0
          %418 = vst [vmem:[#allocation2 + $0x58] sm:$0xff] 0.0
          %419 = vst [vmem:[#allocation2 + $0x60] sm:$0xff] 0.0
          %420 = vst [vmem:[#allocation2 + $0x68] sm:$0xff] 0.0
          %421 = vst [vmem:[#allocation2 + $0x70] sm:$0xff] 0.0
          %422 = vst [vmem:[#allocation2 + $0x78] sm:$0xff] 0.0
          %423 = vst [vmem:[#allocation2 + $0x80] sm:$0xff] 0.0
          %424 = vst [vmem:[#allocation2 + $0x88] sm:$0xff] 0.0
          %425 = vst [vmem:[#allocation2 + $0x90] sm:$0xff] 0.0
          %426 = vst [vmem:[#allocation2 + $0x98] sm:$0xff] 0.0
          %427 = vst [vmem:[#allocation2 + $0xa0] sm:$0xff] 0.0
          %428 = vst [vmem:[#allocation2 + $0xa8] sm:$0xff] 0.0
          %429 = vst [vmem:[#allocation2 + $0xb0] sm:$0xff] 0.0
          %430 = vst [vmem:[#allocation2 + $0xb8] sm:$0xff] 0.0
          %431 = vst [vmem:[#allocation2 + $0xc0] sm:$0xff] 0.0
          %432 = vst [vmem:[#allocation2 + $0xc8] sm:$0xff] 0.0
          %433 = vst [vmem:[#allocation2 + $0xd0] sm:$0xff] 0.0
          %434 = vst [vmem:[#allocation2 + $0xd8] sm:$0xff] 0.0
          %435 = vst [vmem:[#allocation2 + $0xe0] sm:$0xff] 0.0
          %436 = vst [vmem:[#allocation2 + $0xe8] sm:$0xff] 0.0
          %437 = vst [vmem:[#allocation2 + $0xf0] sm:$0xff] 0.0
          %438 = vst [vmem:[#allocation2 + $0xf8] sm:$0xff] 0.0
        $region64: #{segformer_decoder_forward.1} parent=39 // pred_fallthru
          _
        %v439 = vld [vmem:[%s328] sm:$0xff]
        %v440 = vld [vmem:[%s328 + $0x8] sm:$0xff]
        %v441 = vld [vmem:[%s328 + $0x10] sm:$0xff]
        %v442 = vld [vmem:[%s328 + $0x18] sm:$0xff]
        %v443 = vld [vmem:[%s328 + $0x20] sm:$0xff]
        %v444 = vld [vmem:[%s328 + $0x28] sm:$0xff]
        %v445 = vld [vmem:[%s328 + $0x30] sm:$0xff]
        %v446 = vld [vmem:[%s328 + $0x38] sm:$0xff]
        %v447 = vld [vmem:[%s328 + $0x40] sm:$0xff]
        %v448 = vld [vmem:[%s328 + $0x48] sm:$0xff]
        %v449 = vld [vmem:[%s328 + $0x50] sm:$0xff]
        %v450 = vld [vmem:[%s328 + $0x58] sm:$0xff]
        %v451 = vld [vmem:[%s328 + $0x60] sm:$0xff]
        %v452 = vld [vmem:[%s328 + $0x68] sm:$0xff]
        %v453 = vld [vmem:[%s328 + $0x70] sm:$0xff]
        %v454 = vld [vmem:[%s328 + $0x78] sm:$0xff]
        %v455 = vld [vmem:[%s328 + $0x80] sm:$0xff]
        %v456 = vld [vmem:[%s328 + $0x88] sm:$0xff]
        %v457 = vld [vmem:[%s328 + $0x90] sm:$0xff]
        %v458 = vld [vmem:[%s328 + $0x98] sm:$0xff]
        %v459 = vld [vmem:[%s328 + $0xa0] sm:$0xff]
        %v460 = vld [vmem:[%s328 + $0xa8] sm:$0xff]
        %v461 = vld [vmem:[%s328 + $0xb0] sm:$0xff]
        %v462 = vld [vmem:[%s328 + $0xb8] sm:$0xff]
        %v463 = vld [vmem:[%s328 + $0xc0] sm:$0xff]
        %v464 = vld [vmem:[%s328 + $0xc8] sm:$0xff]
        %v465 = vld [vmem:[%s328 + $0xd0] sm:$0xff]
        %v466 = vld [vmem:[%s328 + $0xd8] sm:$0xff]
        %v467 = vld [vmem:[%s328 + $0xe0] sm:$0xff]
        %v468 = vld [vmem:[%s328 + $0xe8] sm:$0xff]
        %v469 = vld [vmem:[%s328 + $0xf0] sm:$0xff]
        %v470 = vld [vmem:[%s328 + $0xf8] sm:$0xff]
        %v471 = vld [vmem:[%s337] sm:$0xff]
        %v472 = vld [vmem:[%s337 + $0x8] sm:$0xff]
        %vm473 = vcmask 130048
        %v475 = vsel %vm473, %v439, 0
        %v478 = vsel %vm473, %v440, 0
        %v481 = vsel %vm473, %v441, 0
        %v484 = vsel %vm473, %v442, 0
        %v487 = vsel %vm473, %v443, 0
        %v490 = vsel %vm473, %v444, 0
        %v493 = vsel %vm473, %v445, 0
        %v496 = vsel %vm473, %v446, 0
        %v499 = vsel %vm473, %v447, 0
        %v502 = vsel %vm473, %v448, 0
        %v505 = vsel %vm473, %v449, 0
        %v508 = vsel %vm473, %v450, 0
        %v511 = vsel %vm473, %v451, 0
        %v514 = vsel %vm473, %v452, 0
        %v517 = vsel %vm473, %v453, 0
        %v520 = vsel %vm473, %v454, 0
        %v523 = vsel %vm473, %v455, 0
        %v526 = vsel %vm473, %v456, 0
        %v529 = vsel %vm473, %v457, 0
        %v532 = vsel %vm473, %v458, 0
        %v535 = vsel %vm473, %v459, 0
        %v538 = vsel %vm473, %v460, 0
        %v541 = vsel %vm473, %v461, 0
        %v544 = vsel %vm473, %v462, 0
        %v547 = vsel %vm473, %v463, 0
        %v550 = vsel %vm473, %v464, 0
        %v553 = vsel %vm473, %v465, 0
        %v556 = vsel %vm473, %v466, 0
        %v559 = vsel %vm473, %v467, 0
        %v562 = vsel %vm473, %v468, 0
        %v565 = vsel %vm473, %v469, 0
        %v568 = vsel %vm473, %v470, 0
        %570 = vmatprep.subr.mxu0 0.0
        %571 = vmatpush1.msra.mxu0 %v471
        %572 = vmatprep.subr.mxu0 0.0
        %573 = vmatpush1.msra.mxu0 %v472
        %574 = vmatprep.subr.mxu0 0.0
        %575 = vmatpush1.msra.mxu0 0.0
        %576 = vmatprep.subr.mxu0 0.0
        %577 = vmatpush1.msra.mxu0 0.0
        %578 = vmatprep.subr.mxu0 0.0
        %579 = vmatpush1.msra.mxu0 0.0
        %580 = vmatprep.subr.mxu0 0.0
        %581 = vmatpush1.msra.mxu0 0.0
        %582 = vmatprep.subr.mxu0 0.0
        %583 = vmatpush1.msra.mxu0 0.0
        %584 = vmatprep.subr.mxu0 0.0
        %585 = vmatpush1.msra.mxu0 0.0
        %586 = vmatprep.subr.mxu0 0.0
        %587 = vmatpush1.msra.mxu0 0.0
        %588 = vmatprep.subr.mxu0 0.0
        %589 = vmatpush1.msra.mxu0 0.0
        %590 = vmatprep.subr.mxu0 0.0
        %591 = vmatpush1.msra.mxu0 0.0
        %592 = vmatprep.subr.mxu0 0.0
        %593 = vmatpush1.msra.mxu0 0.0
        %594 = vmatprep.subr.mxu0 0.0
        %595 = vmatpush1.msra.mxu0 0.0
        %596 = vmatprep.subr.mxu0 0.0
        %597 = vmatpush1.msra.mxu0 0.0
        %598 = vmatprep.subr.mxu0 0.0
        %599 = vmatpush1.msra.mxu0 0.0
        %600 = vmatprep.subr.mxu0 0.0
        %601 = vmatpush1.msra.mxu0 0.0
        %602 = vmatprep.subr.mxu0 0.0
        %603 = vmatpush1.msra.mxu0 0.0
        %604 = vmatprep.subr.mxu0 0.0
        %605 = vmatpush1.msra.mxu0 0.0
        %606 = vmatprep.subr.mxu0 0.0
        %607 = vmatpush1.msra.mxu0 0.0
        %608 = vmatprep.subr.mxu0 0.0
        %609 = vmatpush1.msra.mxu0 0.0
        %610 = vmatprep.subr.mxu0 0.0
        %611 = vmatpush1.msra.mxu0 0.0
        %612 = vmatprep.subr.mxu0 0.0
        %613 = vmatpush1.msra.mxu0 0.0
        %614 = vmatprep.subr.mxu0 0.0
        %615 = vmatpush1.msra.mxu0 0.0
        %616 = vmatprep.subr.mxu0 0.0
        %617 = vmatpush1.msra.mxu0 0.0
        %618 = vmatprep.subr.mxu0 0.0
        %619 = vmatpush1.msra.mxu0 0.0
        %620 = vmatprep.subr.mxu0 0.0
        %621 = vmatpush1.msra.mxu0 0.0
        %622 = vmatprep.subr.mxu0 0.0
        %623 = vmatpush1.msra.mxu0 0.0
        %624 = vmatprep.subr.mxu0 0.0
        %625 = vmatpush1.msra.mxu0 0.0
        %626 = vmatprep.subr.mxu0 0.0
        %627 = vmatpush1.msra.mxu0 0.0
        %628 = vmatprep.subr.mxu0 0.0
        %629 = vmatpush1.msra.mxu0 0.0
        %630 = vmatprep.subr.mxu0 0.0
        %631 = vmatpush1.msra.mxu0 0.0
        %632 = vmatprep.subr.mxu0 0.0
        %633 = vmatpush1.msra.mxu0 0.0
        %634 = vmatprep.mubr.f32.mxu0 0.0
        %635 = vmatmul.mubr.f32.gmra.mrb[0].mxu0 %v475
        %v636 = vpop.f32.mrb[0].mxu0
        %v637 = vadd.f32 0.0, %v636
        %v638 = vpop.f32.mrb[0].mxu0
        %639 = vmatprep.mubr.f32.mxu0 0.0
        %640 = vmatmul.mubr.f32.gmra.mrb[0].mxu0 %v478
        %v641 = vpop.f32.mrb[0].mxu0
        %v642 = vadd.f32 0.0, %v641
        %v643 = vpop.f32.mrb[0].mxu0
        %644 = vmatprep.mubr.f32.mxu0 0.0
        %645 = vmatmul.mubr.f32.gmra.mrb[0].mxu0 %v481
        %v646 = vpop.f32.mrb[0].mxu0
        %v647 = vadd.f32 0.0, %v646
        %v648 = vpop.f32.mrb[0].mxu0
        %649 = vmatprep.mubr.f32.mxu0 0.0
        %650 = vmatmul.mubr.f32.gmra.mrb[0].mxu0 %v484
        %v651 = vpop.f32.mrb[0].mxu0
        %v652 = vadd.f32 0.0, %v651
        %v653 = vpop.f32.mrb[0].mxu0
        %654 = vmatprep.mubr.f32.mxu0 0.0
        %655 = vmatmul.mubr.f32.gmra.mrb[0].mxu0 %v487
        %v656 = vpop.f32.mrb[0].mxu0
        %v657 = vadd.f32 0.0, %v656
        %v658 = vpop.f32.mrb[0].mxu0
        %659 = vmatprep.mubr.f32.mxu0 0.0
        %660 = vmatmul.mubr.f32.gmra.mrb[0].mxu0 %v490
        %v661 = vpop.f32.mrb[0].mxu0
        %v662 = vadd.f32 0.0, %v661
        %v663 = vpop.f32.mrb[0].mxu0
        %664 = vmatprep.mubr.f32.mxu0 0.0
        %665 = vmatmul.mubr.f32.gmra.mrb[0].mxu0 %v493
        %v666 = vpop.f32.mrb[0].mxu0
        %v667 = vadd.f32 0.0, %v666
        %v668 = vpop.f32.mrb[0].mxu0
        %669 = vmatprep.mubr.f32.mxu0 0.0
        %670 = vmatmul.mubr.f32.gmra.mrb[0].mxu0 %v496
        %v671 = vpop.f32.mrb[0].mxu0
        %v672 = vadd.f32 0.0, %v671
        %v673 = vpop.f32.mrb[0].mxu0
        %674 = vmatprep.mubr.f32.mxu0 0.0
        %675 = vmatmul.mubr.f32.gmra.mrb[0].mxu0 %v499
        %v676 = vpop.f32.mrb[0].mxu0
        %v677 = vadd.f32 0.0, %v676
        %v678 = vpop.f32.mrb[0].mxu0
        %679 = vmatprep.mubr.f32.mxu0 0.0
        %680 = vmatmul.mubr.f32.gmra.mrb[0].mxu0 %v502
        %v681 = vpop.f32.mrb[0].mxu0
        %v682 = vadd.f32 0.0, %v681
        %v683 = vpop.f32.mrb[0].mxu0
        %684 = vmatprep.mubr.f32.mxu0 0.0
        %685 = vmatmul.mubr.f32.gmra.mrb[0].mxu0 %v505
        %v686 = vpop.f32.mrb[0].mxu0
        %v687 = vadd.f32 0.0, %v686
        %v688 = vpop.f32.mrb[0].mxu0
        %689 = vmatprep.mubr.f32.mxu0 0.0
        %690 = vmatmul.mubr.f32.gmra.mrb[0].mxu0 %v508
        %v691 = vpop.f32.mrb[0].mxu0
        %v692 = vadd.f32 0.0, %v691
        %v693 = vpop.f32.mrb[0].mxu0
        %694 = vmatprep.mubr.f32.mxu0 0.0
        %695 = vmatmul.mubr.f32.gmra.mrb[0].mxu0 %v511
        %v696 = vpop.f32.mrb[0].mxu0
        %v697 = vadd.f32 0.0, %v696
        %v698 = vpop.f32.mrb[0].mxu0
        %699 = vmatprep.mubr.f32.mxu0 0.0
        %700 = vmatmul.mubr.f32.gmra.mrb[0].mxu0 %v514
        %v701 = vpop.f32.mrb[0].mxu0
        %v702 = vadd.f32 0.0, %v701
        %v703 = vpop.f32.mrb[0].mxu0
        %704 = vmatprep.mubr.f32.mxu0 0.0
        %705 = vmatmul.mubr.f32.gmra.mrb[0].mxu0 %v517
        %v706 = vpop.f32.mrb[0].mxu0
        %v707 = vadd.f32 0.0, %v706
        %v708 = vpop.f32.mrb[0].mxu0
        %709 = vmatprep.mubr.f32.mxu0 0.0
        %710 = vmatmul.mubr.f32.gmra.mrb[0].mxu0 %v520
        %v711 = vpop.f32.mrb[0].mxu0
        %v712 = vadd.f32 0.0, %v711
        %v713 = vpop.f32.mrb[0].mxu0
        %714 = vmatprep.mubr.f32.mxu0 0.0
        %715 = vmatmul.mubr.f32.gmra.mrb[0].mxu0 %v523
        %v716 = vpop.f32.mrb[0].mxu0
        %v717 = vadd.f32 0.0, %v716
        %v718 = vpop.f32.mrb[0].mxu0
        %719 = vmatprep.mubr.f32.mxu0 0.0
        %720 = vmatmul.mubr.f32.gmra.mrb[0].mxu0 %v526
        %v721 = vpop.f32.mrb[0].mxu0
        %v722 = vadd.f32 0.0, %v721
        %v723 = vpop.f32.mrb[0].mxu0
        %724 = vmatprep.mubr.f32.mxu0 0.0
        %725 = vmatmul.mubr.f32.gmra.mrb[0].mxu0 %v529
        %v726 = vpop.f32.mrb[0].mxu0
        %v727 = vadd.f32 0.0, %v726
        %v728 = vpop.f32.mrb[0].mxu0
        %729 = vmatprep.mubr.f32.mxu0 0.0
        %730 = vmatmul.mubr.f32.gmra.mrb[0].mxu0 %v532
        %v731 = vpop.f32.mrb[0].mxu0
        %v732 = vadd.f32 0.0, %v731
        %v733 = vpop.f32.mrb[0].mxu0
        %734 = vmatprep.mubr.f32.mxu0 0.0
        %735 = vmatmul.mubr.f32.gmra.mrb[0].mxu0 %v535
        %v736 = vpop.f32.mrb[0].mxu0
        %v737 = vadd.f32 0.0, %v736
        %v738 = vpop.f32.mrb[0].mxu0
        %739 = vmatprep.mubr.f32.mxu0 0.0
        %740 = vmatmul.mubr.f32.gmra.mrb[0].mxu0 %v538
        %v741 = vpop.f32.mrb[0].mxu0
        %v742 = vadd.f32 0.0, %v741
        %v743 = vpop.f32.mrb[0].mxu0
        %744 = vmatprep.mubr.f32.mxu0 0.0
        %745 = vmatmul.mubr.f32.gmra.mrb[0].mxu0 %v541
        %v746 = vpop.f32.mrb[0].mxu0
        %v747 = vadd.f32 0.0, %v746
        %v748 = vpop.f32.mrb[0].mxu0
        %749 = vmatprep.mubr.f32.mxu0 0.0
        %750 = vmatmul.mubr.f32.gmra.mrb[0].mxu0 %v544
        %v751 = vpop.f32.mrb[0].mxu0
        %v752 = vadd.f32 0.0, %v751
        %v753 = vpop.f32.mrb[0].mxu0
        %754 = vmatprep.mubr.f32.mxu0 0.0
        %755 = vmatmul.mubr.f32.gmra.mrb[0].mxu0 %v547
        %v756 = vpop.f32.mrb[0].mxu0
        %v757 = vadd.f32 0.0, %v756
        %v758 = vpop.f32.mrb[0].mxu0
        %759 = vmatprep.mubr.f32.mxu0 0.0
        %760 = vmatmul.mubr.f32.gmra.mrb[0].mxu0 %v550
        %v761 = vpop.f32.mrb[0].mxu0
        %v762 = vadd.f32 0.0, %v761
        %v763 = vpop.f32.mrb[0].mxu0
        %764 = vmatprep.mubr.f32.mxu0 0.0
        %765 = vmatmul.mubr.f32.gmra.mrb[0].mxu0 %v553
        %v766 = vpop.f32.mrb[0].mxu0
        %v767 = vadd.f32 0.0, %v766
        %v768 = vpop.f32.mrb[0].mxu0
        %769 = vmatprep.mubr.f32.mxu0 0.0
        %770 = vmatmul.mubr.f32.gmra.mrb[0].mxu0 %v556
        %v771 = vpop.f32.mrb[0].mxu0
        %v772 = vadd.f32 0.0, %v771
        %v773 = vpop.f32.mrb[0].mxu0
        %774 = vmatprep.mubr.f32.mxu0 0.0
        %775 = vmatmul.mubr.f32.gmra.mrb[0].mxu0 %v559
        %v776 = vpop.f32.mrb[0].mxu0
        %v777 = vadd.f32 0.0, %v776
        %v778 = vpop.f32.mrb[0].mxu0
        %779 = vmatprep.mubr.f32.mxu0 0.0
        %780 = vmatmul.mubr.f32.gmra.mrb[0].mxu0 %v562
        %v781 = vpop.f32.mrb[0].mxu0
        %v782 = vadd.f32 0.0, %v781
        %v783 = vpop.f32.mrb[0].mxu0
        %784 = vmatprep.mubr.f32.mxu0 0.0
        %785 = vmatmul.mubr.f32.gmra.mrb[0].mxu0 %v565
        %v786 = vpop.f32.mrb[0].mxu0
        %v787 = vadd.f32 0.0, %v786
        %v788 = vpop.f32.mrb[0].mxu0
        %789 = vmatprep.mubr.f32.mxu0 0.0
        %790 = vmatmul.mubr.f32.gmra.mrb[0].mxu0 %v568
        %v791 = vpop.f32.mrb[0].mxu0
        %v792 = vadd.f32 0.0, %v791
        %v793 = vpop.f32.mrb[0].mxu0
        %794 = vdwg.mxu0
        %v795 = vld [vmem:[%s355] sm:$0xff]
        %v796 = vld [vmem:[%s355 + $0x8] sm:$0xff]
        %v798 = vsel %vm473, %v795, 0
        %v801 = vsel %vm473, %v796, 0
        %803 = vmatprep.subr.mxu0 0.0
        %804 = vmatpush1.msra.mxu0 %v637
        %805 = vmatprep.subr.mxu0 0.0
        %806 = vmatpush1.msra.mxu0 %v642
        %807 = vmatprep.subr.mxu0 0.0
        %808 = vmatpush1.msra.mxu0 0.0
        %809 = vmatprep.subr.mxu0 0.0
        %810 = vmatpush1.msra.mxu0 0.0
        %811 = vmatprep.subr.mxu0 0.0
        %812 = vmatpush1.msra.mxu0 0.0
        %813 = vmatprep.subr.mxu0 0.0
        %814 = vmatpush1.msra.mxu0 0.0
        %815 = vmatprep.subr.mxu0 0.0
        %816 = vmatpush1.msra.mxu0 0.0
        %817 = vmatprep.subr.mxu0 0.0
        %818 = vmatpush1.msra.mxu0 0.0
        %819 = vmatprep.subr.mxu0 0.0
        %820 = vmatpush1.msra.mxu0 0.0
        %821 = vmatprep.subr.mxu0 0.0
        %822 = vmatpush1.msra.mxu0 0.0
        %823 = vmatprep.subr.mxu0 0.0
        %824 = vmatpush1.msra.mxu0 0.0
        %825 = vmatprep.subr.mxu0 0.0
        %826 = vmatpush1.msra.mxu0 0.0
        %827 = vmatprep.subr.mxu0 0.0
        %828 = vmatpush1.msra.mxu0 0.0
        %829 = vmatprep.subr.mxu0 0.0
        %830 = vmatpush1.msra.mxu0 0.0
        %831 = vmatprep.subr.mxu0 0.0
        %832 = vmatpush1.msra.mxu0 0.0
        %833 = vmatprep.subr.mxu0 0.0
        %834 = vmatpush1.msra.mxu0 0.0
        %835 = vmatprep.subr.mxu0 0.0
        %836 = vmatpush1.msra.mxu0 0.0
        %837 = vmatprep.subr.mxu0 0.0
        %838 = vmatpush1.msra.mxu0 0.0
        %839 = vmatprep.subr.mxu0 0.0
        %840 = vmatpush1.msra.mxu0 0.0
        %841 = vmatprep.subr.mxu0 0.0
        %842 = vmatpush1.msra.mxu0 0.0
        %843 = vmatprep.subr.mxu0 0.0
        %844 = vmatpush1.msra.mxu0 0.0
        %845 = vmatprep.subr.mxu0 0.0
        %846 = vmatpush1.msra.mxu0 0.0
        %847 = vmatprep.subr.mxu0 0.0
        %848 = vmatpush1.msra.mxu0 0.0
        %849 = vmatprep.subr.mxu0 0.0
        %850 = vmatpush1.msra.mxu0 0.0
        %851 = vmatprep.subr.mxu0 0.0
        %852 = vmatpush1.msra.mxu0 0.0
        %853 = vmatprep.subr.mxu0 0.0
        %854 = vmatpush1.msra.mxu0 0.0
        %855 = vmatprep.subr.mxu0 0.0
        %856 = vmatpush1.msra.mxu0 0.0
        %857 = vmatprep.subr.mxu0 0.0
        %858 = vmatpush1.msra.mxu0 0.0
        %859 = vmatprep.subr.mxu0 0.0
        %860 = vmatpush1.msra.mxu0 0.0
        %861 = vmatprep.subr.mxu0 0.0
        %862 = vmatpush1.msra.mxu0 0.0
        %863 = vmatprep.subr.mxu0 0.0
        %864 = vmatpush1.msra.mxu0 0.0
        %865 = vmatprep.subr.mxu0 0.0
        %866 = vmatpush1.msra.mxu0 0.0
        %867 = vmatprep.mubr.f32.mxu0 0.0
        %868 = vmatmul.mubr.f32.gmra.mrb[0].mxu0 %v798
        %v869 = vpop.f32.mrb[0].mxu0
        %v870 = vadd.f32 0.0, %v869
        %v871 = vpop.f32.mrb[0].mxu0
        %872 = vmatprep.mubr.f32.mxu0 0.0
        %873 = vmatmul.mubr.f32.gmra.mrb[0].mxu0 %v801
        %v874 = vpop.f32.mrb[0].mxu0
        %v875 = vadd.f32 0.0, %v874
        %v876 = vpop.f32.mrb[0].mxu0
        %877 = vdwg.mxu0
        %878 = vmatprep.subr.mxu0 0.0
        %879 = vmatpush1.msra.mxu0 %v647
        %880 = vmatprep.subr.mxu0 0.0
        %881 = vmatpush1.msra.mxu0 %v652
        %882 = vmatprep.subr.mxu0 0.0
        %883 = vmatpush1.msra.mxu0 0.0
        %884 = vmatprep.subr.mxu0 0.0
        %885 = vmatpush1.msra.mxu0 0.0
        %886 = vmatprep.subr.mxu0 0.0
        %887 = vmatpush1.msra.mxu0 0.0
        %888 = vmatprep.subr.mxu0 0.0
        %889 = vmatpush1.msra.mxu0 0.0
        %890 = vmatprep.subr.mxu0 0.0
        %891 = vmatpush1.msra.mxu0 0.0
        %892 = vmatprep.subr.mxu0 0.0
        %893 = vmatpush1.msra.mxu0 0.0
        %894 = vmatprep.subr.mxu0 0.0
        %895 = vmatpush1.msra.mxu0 0.0
        %896 = vmatprep.subr.mxu0 0.0
        %897 = vmatpush1.msra.mxu0 0.0
        %898 = vmatprep.subr.mxu0 0.0
        %899 = vmatpush1.msra.mxu0 0.0
        %900 = vmatprep.subr.mxu0 0.0
        %901 = vmatpush1.msra.mxu0 0.0
        %902 = vmatprep.subr.mxu0 0.0
        %903 = vmatpush1.msra.mxu0 0.0
        %904 = vmatprep.subr.mxu0 0.0
        %905 = vmatpush1.msra.mxu0 0.0
        %906 = vmatprep.subr.mxu0 0.0
        %907 = vmatpush1.msra.mxu0 0.0
        %908 = vmatprep.subr.mxu0 0.0
        %909 = vmatpush1.msra.mxu0 0.0
        %910 = vmatprep.subr.mxu0 0.0
        %911 = vmatpush1.msra.mxu0 0.0
        %912 = vmatprep.subr.mxu0 0.0
        %913 = vmatpush1.msra.mxu0 0.0
        %914 = vmatprep.subr.mxu0 0.0
        %915 = vmatpush1.msra.mxu0 0.0
        %916 = vmatprep.subr.mxu0 0.0
        %917 = vmatpush1.msra.mxu0 0.0
        %918 = vmatprep.subr.mxu0 0.0
        %919 = vmatpush1.msra.mxu0 0.0
        %920 = vmatprep.subr.mxu0 0.0
        %921 = vmatpush1.msra.mxu0 0.0
        %922 = vmatprep.subr.mxu0 0.0
        %923 = vmatpush1.msra.mxu0 0.0
        %924 = vmatprep.subr.mxu0 0.0
        %925 = vmatpush1.msra.mxu0 0.0
        %926 = vmatprep.subr.mxu0 0.0
        %927 = vmatpush1.msra.mxu0 0.0
        %928 = vmatprep.subr.mxu0 0.0
        %929 = vmatpush1.msra.mxu0 0.0
        %930 = vmatprep.subr.mxu0 0.0
        %931 = vmatpush1.msra.mxu0 0.0
        %932 = vmatprep.subr.mxu0 0.0
        %933 = vmatpush1.msra.mxu0 0.0
        %934 = vmatprep.subr.mxu0 0.0
        %935 = vmatpush1.msra.mxu0 0.0
        %936 = vmatprep.subr.mxu0 0.0
        %937 = vmatpush1.msra.mxu0 0.0
        %938 = vmatprep.subr.mxu0 0.0
        %939 = vmatpush1.msra.mxu0 0.0
        %940 = vmatprep.subr.mxu0 0.0
        %941 = vmatpush1.msra.mxu0 0.0
        %942 = vmatprep.mubr.f32.mxu0 0.0
        %943 = vmatmul.mubr.f32.gmra.mrb[0].mxu0 %v798
        %v944 = vpop.f32.mrb[0].mxu0
        %v945 = vadd.f32 0.0, %v944
        %v946 = vpop.f32.mrb[0].mxu0
        %947 = vmatprep.mubr.f32.mxu0 0.0
        %948 = vmatmul.mubr.f32.gmra.mrb[0].mxu0 %v801
        %v949 = vpop.f32.mrb[0].mxu0
        %v950 = vadd.f32 0.0, %v949
        %v951 = vpop.f32.mrb[0].mxu0
        %952 = vdwg.mxu0
        %953 = vmatprep.subr.mxu0 0.0
        %954 = vmatpush1.msra.mxu0 %v657
        %955 = vmatprep.subr.mxu0 0.0
        %956 = vmatpush1.msra.mxu0 %v662
        %957 = vmatprep.subr.mxu0 0.0
        %958 = vmatpush1.msra.mxu0 0.0
        %959 = vmatprep.subr.mxu0 0.0
        %960 = vmatpush1.msra.mxu0 0.0
        %961 = vmatprep.subr.mxu0 0.0
        %962 = vmatpush1.msra.mxu0 0.0
        %963 = vmatprep.subr.mxu0 0.0
        %964 = vmatpush1.msra.mxu0 0.0
        %965 = vmatprep.subr.mxu0 0.0
        %966 = vmatpush1.msra.mxu0 0.0
        %967 = vmatprep.subr.mxu0 0.0
        %968 = vmatpush1.msra.mxu0 0.0
        %969 = vmatprep.subr.mxu0 0.0
        %970 = vmatpush1.msra.mxu0 0.0
        %971 = vmatprep.subr.mxu0 0.0
        %972 = vmatpush1.msra.mxu0 0.0
        %973 = vmatprep.subr.mxu0 0.0
        %974 = vmatpush1.msra.mxu0 0.0
        %975 = vmatprep.subr.mxu0 0.0
        %976 = vmatpush1.msra.mxu0 0.0
        %977 = vmatprep.subr.mxu0 0.0
        %978 = vmatpush1.msra.mxu0 0.0
        %979 = vmatprep.subr.mxu0 0.0
        %980 = vmatpush1.msra.mxu0 0.0
        %981 = vmatprep.subr.mxu0 0.0
        %982 = vmatpush1.msra.mxu0 0.0
        %983 = vmatprep.subr.mxu0 0.0
        %984 = vmatpush1.msra.mxu0 0.0
        %985 = vmatprep.subr.mxu0 0.0
        %986 = vmatpush1.msra.mxu0 0.0
        %987 = vmatprep.subr.mxu0 0.0
        %988 = vmatpush1.msra.mxu0 0.0
        %989 = vmatprep.subr.mxu0 0.0
        %990 = vmatpush1.msra.mxu0 0.0
        %991 = vmatprep.subr.mxu0 0.0
        %992 = vmatpush1.msra.mxu0 0.0
        %993 = vmatprep.subr.mxu0 0.0
        %994 = vmatpush1.msra.mxu0 0.0
        %995 = vmatprep.subr.mxu0 0.0
        %996 = vmatpush1.msra.mxu0 0.0
        %997 = vmatprep.subr.mxu0 0.0
        %998 = vmatpush1.msra.mxu0 0.0
        %999 = vmatprep.subr.mxu0 0.0
        %1000 = vmatpush1.msra.mxu0 0.0
        %1001 = vmatprep.subr.mxu0 0.0
        %1002 = vmatpush1.msra.mxu0 0.0
        %1003 = vmatprep.subr.mxu0 0.0
        %1004 = vmatpush1.msra.mxu0 0.0
        %1005 = vmatprep.subr.mxu0 0.0
        %1006 = vmatpush1.msra.mxu0 0.0
        %1007 = vmatprep.subr.mxu0 0.0
        %1008 = vmatpush1.msra.mxu0 0.0
        %1009 = vmatprep.subr.mxu0 0.0
        %1010 = vmatpush1.msra.mxu0 0.0
        %1011 = vmatprep.subr.mxu0 0.0
        %1012 = vmatpush1.msra.mxu0 0.0
        %1013 = vmatprep.subr.mxu0 0.0
        %1014 = vmatpush1.msra.mxu0 0.0
        %1015 = vmatprep.subr.mxu0 0.0
        %1016 = vmatpush1.msra.mxu0 0.0
        %1017 = vmatprep.mubr.f32.mxu0 0.0
        %1018 = vmatmul.mubr.f32.gmra.mrb[0].mxu0 %v798
        %v1019 = vpop.f32.mrb[0].mxu0
        %v1020 = vadd.f32 0.0, %v1019
        %v1021 = vpop.f32.mrb[0].mxu0
        %1022 = vmatprep.mubr.f32.mxu0 0.0
        %1023 = vmatmul.mubr.f32.gmra.mrb[0].mxu0 %v801
        %v1024 = vpop.f32.mrb[0].mxu0
        %v1025 = vadd.f32 0.0, %v1024
        %v1026 = vpop.f32.mrb[0].mxu0
        %1027 = vdwg.mxu0
        %1028 = vmatprep.subr.mxu0 0.0
        %1029 = vmatpush1.msra.mxu0 %v667
        %1030 = vmatprep.subr.mxu0 0.0
        %1031 = vmatpush1.msra.mxu0 %v672
        %1032 = vmatprep.subr.mxu0 0.0
        %1033 = vmatpush1.msra.mxu0 0.0
        %1034 = vmatprep.subr.mxu0 0.0
        %1035 = vmatpush1.msra.mxu0 0.0
        %1036 = vmatprep.subr.mxu0 0.0
        %1037 = vmatpush1.msra.mxu0 0.0
        %1038 = vmatprep.subr.mxu0 0.0
        %1039 = vmatpush1.msra.mxu0 0.0
        %1040 = vmatprep.subr.mxu0 0.0
        %1041 = vmatpush1.msra.mxu0 0.0
        %1042 = vmatprep.subr.mxu0 0.0
        %1043 = vmatpush1.msra.mxu0 0.0
        %1044 = vmatprep.subr.mxu0 0.0
        %1045 = vmatpush1.msra.mxu0 0.0
        %1046 = vmatprep.subr.mxu0 0.0
        %1047 = vmatpush1.msra.mxu0 0.0
        %1048 = vmatprep.subr.mxu0 0.0
        %1049 = vmatpush1.msra.mxu0 0.0
        %1050 = vmatprep.subr.mxu0 0.0
        %1051 = vmatpush1.msra.mxu0 0.0
        %1052 = vmatprep.subr.mxu0 0.0
        %1053 = vmatpush1.msra.mxu0 0.0
        %1054 = vmatprep.subr.mxu0 0.0
        %1055 = vmatpush1.msra.mxu0 0.0
        %1056 = vmatprep.subr.mxu0 0.0
        %1057 = vmatpush1.msra.mxu0 0.0
        %1058 = vmatprep.subr.mxu0 0.0
        %1059 = vmatpush1.msra.mxu0 0.0
        %1060 = vmatprep.subr.mxu0 0.0
        %1061 = vmatpush1.msra.mxu0 0.0
        %1062 = vmatprep.subr.mxu0 0.0
        %1063 = vmatpush1.msra.mxu0 0.0
        %1064 = vmatprep.subr.mxu0 0.0
        %1065 = vmatpush1.msra.mxu0 0.0
        %1066 = vmatprep.subr.mxu0 0.0
        %1067 = vmatpush1.msra.mxu0 0.0
        %1068 = vmatprep.subr.mxu0 0.0
        %1069 = vmatpush1.msra.mxu0 0.0
        %1070 = vmatprep.subr.mxu0 0.0
        %1071 = vmatpush1.msra.mxu0 0.0
        %1072 = vmatprep.subr.mxu0 0.0
        %1073 = vmatpush1.msra.mxu0 0.0
        %1074 = vmatprep.subr.mxu0 0.0
        %1075 = vmatpush1.msra.mxu0 0.0
        %1076 = vmatprep.subr.mxu0 0.0
        %1077 = vmatpush1.msra.mxu0 0.0
        %1078 = vmatprep.subr.mxu0 0.0
        %1079 = vmatpush1.msra.mxu0 0.0
        %1080 = vmatprep.subr.mxu0 0.0
        %1081 = vmatpush1.msra.mxu0 0.0
        %1082 = vmatprep.subr.mxu0 0.0
        %1083 = vmatpush1.msra.mxu0 0.0
        %1084 = vmatprep.subr.mxu0 0.0
        %1085 = vmatpush1.msra.mxu0 0.0
        %1086 = vmatprep.subr.mxu0 0.0
        %1087 = vmatpush1.msra.mxu0 0.0
        %1088 = vmatprep.subr.mxu0 0.0
        %1089 = vmatpush1.msra.mxu0 0.0
        %1090 = vmatprep.subr.mxu0 0.0
        %1091 = vmatpush1.msra.mxu0 0.0
        %1092 = vmatprep.mubr.f32.mxu0 0.0
        %1093 = vmatmul.mubr.f32.gmra.mrb[0].mxu0 %v798
        %v1094 = vpop.f32.mrb[0].mxu0
        %v1095 = vadd.f32 0.0, %v1094
        %v1096 = vpop.f32.mrb[0].mxu0
        %1097 = vmatprep.mubr.f32.mxu0 0.0
        %1098 = vmatmul.mubr.f32.gmra.mrb[0].mxu0 %v801
        %v1099 = vpop.f32.mrb[0].mxu0
        %v1100 = vadd.f32 0.0, %v1099
        %v1101 = vpop.f32.mrb[0].mxu0
        %1102 = vdwg.mxu0
        %1103 = vmatprep.subr.mxu0 0.0
        %1104 = vmatpush1.msra.mxu0 %v677
        %1105 = vmatprep.subr.mxu0 0.0
        %1106 = vmatpush1.msra.mxu0 %v682
        %1107 = vmatprep.subr.mxu0 0.0
        %1108 = vmatpush1.msra.mxu0 0.0
        %1109 = vmatprep.subr.mxu0 0.0
        %1110 = vmatpush1.msra.mxu0 0.0
        %1111 = vmatprep.subr.mxu0 0.0
        %1112 = vmatpush1.msra.mxu0 0.0
        %1113 = vmatprep.subr.mxu0 0.0
        %1114 = vmatpush1.msra.mxu0 0.0
        %1115 = vmatprep.subr.mxu0 0.0
        %1116 = vmatpush1.msra.mxu0 0.0
        %1117 = vmatprep.subr.mxu0 0.0
        %1118 = vmatpush1.msra.mxu0 0.0
        %1119 = vmatprep.subr.mxu0 0.0
        %1120 = vmatpush1.msra.mxu0 0.0
        %1121 = vmatprep.subr.mxu0 0.0
        %1122 = vmatpush1.msra.mxu0 0.0
        %1123 = vmatprep.subr.mxu0 0.0
        %1124 = vmatpush1.msra.mxu0 0.0
        %1125 = vmatprep.subr.mxu0 0.0
        %1126 = vmatpush1.msra.mxu0 0.0
        %1127 = vmatprep.subr.mxu0 0.0
        %1128 = vmatpush1.msra.mxu0 0.0
        %1129 = vmatprep.subr.mxu0 0.0
        %1130 = vmatpush1.msra.mxu0 0.0
        %1131 = vmatprep.subr.mxu0 0.0
        %1132 = vmatpush1.msra.mxu0 0.0
        %1133 = vmatprep.subr.mxu0 0.0
        %1134 = vmatpush1.msra.mxu0 0.0
        %1135 = vmatprep.subr.mxu0 0.0
        %1136 = vmatpush1.msra.mxu0 0.0
        %1137 = vmatprep.subr.mxu0 0.0
        %1138 = vmatpush1.msra.mxu0 0.0
        %1139 = vmatprep.subr.mxu0 0.0
        %1140 = vmatpush1.msra.mxu0 0.0
        %1141 = vmatprep.subr.mxu0 0.0
        %1142 = vmatpush1.msra.mxu0 0.0
        %1143 = vmatprep.subr.mxu0 0.0
        %1144 = vmatpush1.msra.mxu0 0.0
        %1145 = vmatprep.subr.mxu0 0.0
        %1146 = vmatpush1.msra.mxu0 0.0
        %1147 = vmatprep.subr.mxu0 0.0
        %1148 = vmatpush1.msra.mxu0 0.0
        %1149 = vmatprep.subr.mxu0 0.0
        %1150 = vmatpush1.msra.mxu0 0.0
        %1151 = vmatprep.subr.mxu0 0.0
        %1152 = vmatpush1.msra.mxu0 0.0
        %1153 = vmatprep.subr.mxu0 0.0
        %1154 = vmatpush1.msra.mxu0 0.0
        %1155 = vmatprep.subr.mxu0 0.0
        %1156 = vmatpush1.msra.mxu0 0.0
        %1157 = vmatprep.subr.mxu0 0.0
        %1158 = vmatpush1.msra.mxu0 0.0
        %1159 = vmatprep.subr.mxu0 0.0
        %1160 = vmatpush1.msra.mxu0 0.0
        %1161 = vmatprep.subr.mxu0 0.0
        %1162 = vmatpush1.msra.mxu0 0.0
        %1163 = vmatprep.subr.mxu0 0.0
        %1164 = vmatpush1.msra.mxu0 0.0
        %1165 = vmatprep.subr.mxu0 0.0
        %1166 = vmatpush1.msra.mxu0 0.0
        %1167 = vmatprep.mubr.f32.mxu0 0.0
        %1168 = vmatmul.mubr.f32.gmra.mrb[0].mxu0 %v798
        %v1169 = vpop.f32.mrb[0].mxu0
        %v1170 = vadd.f32 0.0, %v1169
        %v1171 = vpop.f32.mrb[0].mxu0
        %1172 = vmatprep.mubr.f32.mxu0 0.0
        %1173 = vmatmul.mubr.f32.gmra.mrb[0].mxu0 %v801
        %v1174 = vpop.f32.mrb[0].mxu0
        %v1175 = vadd.f32 0.0, %v1174
        %v1176 = vpop.f32.mrb[0].mxu0
        %1177 = vdwg.mxu0
        %1178 = vmatprep.subr.mxu0 0.0
        %1179 = vmatpush1.msra.mxu0 %v687
        %1180 = vmatprep.subr.mxu0 0.0
        %1181 = vmatpush1.msra.mxu0 %v692
        %1182 = vmatprep.subr.mxu0 0.0
        %1183 = vmatpush1.msra.mxu0 0.0
        %1184 = vmatprep.subr.mxu0 0.0
        %1185 = vmatpush1.msra.mxu0 0.0
        %1186 = vmatprep.subr.mxu0 0.0
        %1187 = vmatpush1.msra.mxu0 0.0
        %1188 = vmatprep.subr.mxu0 0.0
        %1189 = vmatpush1.msra.mxu0 0.0
        %1190 = vmatprep.subr.mxu0 0.0
        %1191 = vmatpush1.msra.mxu0 0.0
        %1192 = vmatprep.subr.mxu0 0.0
        %1193 = vmatpush1.msra.mxu0 0.0
        %1194 = vmatprep.subr.mxu0 0.0
        %1195 = vmatpush1.msra.mxu0 0.0
        %1196 = vmatprep.subr.mxu0 0.0
        %1197 = vmatpush1.msra.mxu0 0.0
        %1198 = vmatprep.subr.mxu0 0.0
        %1199 = vmatpush1.msra.mxu0 0.0
        %1200 = vmatprep.subr.mxu0 0.0
        %1201 = vmatpush1.msra.mxu0 0.0
        %1202 = vmatprep.subr.mxu0 0.0
        %1203 = vmatpush1.msra.mxu0 0.0
        %1204 = vmatprep.subr.mxu0 0.0
        %1205 = vmatpush1.msra.mxu0 0.0
        %1206 = vmatprep.subr.mxu0 0.0
        %1207 = vmatpush1.msra.mxu0 0.0
        %1208 = vmatprep.subr.mxu0 0.0
        %1209 = vmatpush1.msra.mxu0 0.0
        %1210 = vmatprep.subr.mxu0 0.0
        %1211 = vmatpush1.msra.mxu0 0.0
        %1212 = vmatprep.subr.mxu0 0.0
        %1213 = vmatpush1.msra.mxu0 0.0
        %1214 = vmatprep.subr.mxu0 0.0
        %1215 = vmatpush1.msra.mxu0 0.0
        %1216 = vmatprep.subr.mxu0 0.0
        %1217 = vmatpush1.msra.mxu0 0.0
        %1218 = vmatprep.subr.mxu0 0.0
        %1219 = vmatpush1.msra.mxu0 0.0
        %1220 = vmatprep.subr.mxu0 0.0
        %1221 = vmatpush1.msra.mxu0 0.0
        %1222 = vmatprep.subr.mxu0 0.0
        %1223 = vmatpush1.msra.mxu0 0.0
        %1224 = vmatprep.subr.mxu0 0.0
        %1225 = vmatpush1.msra.mxu0 0.0
        %1226 = vmatprep.subr.mxu0 0.0
        %1227 = vmatpush1.msra.mxu0 0.0
        %1228 = vmatprep.subr.mxu0 0.0
        %1229 = vmatpush1.msra.mxu0 0.0
        %1230 = vmatprep.subr.mxu0 0.0
        %1231 = vmatpush1.msra.mxu0 0.0
        %1232 = vmatprep.subr.mxu0 0.0
        %1233 = vmatpush1.msra.mxu0 0.0
        %1234 = vmatprep.subr.mxu0 0.0
        %1235 = vmatpush1.msra.mxu0 0.0
        %1236 = vmatprep.subr.mxu0 0.0
        %1237 = vmatpush1.msra.mxu0 0.0
        %1238 = vmatprep.subr.mxu0 0.0
        %1239 = vmatpush1.msra.mxu0 0.0
        %1240 = vmatprep.subr.mxu0 0.0
        %1241 = vmatpush1.msra.mxu0 0.0
        %1242 = vmatprep.mubr.f32.mxu0 0.0
        %1243 = vmatmul.mubr.f32.gmra.mrb[0].mxu0 %v798
        %v1244 = vpop.f32.mrb[0].mxu0
        %v1245 = vadd.f32 0.0, %v1244
        %v1246 = vpop.f32.mrb[0].mxu0
        %1247 = vmatprep.mubr.f32.mxu0 0.0
        %1248 = vmatmul.mubr.f32.gmra.mrb[0].mxu0 %v801
        %v1249 = vpop.f32.mrb[0].mxu0
        %v1250 = vadd.f32 0.0, %v1249
        %v1251 = vpop.f32.mrb[0].mxu0
        %1252 = vdwg.mxu0
        %1253 = vmatprep.subr.mxu0 0.0
        %1254 = vmatpush1.msra.mxu0 %v697
        %1255 = vmatprep.subr.mxu0 0.0
        %1256 = vmatpush1.msra.mxu0 %v702
        %1257 = vmatprep.subr.mxu0 0.0
        %1258 = vmatpush1.msra.mxu0 0.0
        %1259 = vmatprep.subr.mxu0 0.0
        %1260 = vmatpush1.msra.mxu0 0.0
        %1261 = vmatprep.subr.mxu0 0.0
        %1262 = vmatpush1.msra.mxu0 0.0
        %1263 = vmatprep.subr.mxu0 0.0
        %1264 = vmatpush1.msra.mxu0 0.0
        %1265 = vmatprep.subr.mxu0 0.0
        %1266 = vmatpush1.msra.mxu0 0.0
        %1267 = vmatprep.subr.mxu0 0.0
        %1268 = vmatpush1.msra.mxu0 0.0
        %1269 = vmatprep.subr.mxu0 0.0
        %1270 = vmatpush1.msra.mxu0 0.0
        %1271 = vmatprep.subr.mxu0 0.0
        %1272 = vmatpush1.msra.mxu0 0.0
        %1273 = vmatprep.subr.mxu0 0.0
        %1274 = vmatpush1.msra.mxu0 0.0
        %1275 = vmatprep.subr.mxu0 0.0
        %1276 = vmatpush1.msra.mxu0 0.0
        %1277 = vmatprep.subr.mxu0 0.0
        %1278 = vmatpush1.msra.mxu0 0.0
        %1279 = vmatprep.subr.mxu0 0.0
        %1280 = vmatpush1.msra.mxu0 0.0
        %1281 = vmatprep.subr.mxu0 0.0
        %1282 = vmatpush1.msra.mxu0 0.0
        %1283 = vmatprep.subr.mxu0 0.0
        %1284 = vmatpush1.msra.mxu0 0.0
        %1285 = vmatprep.subr.mxu0 0.0
        %1286 = vmatpush1.msra.mxu0 0.0
        %1287 = vmatprep.subr.mxu0 0.0
        %1288 = vmatpush1.msra.mxu0 0.0
        %1289 = vmatprep.subr.mxu0 0.0
        %1290 = vmatpush1.msra.mxu0 0.0
        %1291 = vmatprep.subr.mxu0 0.0
        %1292 = vmatpush1.msra.mxu0 0.0
        %1293 = vmatprep.subr.mxu0 0.0
        %1294 = vmatpush1.msra.mxu0 0.0
        %1295 = vmatprep.subr.mxu0 0.0
        %1296 = vmatpush1.msra.mxu0 0.0
        %1297 = vmatprep.subr.mxu0 0.0
        %1298 = vmatpush1.msra.mxu0 0.0
        %1299 = vmatprep.subr.mxu0 0.0
        %1300 = vmatpush1.msra.mxu0 0.0
        %1301 = vmatprep.subr.mxu0 0.0
        %1302 = vmatpush1.msra.mxu0 0.0
        %1303 = vmatprep.subr.mxu0 0.0
        %1304 = vmatpush1.msra.mxu0 0.0
        %1305 = vmatprep.subr.mxu0 0.0
        %1306 = vmatpush1.msra.mxu0 0.0
        %1307 = vmatprep.subr.mxu0 0.0
        %1308 = vmatpush1.msra.mxu0 0.0
        %1309 = vmatprep.subr.mxu0 0.0
        %1310 = vmatpush1.msra.mxu0 0.0
        %1311 = vmatprep.subr.mxu0 0.0
        %1312 = vmatpush1.msra.mxu0 0.0
        %1313 = vmatprep.subr.mxu0 0.0
        %1314 = vmatpush1.msra.mxu0 0.0
        %1315 = vmatprep.subr.mxu0 0.0
        %1316 = vmatpush1.msra.mxu0 0.0
        %1317 = vmatprep.mubr.f32.mxu0 0.0
        %1318 = vmatmul.mubr.f32.gmra.mrb[0].mxu0 %v798
        %v1319 = vpop.f32.mrb[0].mxu0
        %v1320 = vadd.f32 0.0, %v1319
        %v1321 = vpop.f32.mrb[0].mxu0
        %1322 = vmatprep.mubr.f32.mxu0 0.0
        %1323 = vmatmul.mubr.f32.gmra.mrb[0].mxu0 %v801
        %v1324 = vpop.f32.mrb[0].mxu0
        %v1325 = vadd.f32 0.0, %v1324
        %v1326 = vpop.f32.mrb[0].mxu0
        %1327 = vdwg.mxu0
        %1328 = vmatprep.subr.mxu0 0.0
        %1329 = vmatpush1.msra.mxu0 %v707
        %1330 = vmatprep.subr.mxu0 0.0
        %1331 = vmatpush1.msra.mxu0 %v712
        %1332 = vmatprep.subr.mxu0 0.0
        %1333 = vmatpush1.msra.mxu0 0.0
        %1334 = vmatprep.subr.mxu0 0.0
        %1335 = vmatpush1.msra.mxu0 0.0
        %1336 = vmatprep.subr.mxu0 0.0
        %1337 = vmatpush1.msra.mxu0 0.0
        %1338 = vmatprep.subr.mxu0 0.0
        %1339 = vmatpush1.msra.mxu0 0.0
        %1340 = vmatprep.subr.mxu0 0.0
        %1341 = vmatpush1.msra.mxu0 0.0
        %1342 = vmatprep.subr.mxu0 0.0
        %1343 = vmatpush1.msra.mxu0 0.0
        %1344 = vmatprep.subr.mxu0 0.0
        %1345 = vmatpush1.msra.mxu0 0.0
        %1346 = vmatprep.subr.mxu0 0.0
        %1347 = vmatpush1.msra.mxu0 0.0
        %1348 = vmatprep.subr.mxu0 0.0
        %1349 = vmatpush1.msra.mxu0 0.0
        %1350 = vmatprep.subr.mxu0 0.0
        %1351 = vmatpush1.msra.mxu0 0.0
        %1352 = vmatprep.subr.mxu0 0.0
        %1353 = vmatpush1.msra.mxu0 0.0
        %1354 = vmatprep.subr.mxu0 0.0
        %1355 = vmatpush1.msra.mxu0 0.0
        %1356 = vmatprep.subr.mxu0 0.0
        %1357 = vmatpush1.msra.mxu0 0.0
        %1358 = vmatprep.subr.mxu0 0.0
        %1359 = vmatpush1.msra.mxu0 0.0
        %1360 = vmatprep.subr.mxu0 0.0
        %1361 = vmatpush1.msra.mxu0 0.0
        %1362 = vmatprep.subr.mxu0 0.0
        %1363 = vmatpush1.msra.mxu0 0.0
        %1364 = vmatprep.subr.mxu0 0.0
        %1365 = vmatpush1.msra.mxu0 0.0
        %1366 = vmatprep.subr.mxu0 0.0
        %1367 = vmatpush1.msra.mxu0 0.0
        %1368 = vmatprep.subr.mxu0 0.0
        %1369 = vmatpush1.msra.mxu0 0.0
        %1370 = vmatprep.subr.mxu0 0.0
        %1371 = vmatpush1.msra.mxu0 0.0
        %1372 = vmatprep.subr.mxu0 0.0
        %1373 = vmatpush1.msra.mxu0 0.0
        %1374 = vmatprep.subr.mxu0 0.0
        %1375 = vmatpush1.msra.mxu0 0.0
        %1376 = vmatprep.subr.mxu0 0.0
        %1377 = vmatpush1.msra.mxu0 0.0
        %1378 = vmatprep.subr.mxu0 0.0
        %1379 = vmatpush1.msra.mxu0 0.0
        %1380 = vmatprep.subr.mxu0 0.0
        %1381 = vmatpush1.msra.mxu0 0.0
        %1382 = vmatprep.subr.mxu0 0.0
        %1383 = vmatpush1.msra.mxu0 0.0
        %1384 = vmatprep.subr.mxu0 0.0
        %1385 = vmatpush1.msra.mxu0 0.0
        %1386 = vmatprep.subr.mxu0 0.0
        %1387 = vmatpush1.msra.mxu0 0.0
        %1388 = vmatprep.subr.mxu0 0.0
        %1389 = vmatpush1.msra.mxu0 0.0
        %1390 = vmatprep.subr.mxu0 0.0
        %1391 = vmatpush1.msra.mxu0 0.0
        %1392 = vmatprep.mubr.f32.mxu0 0.0
        %1393 = vmatmul.mubr.f32.gmra.mrb[0].mxu0 %v798
        %v1394 = vpop.f32.mrb[0].mxu0
        %v1395 = vadd.f32 0.0, %v1394
        %v1396 = vpop.f32.mrb[0].mxu0
        %1397 = vmatprep.mubr.f32.mxu0 0.0
        %1398 = vmatmul.mubr.f32.gmra.mrb[0].mxu0 %v801
        %v1399 = vpop.f32.mrb[0].mxu0
        %v1400 = vadd.f32 0.0, %v1399
        %v1401 = vpop.f32.mrb[0].mxu0
        %1402 = vdwg.mxu0
        %1403 = vmatprep.subr.mxu0 0.0
        %1404 = vmatpush1.msra.mxu0 %v717
        %1405 = vmatprep.subr.mxu0 0.0
        %1406 = vmatpush1.msra.mxu0 %v722
        %1407 = vmatprep.subr.mxu0 0.0
        %1408 = vmatpush1.msra.mxu0 0.0
        %1409 = vmatprep.subr.mxu0 0.0
        %1410 = vmatpush1.msra.mxu0 0.0
        %1411 = vmatprep.subr.mxu0 0.0
        %1412 = vmatpush1.msra.mxu0 0.0
        %1413 = vmatprep.subr.mxu0 0.0
        %1414 = vmatpush1.msra.mxu0 0.0
        %1415 = vmatprep.subr.mxu0 0.0
        %1416 = vmatpush1.msra.mxu0 0.0
        %1417 = vmatprep.subr.mxu0 0.0
        %1418 = vmatpush1.msra.mxu0 0.0
        %1419 = vmatprep.subr.mxu0 0.0
        %1420 = vmatpush1.msra.mxu0 0.0
        %1421 = vmatprep.subr.mxu0 0.0
        %1422 = vmatpush1.msra.mxu0 0.0
        %1423 = vmatprep.subr.mxu0 0.0
        %1424 = vmatpush1.msra.mxu0 0.0
        %1425 = vmatprep.subr.mxu0 0.0
        %1426 = vmatpush1.msra.mxu0 0.0
        %1427 = vmatprep.subr.mxu0 0.0
        %1428 = vmatpush1.msra.mxu0 0.0
        %1429 = vmatprep.subr.mxu0 0.0
        %1430 = vmatpush1.msra.mxu0 0.0
        %1431 = vmatprep.subr.mxu0 0.0
        %1432 = vmatpush1.msra.mxu0 0.0
        %1433 = vmatprep.subr.mxu0 0.0
        %1434 = vmatpush1.msra.mxu0 0.0
        %1435 = vmatprep.subr.mxu0 0.0
        %1436 = vmatpush1.msra.mxu0 0.0
        %1437 = vmatprep.subr.mxu0 0.0
        %1438 = vmatpush1.msra.mxu0 0.0
        %1439 = vmatprep.subr.mxu0 0.0
        %1440 = vmatpush1.msra.mxu0 0.0
        %1441 = vmatprep.subr.mxu0 0.0
        %1442 = vmatpush1.msra.mxu0 0.0
        %1443 = vmatprep.subr.mxu0 0.0
        %1444 = vmatpush1.msra.mxu0 0.0
        %1445 = vmatprep.subr.mxu0 0.0
        %1446 = vmatpush1.msra.mxu0 0.0
        %1447 = vmatprep.subr.mxu0 0.0
        %1448 = vmatpush1.msra.mxu0 0.0
        %1449 = vmatprep.subr.mxu0 0.0
        %1450 = vmatpush1.msra.mxu0 0.0
        %1451 = vmatprep.subr.mxu0 0.0
        %1452 = vmatpush1.msra.mxu0 0.0
        %1453 = vmatprep.subr.mxu0 0.0
        %1454 = vmatpush1.msra.mxu0 0.0
        %1455 = vmatprep.subr.mxu0 0.0
        %1456 = vmatpush1.msra.mxu0 0.0
        %1457 = vmatprep.subr.mxu0 0.0
        %1458 = vmatpush1.msra.mxu0 0.0
        %1459 = vmatprep.subr.mxu0 0.0
        %1460 = vmatpush1.msra.mxu0 0.0
        %1461 = vmatprep.subr.mxu0 0.0
        %1462 = vmatpush1.msra.mxu0 0.0
        %1463 = vmatprep.subr.mxu0 0.0
        %1464 = vmatpush1.msra.mxu0 0.0
        %1465 = vmatprep.subr.mxu0 0.0
        %1466 = vmatpush1.msra.mxu0 0.0
        %1467 = vmatprep.mubr.f32.mxu0 0.0
        %1468 = vmatmul.mubr.f32.gmra.mrb[0].mxu0 %v798
        %v1469 = vpop.f32.mrb[0].mxu0
        %v1470 = vadd.f32 0.0, %v1469
        %v1471 = vpop.f32.mrb[0].mxu0
        %1472 = vmatprep.mubr.f32.mxu0 0.0
        %1473 = vmatmul.mubr.f32.gmra.mrb[0].mxu0 %v801
        %v1474 = vpop.f32.mrb[0].mxu0
        %v1475 = vadd.f32 0.0, %v1474
        %v1476 = vpop.f32.mrb[0].mxu0
        %1477 = vdwg.mxu0
        %1478 = vmatprep.subr.mxu0 0.0
        %1479 = vmatpush1.msra.mxu0 %v727
        %1480 = vmatprep.subr.mxu0 0.0
        %1481 = vmatpush1.msra.mxu0 %v732
        %1482 = vmatprep.subr.mxu0 0.0
        %1483 = vmatpush1.msra.mxu0 0.0
        %1484 = vmatprep.subr.mxu0 0.0
        %1485 = vmatpush1.msra.mxu0 0.0
        %1486 = vmatprep.subr.mxu0 0.0
        %1487 = vmatpush1.msra.mxu0 0.0
        %1488 = vmatprep.subr.mxu0 0.0
        %1489 = vmatpush1.msra.mxu0 0.0
        %1490 = vmatprep.subr.mxu0 0.0
        %1491 = vmatpush1.msra.mxu0 0.0
        %1492 = vmatprep.subr.mxu0 0.0
        %1493 = vmatpush1.msra.mxu0 0.0
        %1494 = vmatprep.subr.mxu0 0.0
        %1495 = vmatpush1.msra.mxu0 0.0
        %1496 = vmatprep.subr.mxu0 0.0
        %1497 = vmatpush1.msra.mxu0 0.0
        %1498 = vmatprep.subr.mxu0 0.0
        %1499 = vmatpush1.msra.mxu0 0.0
        %1500 = vmatprep.subr.mxu0 0.0
        %1501 = vmatpush1.msra.mxu0 0.0
        %1502 = vmatprep.subr.mxu0 0.0
        %1503 = vmatpush1.msra.mxu0 0.0
        %1504 = vmatprep.subr.mxu0 0.0
        %1505 = vmatpush1.msra.mxu0 0.0
        %1506 = vmatprep.subr.mxu0 0.0
        %1507 = vmatpush1.msra.mxu0 0.0
        %1508 = vmatprep.subr.mxu0 0.0
        %1509 = vmatpush1.msra.mxu0 0.0
        %1510 = vmatprep.subr.mxu0 0.0
        %1511 = vmatpush1.msra.mxu0 0.0
        %1512 = vmatprep.subr.mxu0 0.0
        %1513 = vmatpush1.msra.mxu0 0.0
        %1514 = vmatprep.subr.mxu0 0.0
        %1515 = vmatpush1.msra.mxu0 0.0
        %1516 = vmatprep.subr.mxu0 0.0
        %1517 = vmatpush1.msra.mxu0 0.0
        %1518 = vmatprep.subr.mxu0 0.0
        %1519 = vmatpush1.msra.mxu0 0.0
        %1520 = vmatprep.subr.mxu0 0.0
        %1521 = vmatpush1.msra.mxu0 0.0
        %1522 = vmatprep.subr.mxu0 0.0
        %1523 = vmatpush1.msra.mxu0 0.0
        %1524 = vmatprep.subr.mxu0 0.0
        %1525 = vmatpush1.msra.mxu0 0.0
        %1526 = vmatprep.subr.mxu0 0.0
        %1527 = vmatpush1.msra.mxu0 0.0
        %1528 = vmatprep.subr.mxu0 0.0
        %1529 = vmatpush1.msra.mxu0 0.0
        %1530 = vmatprep.subr.mxu0 0.0
        %1531 = vmatpush1.msra.mxu0 0.0
        %1532 = vmatprep.subr.mxu0 0.0
        %1533 = vmatpush1.msra.mxu0 0.0
        %1534 = vmatprep.subr.mxu0 0.0
        %1535 = vmatpush1.msra.mxu0 0.0
        %1536 = vmatprep.subr.mxu0 0.0
        %1537 = vmatpush1.msra.mxu0 0.0
        %1538 = vmatprep.subr.mxu0 0.0
        %1539 = vmatpush1.msra.mxu0 0.0
        %1540 = vmatprep.subr.mxu0 0.0
        %1541 = vmatpush1.msra.mxu0 0.0
        %1542 = vmatprep.mubr.f32.mxu0 0.0
        %1543 = vmatmul.mubr.f32.gmra.mrb[0].mxu0 %v798
        %v1544 = vpop.f32.mrb[0].mxu0
        %v1545 = vadd.f32 0.0, %v1544
        %v1546 = vpop.f32.mrb[0].mxu0
        %1547 = vmatprep.mubr.f32.mxu0 0.0
        %1548 = vmatmul.mubr.f32.gmra.mrb[0].mxu0 %v801
        %v1549 = vpop.f32.mrb[0].mxu0
        %v1550 = vadd.f32 0.0, %v1549
        %v1551 = vpop.f32.mrb[0].mxu0
        %1552 = vdwg.mxu0
        %1553 = vmatprep.subr.mxu0 0.0
        %1554 = vmatpush1.msra.mxu0 %v737
        %1555 = vmatprep.subr.mxu0 0.0
        %1556 = vmatpush1.msra.mxu0 %v742
        %1557 = vmatprep.subr.mxu0 0.0
        %1558 = vmatpush1.msra.mxu0 0.0
        %1559 = vmatprep.subr.mxu0 0.0
        %1560 = vmatpush1.msra.mxu0 0.0
        %1561 = vmatprep.subr.mxu0 0.0
        %1562 = vmatpush1.msra.mxu0 0.0
        %1563 = vmatprep.subr.mxu0 0.0
        %1564 = vmatpush1.msra.mxu0 0.0
        %1565 = vmatprep.subr.mxu0 0.0
        %1566 = vmatpush1.msra.mxu0 0.0
        %1567 = vmatprep.subr.mxu0 0.0
        %1568 = vmatpush1.msra.mxu0 0.0
        %1569 = vmatprep.subr.mxu0 0.0
        %1570 = vmatpush1.msra.mxu0 0.0
        %1571 = vmatprep.subr.mxu0 0.0
        %1572 = vmatpush1.msra.mxu0 0.0
        %1573 = vmatprep.subr.mxu0 0.0
        %1574 = vmatpush1.msra.mxu0 0.0
        %1575 = vmatprep.subr.mxu0 0.0
        %1576 = vmatpush1.msra.mxu0 0.0
        %1577 = vmatprep.subr.mxu0 0.0
        %1578 = vmatpush1.msra.mxu0 0.0
        %1579 = vmatprep.subr.mxu0 0.0
        %1580 = vmatpush1.msra.mxu0 0.0
        %1581 = vmatprep.subr.mxu0 0.0
        %1582 = vmatpush1.msra.mxu0 0.0
        %1583 = vmatprep.subr.mxu0 0.0
        %1584 = vmatpush1.msra.mxu0 0.0
        %1585 = vmatprep.subr.mxu0 0.0
        %1586 = vmatpush1.msra.mxu0 0.0
        %1587 = vmatprep.subr.mxu0 0.0
        %1588 = vmatpush1.msra.mxu0 0.0
        %1589 = vmatprep.subr.mxu0 0.0
        %1590 = vmatpush1.msra.mxu0 0.0
        %1591 = vmatprep.subr.mxu0 0.0
        %1592 = vmatpush1.msra.mxu0 0.0
        %1593 = vmatprep.subr.mxu0 0.0
        %1594 = vmatpush1.msra.mxu0 0.0
        %1595 = vmatprep.subr.mxu0 0.0
        %1596 = vmatpush1.msra.mxu0 0.0
        %1597 = vmatprep.subr.mxu0 0.0
        %1598 = vmatpush1.msra.mxu0 0.0
        %1599 = vmatprep.subr.mxu0 0.0
        %1600 = vmatpush1.msra.mxu0 0.0
        %1601 = vmatprep.subr.mxu0 0.0
        %1602 = vmatpush1.msra.mxu0 0.0
        %1603 = vmatprep.subr.mxu0 0.0
        %1604 = vmatpush1.msra.mxu0 0.0
        %1605 = vmatprep.subr.mxu0 0.0
        %1606 = vmatpush1.msra.mxu0 0.0
        %1607 = vmatprep.subr.mxu0 0.0
        %1608 = vmatpush1.msra.mxu0 0.0
        %1609 = vmatprep.subr.mxu0 0.0
        %1610 = vmatpush1.msra.mxu0 0.0
        %1611 = vmatprep.subr.mxu0 0.0
        %1612 = vmatpush1.msra.mxu0 0.0
        %1613 = vmatprep.subr.mxu0 0.0
        %1614 = vmatpush1.msra.mxu0 0.0
        %1615 = vmatprep.subr.mxu0 0.0
        %1616 = vmatpush1.msra.mxu0 0.0
        %1617 = vmatprep.mubr.f32.mxu0 0.0
        %1618 = vmatmul.mubr.f32.gmra.mrb[0].mxu0 %v798
        %v1619 = vpop.f32.mrb[0].mxu0
        %v1620 = vadd.f32 0.0, %v1619
        %v1621 = vpop.f32.mrb[0].mxu0
        %1622 = vmatprep.mubr.f32.mxu0 0.0
        %1623 = vmatmul.mubr.f32.gmra.mrb[0].mxu0 %v801
        %v1624 = vpop.f32.mrb[0].mxu0
        %v1625 = vadd.f32 0.0, %v1624
        %v1626 = vpop.f32.mrb[0].mxu0
        %1627 = vdwg.mxu0
        %1628 = vmatprep.subr.mxu0 0.0
        %1629 = vmatpush1.msra.mxu0 %v747
        %1630 = vmatprep.subr.mxu0 0.0
        %1631 = vmatpush1.msra.mxu0 %v752
        %1632 = vmatprep.subr.mxu0 0.0
        %1633 = vmatpush1.msra.mxu0 0.0
        %1634 = vmatprep.subr.mxu0 0.0
        %1635 = vmatpush1.msra.mxu0 0.0
        %1636 = vmatprep.subr.mxu0 0.0
        %1637 = vmatpush1.msra.mxu0 0.0
        %1638 = vmatprep.subr.mxu0 0.0
        %1639 = vmatpush1.msra.mxu0 0.0
        %1640 = vmatprep.subr.mxu0 0.0
        %1641 = vmatpush1.msra.mxu0 0.0
        %1642 = vmatprep.subr.mxu0 0.0
        %1643 = vmatpush1.msra.mxu0 0.0
        %1644 = vmatprep.subr.mxu0 0.0
        %1645 = vmatpush1.msra.mxu0 0.0
        %1646 = vmatprep.subr.mxu0 0.0
        %1647 = vmatpush1.msra.mxu0 0.0
        %1648 = vmatprep.subr.mxu0 0.0
        %1649 = vmatpush1.msra.mxu0 0.0
        %1650 = vmatprep.subr.mxu0 0.0
        %1651 = vmatpush1.msra.mxu0 0.0
        %1652 = vmatprep.subr.mxu0 0.0
        %1653 = vmatpush1.msra.mxu0 0.0
        %1654 = vmatprep.subr.mxu0 0.0
        %1655 = vmatpush1.msra.mxu0 0.0
        %1656 = vmatprep.subr.mxu0 0.0
        %1657 = vmatpush1.msra.mxu0 0.0
        %1658 = vmatprep.subr.mxu0 0.0
        %1659 = vmatpush1.msra.mxu0 0.0
        %1660 = vmatprep.subr.mxu0 0.0
        %1661 = vmatpush1.msra.mxu0 0.0
        %1662 = vmatprep.subr.mxu0 0.0
        %1663 = vmatpush1.msra.mxu0 0.0
        %1664 = vmatprep.subr.mxu0 0.0
        %1665 = vmatpush1.msra.mxu0 0.0
        %1666 = vmatprep.subr.mxu0 0.0
        %1667 = vmatpush1.msra.mxu0 0.0
        %1668 = vmatprep.subr.mxu0 0.0
        %1669 = vmatpush1.msra.mxu0 0.0
        %1670 = vmatprep.subr.mxu0 0.0
        %1671 = vmatpush1.msra.mxu0 0.0
        %1672 = vmatprep.subr.mxu0 0.0
        %1673 = vmatpush1.msra.mxu0 0.0
        %1674 = vmatprep.subr.mxu0 0.0
        %1675 = vmatpush1.msra.mxu0 0.0
        %1676 = vmatprep.subr.mxu0 0.0
        %1677 = vmatpush1.msra.mxu0 0.0
        %1678 = vmatprep.subr.mxu0 0.0
        %1679 = vmatpush1.msra.mxu0 0.0
        %1680 = vmatprep.subr.mxu0 0.0
        %1681 = vmatpush1.msra.mxu0 0.0
        %1682 = vmatprep.subr.mxu0 0.0
        %1683 = vmatpush1.msra.mxu0 0.0
        %1684 = vmatprep.subr.mxu0 0.0
        %1685 = vmatpush1.msra.mxu0 0.0
        %1686 = vmatprep.subr.mxu0 0.0
        %1687 = vmatpush1.msra.mxu0 0.0
        %1688 = vmatprep.subr.mxu0 0.0
        %1689 = vmatpush1.msra.mxu0 0.0
        %1690 = vmatprep.subr.mxu0 0.0
        %1691 = vmatpush1.msra.mxu0 0.0
        %1692 = vmatprep.mubr.f32.mxu0 0.0
        %1693 = vmatmul.mubr.f32.gmra.mrb[0].mxu0 %v798
        %v1694 = vpop.f32.mrb[0].mxu0
        %v1695 = vadd.f32 0.0, %v1694
        %v1696 = vpop.f32.mrb[0].mxu0
        %1697 = vmatprep.mubr.f32.mxu0 0.0
        %1698 = vmatmul.mubr.f32.gmra.mrb[0].mxu0 %v801
        %v1699 = vpop.f32.mrb[0].mxu0
        %v1700 = vadd.f32 0.0, %v1699
        %v1701 = vpop.f32.mrb[0].mxu0
        %1702 = vdwg.mxu0
        %1703 = vmatprep.subr.mxu0 0.0
        %1704 = vmatpush1.msra.mxu0 %v757
        %1705 = vmatprep.subr.mxu0 0.0
        %1706 = vmatpush1.msra.mxu0 %v762
        %1707 = vmatprep.subr.mxu0 0.0
        %1708 = vmatpush1.msra.mxu0 0.0
        %1709 = vmatprep.subr.mxu0 0.0
        %1710 = vmatpush1.msra.mxu0 0.0
        %1711 = vmatprep.subr.mxu0 0.0
        %1712 = vmatpush1.msra.mxu0 0.0
        %1713 = vmatprep.subr.mxu0 0.0
        %1714 = vmatpush1.msra.mxu0 0.0
        %1715 = vmatprep.subr.mxu0 0.0
        %1716 = vmatpush1.msra.mxu0 0.0
        %1717 = vmatprep.subr.mxu0 0.0
        %1718 = vmatpush1.msra.mxu0 0.0
        %1719 = vmatprep.subr.mxu0 0.0
        %1720 = vmatpush1.msra.mxu0 0.0
        %1721 = vmatprep.subr.mxu0 0.0
        %1722 = vmatpush1.msra.mxu0 0.0
        %1723 = vmatprep.subr.mxu0 0.0
        %1724 = vmatpush1.msra.mxu0 0.0
        %1725 = vmatprep.subr.mxu0 0.0
        %1726 = vmatpush1.msra.mxu0 0.0
        %1727 = vmatprep.subr.mxu0 0.0
        %1728 = vmatpush1.msra.mxu0 0.0
        %1729 = vmatprep.subr.mxu0 0.0
        %1730 = vmatpush1.msra.mxu0 0.0
        %1731 = vmatprep.subr.mxu0 0.0
        %1732 = vmatpush1.msra.mxu0 0.0
        %1733 = vmatprep.subr.mxu0 0.0
        %1734 = vmatpush1.msra.mxu0 0.0
        %1735 = vmatprep.subr.mxu0 0.0
        %1736 = vmatpush1.msra.mxu0 0.0
        %1737 = vmatprep.subr.mxu0 0.0
        %1738 = vmatpush1.msra.mxu0 0.0
        %1739 = vmatprep.subr.mxu0 0.0
        %1740 = vmatpush1.msra.mxu0 0.0
        %1741 = vmatprep.subr.mxu0 0.0
        %1742 = vmatpush1.msra.mxu0 0.0
        %1743 = vmatprep.subr.mxu0 0.0
        %1744 = vmatpush1.msra.mxu0 0.0
        %1745 = vmatprep.subr.mxu0 0.0
        %1746 = vmatpush1.msra.mxu0 0.0
        %1747 = vmatprep.subr.mxu0 0.0
        %1748 = vmatpush1.msra.mxu0 0.0
        %1749 = vmatprep.subr.mxu0 0.0
        %1750 = vmatpush1.msra.mxu0 0.0
        %1751 = vmatprep.subr.mxu0 0.0
        %1752 = vmatpush1.msra.mxu0 0.0
        %1753 = vmatprep.subr.mxu0 0.0
        %1754 = vmatpush1.msra.mxu0 0.0
        %1755 = vmatprep.subr.mxu0 0.0
        %1756 = vmatpush1.msra.mxu0 0.0
        %1757 = vmatprep.subr.mxu0 0.0
        %1758 = vmatpush1.msra.mxu0 0.0
        %1759 = vmatprep.subr.mxu0 0.0
        %1760 = vmatpush1.msra.mxu0 0.0
        %1761 = vmatprep.subr.mxu0 0.0
        %1762 = vmatpush1.msra.mxu0 0.0
        %1763 = vmatprep.subr.mxu0 0.0
        %1764 = vmatpush1.msra.mxu0 0.0
        %1765 = vmatprep.subr.mxu0 0.0
        %1766 = vmatpush1.msra.mxu0 0.0
        %1767 = vmatprep.mubr.f32.mxu0 0.0
        %1768 = vmatmul.mubr.f32.gmra.mrb[0].mxu0 %v798
        %v1769 = vpop.f32.mrb[0].mxu0
        %v1770 = vadd.f32 0.0, %v1769
        %v1771 = vpop.f32.mrb[0].mxu0
        %1772 = vmatprep.mubr.f32.mxu0 0.0
        %1773 = vmatmul.mubr.f32.gmra.mrb[0].mxu0 %v801
        %v1774 = vpop.f32.mrb[0].mxu0
        %v1775 = vadd.f32 0.0, %v1774
        %v1776 = vpop.f32.mrb[0].mxu0
        %1777 = vdwg.mxu0
        %1778 = vmatprep.subr.mxu0 0.0
        %1779 = vmatpush1.msra.mxu0 %v767
        %1780 = vmatprep.subr.mxu0 0.0
        %1781 = vmatpush1.msra.mxu0 %v772
        %1782 = vmatprep.subr.mxu0 0.0
        %1783 = vmatpush1.msra.mxu0 0.0
        %1784 = vmatprep.subr.mxu0 0.0
        %1785 = vmatpush1.msra.mxu0 0.0
        %1786 = vmatprep.subr.mxu0 0.0
        %1787 = vmatpush1.msra.mxu0 0.0
        %1788 = vmatprep.subr.mxu0 0.0
        %1789 = vmatpush1.msra.mxu0 0.0
        %1790 = vmatprep.subr.mxu0 0.0
        %1791 = vmatpush1.msra.mxu0 0.0
        %1792 = vmatprep.subr.mxu0 0.0
        %1793 = vmatpush1.msra.mxu0 0.0
        %1794 = vmatprep.subr.mxu0 0.0
        %1795 = vmatpush1.msra.mxu0 0.0
        %1796 = vmatprep.subr.mxu0 0.0
        %1797 = vmatpush1.msra.mxu0 0.0
        %1798 = vmatprep.subr.mxu0 0.0
        %1799 = vmatpush1.msra.mxu0 0.0
        %1800 = vmatprep.subr.mxu0 0.0
        %1801 = vmatpush1.msra.mxu0 0.0
        %1802 = vmatprep.subr.mxu0 0.0
        %1803 = vmatpush1.msra.mxu0 0.0
        %1804 = vmatprep.subr.mxu0 0.0
        %1805 = vmatpush1.msra.mxu0 0.0
        %1806 = vmatprep.subr.mxu0 0.0
        %1807 = vmatpush1.msra.mxu0 0.0
        %1808 = vmatprep.subr.mxu0 0.0
        %1809 = vmatpush1.msra.mxu0 0.0
        %1810 = vmatprep.subr.mxu0 0.0
        %1811 = vmatpush1.msra.mxu0 0.0
        %1812 = vmatprep.subr.mxu0 0.0
        %1813 = vmatpush1.msra.mxu0 0.0
        %1814 = vmatprep.subr.mxu0 0.0
        %1815 = vmatpush1.msra.mxu0 0.0
        %1816 = vmatprep.subr.mxu0 0.0
        %1817 = vmatpush1.msra.mxu0 0.0
        %1818 = vmatprep.subr.mxu0 0.0
        %1819 = vmatpush1.msra.mxu0 0.0
        %1820 = vmatprep.subr.mxu0 0.0
        %1821 = vmatpush1.msra.mxu0 0.0
        %1822 = vmatprep.subr.mxu0 0.0
        %1823 = vmatpush1.msra.mxu0 0.0
        %1824 = vmatprep.subr.mxu0 0.0
        %1825 = vmatpush1.msra.mxu0 0.0
        %1826 = vmatprep.subr.mxu0 0.0
        %1827 = vmatpush1.msra.mxu0 0.0
        %1828 = vmatprep.subr.mxu0 0.0
        %1829 = vmatpush1.msra.mxu0 0.0
        %1830 = vmatprep.subr.mxu0 0.0
        %1831 = vmatpush1.msra.mxu0 0.0
        %1832 = vmatprep.subr.mxu0 0.0
        %1833 = vmatpush1.msra.mxu0 0.0
        %1834 = vmatprep.subr.mxu0 0.0
        %1835 = vmatpush1.msra.mxu0 0.0
        %1836 = vmatprep.subr.mxu0 0.0
        %1837 = vmatpush1.msra.mxu0 0.0
        %1838 = vmatprep.subr.mxu0 0.0
        %1839 = vmatpush1.msra.mxu0 0.0
        %1840 = vmatprep.subr.mxu0 0.0
        %1841 = vmatpush1.msra.mxu0 0.0
        %1842 = vmatprep.mubr.f32.mxu0 0.0
        %1843 = vmatmul.mubr.f32.gmra.mrb[0].mxu0 %v798
        %v1844 = vpop.f32.mrb[0].mxu0
        %v1845 = vadd.f32 0.0, %v1844
        %v1846 = vpop.f32.mrb[0].mxu0
        %1847 = vmatprep.mubr.f32.mxu0 0.0
        %1848 = vmatmul.mubr.f32.gmra.mrb[0].mxu0 %v801
        %v1849 = vpop.f32.mrb[0].mxu0
        %v1850 = vadd.f32 0.0, %v1849
        %v1851 = vpop.f32.mrb[0].mxu0
        %1852 = vdwg.mxu0
        %1853 = vmatprep.subr.mxu0 0.0
        %1854 = vmatpush1.msra.mxu0 %v777
        %1855 = vmatprep.subr.mxu0 0.0
        %1856 = vmatpush1.msra.mxu0 %v782
        %1857 = vmatprep.subr.mxu0 0.0
        %1858 = vmatpush1.msra.mxu0 0.0
        %1859 = vmatprep.subr.mxu0 0.0
        %1860 = vmatpush1.msra.mxu0 0.0
        %1861 = vmatprep.subr.mxu0 0.0
        %1862 = vmatpush1.msra.mxu0 0.0
        %1863 = vmatprep.subr.mxu0 0.0
        %1864 = vmatpush1.msra.mxu0 0.0
        %1865 = vmatprep.subr.mxu0 0.0
        %1866 = vmatpush1.msra.mxu0 0.0
        %1867 = vmatprep.subr.mxu0 0.0
        %1868 = vmatpush1.msra.mxu0 0.0
        %1869 = vmatprep.subr.mxu0 0.0
        %1870 = vmatpush1.msra.mxu0 0.0
        %1871 = vmatprep.subr.mxu0 0.0
        %1872 = vmatpush1.msra.mxu0 0.0
        %1873 = vmatprep.subr.mxu0 0.0
        %1874 = vmatpush1.msra.mxu0 0.0
        %1875 = vmatprep.subr.mxu0 0.0
        %1876 = vmatpush1.msra.mxu0 0.0
        %1877 = vmatprep.subr.mxu0 0.0
        %1878 = vmatpush1.msra.mxu0 0.0
        %1879 = vmatprep.subr.mxu0 0.0
        %1880 = vmatpush1.msra.mxu0 0.0
        %1881 = vmatprep.subr.mxu0 0.0
        %1882 = vmatpush1.msra.mxu0 0.0
        %1883 = vmatprep.subr.mxu0 0.0
        %1884 = vmatpush1.msra.mxu0 0.0
        %1885 = vmatprep.subr.mxu0 0.0
        %1886 = vmatpush1.msra.mxu0 0.0
        %1887 = vmatprep.subr.mxu0 0.0
        %1888 = vmatpush1.msra.mxu0 0.0
        %1889 = vmatprep.subr.mxu0 0.0
        %1890 = vmatpush1.msra.mxu0 0.0
        %1891 = vmatprep.subr.mxu0 0.0
        %1892 = vmatpush1.msra.mxu0 0.0
        %1893 = vmatprep.subr.mxu0 0.0
        %1894 = vmatpush1.msra.mxu0 0.0
        %1895 = vmatprep.subr.mxu0 0.0
        %1896 = vmatpush1.msra.mxu0 0.0
        %1897 = vmatprep.subr.mxu0 0.0
        %1898 = vmatpush1.msra.mxu0 0.0
        %1899 = vmatprep.subr.mxu0 0.0
        %1900 = vmatpush1.msra.mxu0 0.0
        %1901 = vmatprep.subr.mxu0 0.0
        %1902 = vmatpush1.msra.mxu0 0.0
        %1903 = vmatprep.subr.mxu0 0.0
        %1904 = vmatpush1.msra.mxu0 0.0
        %1905 = vmatprep.subr.mxu0 0.0
        %1906 = vmatpush1.msra.mxu0 0.0
        %1907 = vmatprep.subr.mxu0 0.0
        %1908 = vmatpush1.msra.mxu0 0.0
        %1909 = vmatprep.subr.mxu0 0.0
        %1910 = vmatpush1.msra.mxu0 0.0
        %1911 = vmatprep.subr.mxu0 0.0
        %1912 = vmatpush1.msra.mxu0 0.0
        %1913 = vmatprep.subr.mxu0 0.0
        %1914 = vmatpush1.msra.mxu0 0.0
        %1915 = vmatprep.subr.mxu0 0.0
        %1916 = vmatpush1.msra.mxu0 0.0
        %1917 = vmatprep.mubr.f32.mxu0 0.0
        %1918 = vmatmul.mubr.f32.gmra.mrb[0].mxu0 %v798
        %v1919 = vpop.f32.mrb[0].mxu0
        %v1920 = vadd.f32 0.0, %v1919
        %v1921 = vpop.f32.mrb[0].mxu0
        %1922 = vmatprep.mubr.f32.mxu0 0.0
        %1923 = vmatmul.mubr.f32.gmra.mrb[0].mxu0 %v801
        %v1924 = vpop.f32.mrb[0].mxu0
        %v1925 = vadd.f32 0.0, %v1924
        %v1926 = vpop.f32.mrb[0].mxu0
        %1927 = vdwg.mxu0
        %1928 = vmatprep.subr.mxu0 0.0
        %1929 = vmatpush1.msra.mxu0 %v787
        %1930 = vmatprep.subr.mxu0 0.0
        %1931 = vmatpush1.msra.mxu0 %v792
        %1932 = vmatprep.subr.mxu0 0.0
        %1933 = vmatpush1.msra.mxu0 0.0
        %1934 = vmatprep.subr.mxu0 0.0
        %1935 = vmatpush1.msra.mxu0 0.0
        %1936 = vmatprep.subr.mxu0 0.0
        %1937 = vmatpush1.msra.mxu0 0.0
        %1938 = vmatprep.subr.mxu0 0.0
        %1939 = vmatpush1.msra.mxu0 0.0
        %1940 = vmatprep.subr.mxu0 0.0
        %1941 = vmatpush1.msra.mxu0 0.0
        %1942 = vmatprep.subr.mxu0 0.0
        %1943 = vmatpush1.msra.mxu0 0.0
        %1944 = vmatprep.subr.mxu0 0.0
        %1945 = vmatpush1.msra.mxu0 0.0
        %1946 = vmatprep.subr.mxu0 0.0
        %1947 = vmatpush1.msra.mxu0 0.0
        %1948 = vmatprep.subr.mxu0 0.0
        %1949 = vmatpush1.msra.mxu0 0.0
        %1950 = vmatprep.subr.mxu0 0.0
        %1951 = vmatpush1.msra.mxu0 0.0
        %1952 = vmatprep.subr.mxu0 0.0
        %1953 = vmatpush1.msra.mxu0 0.0
        %1954 = vmatprep.subr.mxu0 0.0
        %1955 = vmatpush1.msra.mxu0 0.0
        %1956 = vmatprep.subr.mxu0 0.0
        %1957 = vmatpush1.msra.mxu0 0.0
        %1958 = vmatprep.subr.mxu0 0.0
        %1959 = vmatpush1.msra.mxu0 0.0
        %1960 = vmatprep.subr.mxu0 0.0
        %1961 = vmatpush1.msra.mxu0 0.0
        %1962 = vmatprep.subr.mxu0 0.0
        %1963 = vmatpush1.msra.mxu0 0.0
        %1964 = vmatprep.subr.mxu0 0.0
        %1965 = vmatpush1.msra.mxu0 0.0
        %1966 = vmatprep.subr.mxu0 0.0
        %1967 = vmatpush1.msra.mxu0 0.0
        %1968 = vmatprep.subr.mxu0 0.0
        %1969 = vmatpush1.msra.mxu0 0.0
        %1970 = vmatprep.subr.mxu0 0.0
        %1971 = vmatpush1.msra.mxu0 0.0
        %1972 = vmatprep.subr.mxu0 0.0
        %1973 = vmatpush1.msra.mxu0 0.0
        %1974 = vmatprep.subr.mxu0 0.0
        %1975 = vmatpush1.msra.mxu0 0.0
        %1976 = vmatprep.subr.mxu0 0.0
        %1977 = vmatpush1.msra.mxu0 0.0
        %1978 = vmatprep.subr.mxu0 0.0
        %1979 = vmatpush1.msra.mxu0 0.0
        %1980 = vmatprep.subr.mxu0 0.0
        %1981 = vmatpush1.msra.mxu0 0.0
        %1982 = vmatprep.subr.mxu0 0.0
        %1983 = vmatpush1.msra.mxu0 0.0
        %1984 = vmatprep.subr.mxu0 0.0
        %1985 = vmatpush1.msra.mxu0 0.0
        %1986 = vmatprep.subr.mxu0 0.0
        %1987 = vmatpush1.msra.mxu0 0.0
        %1988 = vmatprep.subr.mxu0 0.0
        %1989 = vmatpush1.msra.mxu0 0.0
        %1990 = vmatprep.subr.mxu0 0.0
        %1991 = vmatpush1.msra.mxu0 0.0
        %1992 = vmatprep.mubr.f32.mxu0 0.0
        %1993 = vmatmul.mubr.f32.gmra.mrb[0].mxu0 %v798
        %v1994 = vpop.f32.mrb[0].mxu0
        %v1995 = vadd.f32 0.0, %v1994
        %v1996 = vpop.f32.mrb[0].mxu0
        %1997 = vmatprep.mubr.f32.mxu0 0.0
        %1998 = vmatmul.mubr.f32.gmra.mrb[0].mxu0 %v801
        %v1999 = vpop.f32.mrb[0].mxu0
        %v2000 = vadd.f32 0.0, %v1999
        %v2001 = vpop.f32.mrb[0].mxu0
        %2002 = vdwg.mxu0
        %v2003 = vcombine.low %v870, %v1020
        %v2004 = vcombine.high %v870, %v1020
        %v2006 = vunpack.c.l.s4 1983009808
        %v2007 = vunpack.c.0.s8 %v2006
        %v2008 = vlaneseq
        %v2009 = vshrl.u32 %v2008, 7
        %v2010 = vsub.s32 %v2007, %v2009
        %v2011 = vrot.slane %v2003, %v2010
        %v2013 = vunpack.c.l.s4 1983009808
        %v2014 = vunpack.c.0.s8 %v2013
        %v2015 = vlaneseq
        %v2016 = vshrl.u32 %v2015, 7
        %v2017 = vsub.s32 %v2014, %v2016
        %v2018 = vrot.slane %v2004, %v2017
        %v2019 = vcombine.low %v945, %v1095
        %v2020 = vcombine.high %v945, %v1095
        %v2022 = vunpack.c.l.s4 1983009808
        %v2023 = vunpack.c.0.s8 %v2022
        %v2024 = vlaneseq
        %v2025 = vshrl.u32 %v2024, 7
        %v2026 = vsub.s32 %v2023, %v2025
        %v2027 = vrot.slane %v2019, %v2026
        %v2029 = vunpack.c.l.s4 1983009808
        %v2030 = vunpack.c.0.s8 %v2029
        %v2031 = vlaneseq
        %v2032 = vshrl.u32 %v2031, 7
        %v2033 = vsub.s32 %v2030, %v2032
        %v2034 = vrot.slane %v2020, %v2033
        %v2035 = vcombine.low %v1170, %v1320
        %v2036 = vcombine.high %v1170, %v1320
        %v2038 = vunpack.c.l.s4 1983009808
        %v2039 = vunpack.c.0.s8 %v2038
        %v2040 = vlaneseq
        %v2041 = vshrl.u32 %v2040, 7
        %v2042 = vsub.s32 %v2039, %v2041
        %v2043 = vrot.slane %v2035, %v2042
        %v2045 = vunpack.c.l.s4 1983009808
        %v2046 = vunpack.c.0.s8 %v2045
        %v2047 = vlaneseq
        %v2048 = vshrl.u32 %v2047, 7
        %v2049 = vsub.s32 %v2046, %v2048
        %v2050 = vrot.slane %v2036, %v2049
        %v2051 = vcombine.low %v1245, %v1395
        %v2052 = vcombine.high %v1245, %v1395
        %v2054 = vunpack.c.l.s4 1983009808
        %v2055 = vunpack.c.0.s8 %v2054
        %v2056 = vlaneseq
        %v2057 = vshrl.u32 %v2056, 7
        %v2058 = vsub.s32 %v2055, %v2057
        %v2059 = vrot.slane %v2051, %v2058
        %v2061 = vunpack.c.l.s4 1983009808
        %v2062 = vunpack.c.0.s8 %v2061
        %v2063 = vlaneseq
        %v2064 = vshrl.u32 %v2063, 7
        %v2065 = vsub.s32 %v2062, %v2064
        %v2066 = vrot.slane %v2052, %v2065
        %v2067 = vcombine.low %v2011, %v2027
        %v2068 = vcombine.high %v2011, %v2027
        %v2070 = vunpack.c.l.s4 1934713408
        %v2071 = vunpack.c.0.s8 %v2070
        %v2072 = vlaneseq
        %v2073 = vshrl.u32 %v2072, 7
        %v2074 = vsub.s32 %v2071, %v2073
        %v2075 = vrot.slane %v2067, %v2074
        %v2077 = vunpack.c.l.s4 1934713408
        %v2078 = vunpack.c.0.s8 %v2077
        %v2079 = vlaneseq
        %v2080 = vshrl.u32 %v2079, 7
        %v2081 = vsub.s32 %v2078, %v2080
        %v2082 = vrot.slane %v2068, %v2081
        %v2083 = vcombine.low %v2018, %v2034
        %v2084 = vcombine.high %v2018, %v2034
        %v2086 = vunpack.c.l.s4 1934713408
        %v2087 = vunpack.c.0.s8 %v2086
        %v2088 = vlaneseq
        %v2089 = vshrl.u32 %v2088, 7
        %v2090 = vsub.s32 %v2087, %v2089
        %v2091 = vrot.slane %v2083, %v2090
        %v2093 = vunpack.c.l.s4 1934713408
        %v2094 = vunpack.c.0.s8 %v2093
        %v2095 = vlaneseq
        %v2096 = vshrl.u32 %v2095, 7
        %v2097 = vsub.s32 %v2094, %v2096
        %v2098 = vrot.slane %v2084, %v2097
        %v2099 = vcombine.low %v2043, %v2059
        %v2100 = vcombine.high %v2043, %v2059
        %v2102 = vunpack.c.l.s4 1934713408
        %v2103 = vunpack.c.0.s8 %v2102
        %v2104 = vlaneseq
        %v2105 = vshrl.u32 %v2104, 7
        %v2106 = vsub.s32 %v2103, %v2105
        %v2107 = vrot.slane %v2099, %v2106
        %v2109 = vunpack.c.l.s4 1934713408
        %v2110 = vunpack.c.0.s8 %v2109
        %v2111 = vlaneseq
        %v2112 = vshrl.u32 %v2111, 7
        %v2113 = vsub.s32 %v2110, %v2112
        %v2114 = vrot.slane %v2100, %v2113
        %v2115 = vcombine.low %v2050, %v2066
        %v2116 = vcombine.high %v2050, %v2066
        %v2118 = vunpack.c.l.s4 1934713408
        %v2119 = vunpack.c.0.s8 %v2118
        %v2120 = vlaneseq
        %v2121 = vshrl.u32 %v2120, 7
        %v2122 = vsub.s32 %v2119, %v2121
        %v2123 = vrot.slane %v2115, %v2122
        %v2125 = vunpack.c.l.s4 1934713408
        %v2126 = vunpack.c.0.s8 %v2125
        %v2127 = vlaneseq
        %v2128 = vshrl.u32 %v2127, 7
        %v2129 = vsub.s32 %v2126, %v2128
        %v2130 = vrot.slane %v2116, %v2129
        %v2131 = vcombine.low %v2075, %v2107
        %v2132 = vcombine.high %v2075, %v2107
        %v2133 = vcombine.low %v2082, %v2114
        %v2134 = vcombine.high %v2082, %v2114
        %v2135 = vcombine.low %v2091, %v2123
        %v2136 = vcombine.high %v2091, %v2123
        %v2137 = vcombine.low %v2098, %v2130
        %v2138 = vcombine.high %v2098, %v2130
        %v2139 = vcombine.low %v1470, %v1620
        %v2140 = vcombine.high %v1470, %v1620
        %v2142 = vunpack.c.l.s4 1983009808
        %v2143 = vunpack.c.0.s8 %v2142
        %v2144 = vlaneseq
        %v2145 = vshrl.u32 %v2144, 7
        %v2146 = vsub.s32 %v2143, %v2145
        %v2147 = vrot.slane %v2139, %v2146
        %v2149 = vunpack.c.l.s4 1983009808
        %v2150 = vunpack.c.0.s8 %v2149
        %v2151 = vlaneseq
        %v2152 = vshrl.u32 %v2151, 7
        %v2153 = vsub.s32 %v2150, %v2152
        %v2154 = vrot.slane %v2140, %v2153
        %v2155 = vcombine.low %v1545, %v1695
        %v2156 = vcombine.high %v1545, %v1695
        %v2158 = vunpack.c.l.s4 1983009808
        %v2159 = vunpack.c.0.s8 %v2158
        %v2160 = vlaneseq
        %v2161 = vshrl.u32 %v2160, 7
        %v2162 = vsub.s32 %v2159, %v2161
        %v2163 = vrot.slane %v2155, %v2162
        %v2165 = vunpack.c.l.s4 1983009808
        %v2166 = vunpack.c.0.s8 %v2165
        %v2167 = vlaneseq
        %v2168 = vshrl.u32 %v2167, 7
        %v2169 = vsub.s32 %v2166, %v2168
        %v2170 = vrot.slane %v2156, %v2169
        %v2171 = vcombine.low %v1770, %v1920
        %v2172 = vcombine.high %v1770, %v1920
        %v2174 = vunpack.c.l.s4 1983009808
        %v2175 = vunpack.c.0.s8 %v2174
        %v2176 = vlaneseq
        %v2177 = vshrl.u32 %v2176, 7
        %v2178 = vsub.s32 %v2175, %v2177
        %v2179 = vrot.slane %v2171, %v2178
        %v2181 = vunpack.c.l.s4 1983009808
        %v2182 = vunpack.c.0.s8 %v2181
        %v2183 = vlaneseq
        %v2184 = vshrl.u32 %v2183, 7
        %v2185 = vsub.s32 %v2182, %v2184
        %v2186 = vrot.slane %v2172, %v2185
        %v2187 = vcombine.low %v1845, %v1995
        %v2188 = vcombine.high %v1845, %v1995
        %v2190 = vunpack.c.l.s4 1983009808
        %v2191 = vunpack.c.0.s8 %v2190
        %v2192 = vlaneseq
        %v2193 = vshrl.u32 %v2192, 7
        %v2194 = vsub.s32 %v2191, %v2193
        %v2195 = vrot.slane %v2187, %v2194
        %v2197 = vunpack.c.l.s4 1983009808
        %v2198 = vunpack.c.0.s8 %v2197
        %v2199 = vlaneseq
        %v2200 = vshrl.u32 %v2199, 7
        %v2201 = vsub.s32 %v2198, %v2200
        %v2202 = vrot.slane %v2188, %v2201
        %v2203 = vcombine.low %v2147, %v2163
        %v2204 = vcombine.high %v2147, %v2163
        %v2206 = vunpack.c.l.s4 1934713408
        %v2207 = vunpack.c.0.s8 %v2206
        %v2208 = vlaneseq
        %v2209 = vshrl.u32 %v2208, 7
        %v2210 = vsub.s32 %v2207, %v2209
        %v2211 = vrot.slane %v2203, %v2210
        %v2213 = vunpack.c.l.s4 1934713408
        %v2214 = vunpack.c.0.s8 %v2213
        %v2215 = vlaneseq
        %v2216 = vshrl.u32 %v2215, 7
        %v2217 = vsub.s32 %v2214, %v2216
        %v2218 = vrot.slane %v2204, %v2217
        %v2219 = vcombine.low %v2154, %v2170
        %v2220 = vcombine.high %v2154, %v2170
        %v2222 = vunpack.c.l.s4 1934713408
        %v2223 = vunpack.c.0.s8 %v2222
        %v2224 = vlaneseq
        %v2225 = vshrl.u32 %v2224, 7
        %v2226 = vsub.s32 %v2223, %v2225
        %v2227 = vrot.slane %v2219, %v2226
        %v2229 = vunpack.c.l.s4 1934713408
        %v2230 = vunpack.c.0.s8 %v2229
        %v2231 = vlaneseq
        %v2232 = vshrl.u32 %v2231, 7
        %v2233 = vsub.s32 %v2230, %v2232
        %v2234 = vrot.slane %v2220, %v2233
        %v2235 = vcombine.low %v2179, %v2195
        %v2236 = vcombine.high %v2179, %v2195
        %v2238 = vunpack.c.l.s4 1934713408
        %v2239 = vunpack.c.0.s8 %v2238
        %v2240 = vlaneseq
        %v2241 = vshrl.u32 %v2240, 7
        %v2242 = vsub.s32 %v2239, %v2241
        %v2243 = vrot.slane %v2235, %v2242
        %v2245 = vunpack.c.l.s4 1934713408
        %v2246 = vunpack.c.0.s8 %v2245
        %v2247 = vlaneseq
        %v2248 = vshrl.u32 %v2247, 7
        %v2249 = vsub.s32 %v2246, %v2248
        %v2250 = vrot.slane %v2236, %v2249
        %v2251 = vcombine.low %v2186, %v2202
        %v2252 = vcombine.high %v2186, %v2202
        %v2254 = vunpack.c.l.s4 1934713408
        %v2255 = vunpack.c.0.s8 %v2254
        %v2256 = vlaneseq
        %v2257 = vshrl.u32 %v2256, 7
        %v2258 = vsub.s32 %v2255, %v2257
        %v2259 = vrot.slane %v2251, %v2258
        %v2261 = vunpack.c.l.s4 1934713408
        %v2262 = vunpack.c.0.s8 %v2261
        %v2263 = vlaneseq
        %v2264 = vshrl.u32 %v2263, 7
        %v2265 = vsub.s32 %v2262, %v2264
        %v2266 = vrot.slane %v2252, %v2265
        %v2267 = vcombine.low %v2211, %v2243
        %v2268 = vcombine.high %v2211, %v2243
        %v2269 = vcombine.low %v2218, %v2250
        %v2270 = vcombine.high %v2218, %v2250
        %v2271 = vcombine.low %v2227, %v2259
        %v2272 = vcombine.high %v2227, %v2259
        %v2273 = vcombine.low %v2234, %v2266
        %v2274 = vcombine.high %v2234, %v2266
        %v2275 = vcombine.low %v875, %v1025
        %v2276 = vcombine.high %v875, %v1025
        %v2278 = vunpack.c.l.s4 1983009808
        %v2279 = vunpack.c.0.s8 %v2278
        %v2280 = vlaneseq
        %v2281 = vshrl.u32 %v2280, 7
        %v2282 = vsub.s32 %v2279, %v2281
        %v2283 = vrot.slane %v2275, %v2282
        %v2285 = vunpack.c.l.s4 1983009808
        %v2286 = vunpack.c.0.s8 %v2285
        %v2287 = vlaneseq
        %v2288 = vshrl.u32 %v2287, 7
        %v2289 = vsub.s32 %v2286, %v2288
        %v2290 = vrot.slane %v2276, %v2289
        %v2291 = vcombine.low %v950, %v1100
        %v2292 = vcombine.high %v950, %v1100
        %v2294 = vunpack.c.l.s4 1983009808
        %v2295 = vunpack.c.0.s8 %v2294
        %v2296 = vlaneseq
        %v2297 = vshrl.u32 %v2296, 7
        %v2298 = vsub.s32 %v2295, %v2297
        %v2299 = vrot.slane %v2291, %v2298
        %v2301 = vunpack.c.l.s4 1983009808
        %v2302 = vunpack.c.0.s8 %v2301
        %v2303 = vlaneseq
        %v2304 = vshrl.u32 %v2303, 7
        %v2305 = vsub.s32 %v2302, %v2304
        %v2306 = vrot.slane %v2292, %v2305
        %v2307 = vcombine.low %v1175, %v1325
        %v2308 = vcombine.high %v1175, %v1325
        %v2310 = vunpack.c.l.s4 1983009808
        %v2311 = vunpack.c.0.s8 %v2310
        %v2312 = vlaneseq
        %v2313 = vshrl.u32 %v2312, 7
        %v2314 = vsub.s32 %v2311, %v2313
        %v2315 = vrot.slane %v2307, %v2314
        %v2317 = vunpack.c.l.s4 1983009808
        %v2318 = vunpack.c.0.s8 %v2317
        %v2319 = vlaneseq
        %v2320 = vshrl.u32 %v2319, 7
        %v2321 = vsub.s32 %v2318, %v2320
        %v2322 = vrot.slane %v2308, %v2321
        %v2323 = vcombine.low %v1250, %v1400
        %v2324 = vcombine.high %v1250, %v1400
        %v2326 = vunpack.c.l.s4 1983009808
        %v2327 = vunpack.c.0.s8 %v2326
        %v2328 = vlaneseq
        %v2329 = vshrl.u32 %v2328, 7
        %v2330 = vsub.s32 %v2327, %v2329
        %v2331 = vrot.slane %v2323, %v2330
        %v2333 = vunpack.c.l.s4 1983009808
        %v2334 = vunpack.c.0.s8 %v2333
        %v2335 = vlaneseq
        %v2336 = vshrl.u32 %v2335, 7
        %v2337 = vsub.s32 %v2334, %v2336
        %v2338 = vrot.slane %v2324, %v2337
        %v2339 = vcombine.low %v2283, %v2299
        %v2340 = vcombine.high %v2283, %v2299
        %v2342 = vunpack.c.l.s4 1934713408
        %v2343 = vunpack.c.0.s8 %v2342
        %v2344 = vlaneseq
        %v2345 = vshrl.u32 %v2344, 7
        %v2346 = vsub.s32 %v2343, %v2345
        %v2347 = vrot.slane %v2339, %v2346
        %v2349 = vunpack.c.l.s4 1934713408
        %v2350 = vunpack.c.0.s8 %v2349
        %v2351 = vlaneseq
        %v2352 = vshrl.u32 %v2351, 7
        %v2353 = vsub.s32 %v2350, %v2352
        %v2354 = vrot.slane %v2340, %v2353
        %v2355 = vcombine.low %v2290, %v2306
        %v2356 = vcombine.high %v2290, %v2306
        %v2358 = vunpack.c.l.s4 1934713408
        %v2359 = vunpack.c.0.s8 %v2358
        %v2360 = vlaneseq
        %v2361 = vshrl.u32 %v2360, 7
        %v2362 = vsub.s32 %v2359, %v2361
        %v2363 = vrot.slane %v2355, %v2362
        %v2365 = vunpack.c.l.s4 1934713408
        %v2366 = vunpack.c.0.s8 %v2365
        %v2367 = vlaneseq
        %v2368 = vshrl.u32 %v2367, 7
        %v2369 = vsub.s32 %v2366, %v2368
        %v2370 = vrot.slane %v2356, %v2369
        %v2371 = vcombine.low %v2315, %v2331
        %v2372 = vcombine.high %v2315, %v2331
        %v2374 = vunpack.c.l.s4 1934713408
        %v2375 = vunpack.c.0.s8 %v2374
        %v2376 = vlaneseq
        %v2377 = vshrl.u32 %v2376, 7
        %v2378 = vsub.s32 %v2375, %v2377
        %v2379 = vrot.slane %v2371, %v2378
        %v2381 = vunpack.c.l.s4 1934713408
        %v2382 = vunpack.c.0.s8 %v2381
        %v2383 = vlaneseq
        %v2384 = vshrl.u32 %v2383, 7
        %v2385 = vsub.s32 %v2382, %v2384
        %v2386 = vrot.slane %v2372, %v2385
        %v2387 = vcombine.low %v2322, %v2338
        %v2388 = vcombine.high %v2322, %v2338
        %v2390 = vunpack.c.l.s4 1934713408
        %v2391 = vunpack.c.0.s8 %v2390
        %v2392 = vlaneseq
        %v2393 = vshrl.u32 %v2392, 7
        %v2394 = vsub.s32 %v2391, %v2393
        %v2395 = vrot.slane %v2387, %v2394
        %v2397 = vunpack.c.l.s4 1934713408
        %v2398 = vunpack.c.0.s8 %v2397
        %v2399 = vlaneseq
        %v2400 = vshrl.u32 %v2399, 7
        %v2401 = vsub.s32 %v2398, %v2400
        %v2402 = vrot.slane %v2388, %v2401
        %v2403 = vcombine.low %v2347, %v2379
        %v2404 = vcombine.high %v2347, %v2379
        %v2405 = vcombine.low %v2354, %v2386
        %v2406 = vcombine.high %v2354, %v2386
        %v2407 = vcombine.low %v2363, %v2395
        %v2408 = vcombine.high %v2363, %v2395
        %v2409 = vcombine.low %v2370, %v2402
        %v2410 = vcombine.high %v2370, %v2402
        %v2411 = vcombine.low %v1475, %v1625
        %v2412 = vcombine.high %v1475, %v1625
        %v2414 = vunpack.c.l.s4 1983009808
        %v2415 = vunpack.c.0.s8 %v2414
        %v2416 = vlaneseq
        %v2417 = vshrl.u32 %v2416, 7
        %v2418 = vsub.s32 %v2415, %v2417
        %v2419 = vrot.slane %v2411, %v2418
        %v2421 = vunpack.c.l.s4 1983009808
        %v2422 = vunpack.c.0.s8 %v2421
        %v2423 = vlaneseq
        %v2424 = vshrl.u32 %v2423, 7
        %v2425 = vsub.s32 %v2422, %v2424
        %v2426 = vrot.slane %v2412, %v2425
        %v2427 = vcombine.low %v1550, %v1700
        %v2428 = vcombine.high %v1550, %v1700
        %v2430 = vunpack.c.l.s4 1983009808
        %v2431 = vunpack.c.0.s8 %v2430
        %v2432 = vlaneseq
        %v2433 = vshrl.u32 %v2432, 7
        %v2434 = vsub.s32 %v2431, %v2433
        %v2435 = vrot.slane %v2427, %v2434
        %v2437 = vunpack.c.l.s4 1983009808
        %v2438 = vunpack.c.0.s8 %v2437
        %v2439 = vlaneseq
        %v2440 = vshrl.u32 %v2439, 7
        %v2441 = vsub.s32 %v2438, %v2440
        %v2442 = vrot.slane %v2428, %v2441
        %v2443 = vcombine.low %v1775, %v1925
        %v2444 = vcombine.high %v1775, %v1925
        %v2446 = vunpack.c.l.s4 1983009808
        %v2447 = vunpack.c.0.s8 %v2446
        %v2448 = vlaneseq
        %v2449 = vshrl.u32 %v2448, 7
        %v2450 = vsub.s32 %v2447, %v2449
        %v2451 = vrot.slane %v2443, %v2450
        %v2453 = vunpack.c.l.s4 1983009808
        %v2454 = vunpack.c.0.s8 %v2453
        %v2455 = vlaneseq
        %v2456 = vshrl.u32 %v2455, 7
        %v2457 = vsub.s32 %v2454, %v2456
        %v2458 = vrot.slane %v2444, %v2457
        %v2459 = vcombine.low %v1850, %v2000
        %v2460 = vcombine.high %v1850, %v2000
        %v2462 = vunpack.c.l.s4 1983009808
        %v2463 = vunpack.c.0.s8 %v2462
        %v2464 = vlaneseq
        %v2465 = vshrl.u32 %v2464, 7
        %v2466 = vsub.s32 %v2463, %v2465
        %v2467 = vrot.slane %v2459, %v2466
        %v2469 = vunpack.c.l.s4 1983009808
        %v2470 = vunpack.c.0.s8 %v2469
        %v2471 = vlaneseq
        %v2472 = vshrl.u32 %v2471, 7
        %v2473 = vsub.s32 %v2470, %v2472
        %v2474 = vrot.slane %v2460, %v2473
        %v2475 = vcombine.low %v2419, %v2435
        %v2476 = vcombine.high %v2419, %v2435
        %v2478 = vunpack.c.l.s4 1934713408
        %v2479 = vunpack.c.0.s8 %v2478
        %v2480 = vlaneseq
        %v2481 = vshrl.u32 %v2480, 7
        %v2482 = vsub.s32 %v2479, %v2481
        %v2483 = vrot.slane %v2475, %v2482
        %v2485 = vunpack.c.l.s4 1934713408
        %v2486 = vunpack.c.0.s8 %v2485
        %v2487 = vlaneseq
        %v2488 = vshrl.u32 %v2487, 7
        %v2489 = vsub.s32 %v2486, %v2488
        %v2490 = vrot.slane %v2476, %v2489
        %v2491 = vcombine.low %v2426, %v2442
        %v2492 = vcombine.high %v2426, %v2442
        %v2494 = vunpack.c.l.s4 1934713408
        %v2495 = vunpack.c.0.s8 %v2494
        %v2496 = vlaneseq
        %v2497 = vshrl.u32 %v2496, 7
        %v2498 = vsub.s32 %v2495, %v2497
        %v2499 = vrot.slane %v2491, %v2498
        %v2501 = vunpack.c.l.s4 1934713408
        %v2502 = vunpack.c.0.s8 %v2501
        %v2503 = vlaneseq
        %v2504 = vshrl.u32 %v2503, 7
        %v2505 = vsub.s32 %v2502, %v2504
        %v2506 = vrot.slane %v2492, %v2505
        %v2507 = vcombine.low %v2451, %v2467
        %v2508 = vcombine.high %v2451, %v2467
        %v2510 = vunpack.c.l.s4 1934713408
        %v2511 = vunpack.c.0.s8 %v2510
        %v2512 = vlaneseq
        %v2513 = vshrl.u32 %v2512, 7
        %v2514 = vsub.s32 %v2511, %v2513
        %v2515 = vrot.slane %v2507, %v2514
        %v2517 = vunpack.c.l.s4 1934713408
        %v2518 = vunpack.c.0.s8 %v2517
        %v2519 = vlaneseq
        %v2520 = vshrl.u32 %v2519, 7
        %v2521 = vsub.s32 %v2518, %v2520
        %v2522 = vrot.slane %v2508, %v2521
        %v2523 = vcombine.low %v2458, %v2474
        %v2524 = vcombine.high %v2458, %v2474
        %v2526 = vunpack.c.l.s4 1934713408
        %v2527 = vunpack.c.0.s8 %v2526
        %v2528 = vlaneseq
        %v2529 = vshrl.u32 %v2528, 7
        %v2530 = vsub.s32 %v2527, %v2529
        %v2531 = vrot.slane %v2523, %v2530
        %v2533 = vunpack.c.l.s4 1934713408
        %v2534 = vunpack.c.0.s8 %v2533
        %v2535 = vlaneseq
        %v2536 = vshrl.u32 %v2535, 7
        %v2537 = vsub.s32 %v2534, %v2536
        %v2538 = vrot.slane %v2524, %v2537
        %v2539 = vcombine.low %v2483, %v2515
        %v2540 = vcombine.high %v2483, %v2515
        %v2541 = vcombine.low %v2490, %v2522
        %v2542 = vcombine.high %v2490, %v2522
        %v2543 = vcombine.low %v2499, %v2531
        %v2544 = vcombine.high %v2499, %v2531
        %v2545 = vcombine.low %v2506, %v2538
        %v2546 = vcombine.high %v2506, %v2538
        %v2547 = vld [vmem:[#allocation2] sm:$0xff]
        %v2548 = vld [vmem:[#allocation2 + $0x8] sm:$0xff]
        %v2549 = vld [vmem:[#allocation2 + $0x10] sm:$0xff]
        %v2550 = vld [vmem:[#allocation2 + $0x18] sm:$0xff]
        %v2551 = vld [vmem:[#allocation2 + $0x20] sm:$0xff]
        %v2552 = vld [vmem:[#allocation2 + $0x28] sm:$0xff]
        %v2553 = vld [vmem:[#allocation2 + $0x30] sm:$0xff]
        %v2554 = vld [vmem:[#allocation2 + $0x38] sm:$0xff]
        %v2555 = vld [vmem:[#allocation2 + $0x40] sm:$0xff]
        %v2556 = vld [vmem:[#allocation2 + $0x48] sm:$0xff]
        %v2557 = vld [vmem:[#allocation2 + $0x50] sm:$0xff]
        %v2558 = vld [vmem:[#allocation2 + $0x58] sm:$0xff]
        %v2559 = vld [vmem:[#allocation2 + $0x60] sm:$0xff]
        %v2560 = vld [vmem:[#allocation2 + $0x68] sm:$0xff]
        %v2561 = vld [vmem:[#allocation2 + $0x70] sm:$0xff]
        %v2562 = vld [vmem:[#allocation2 + $0x78] sm:$0xff]
        %v2563 = vld [vmem:[#allocation2 + $0x80] sm:$0xff]
        %v2564 = vld [vmem:[#allocation2 + $0x88] sm:$0xff]
        %v2565 = vld [vmem:[#allocation2 + $0x90] sm:$0xff]
        %v2566 = vld [vmem:[#allocation2 + $0x98] sm:$0xff]
        %v2567 = vld [vmem:[#allocation2 + $0xa0] sm:$0xff]
        %v2568 = vld [vmem:[#allocation2 + $0xa8] sm:$0xff]
        %v2569 = vld [vmem:[#allocation2 + $0xb0] sm:$0xff]
        %v2570 = vld [vmem:[#allocation2 + $0xb8] sm:$0xff]
        %v2571 = vld [vmem:[#allocation2 + $0xc0] sm:$0xff]
        %v2572 = vld [vmem:[#allocation2 + $0xc8] sm:$0xff]
        %v2573 = vld [vmem:[#allocation2 + $0xd0] sm:$0xff]
        %v2574 = vld [vmem:[#allocation2 + $0xd8] sm:$0xff]
        %v2575 = vld [vmem:[#allocation2 + $0xe0] sm:$0xff]
        %v2576 = vld [vmem:[#allocation2 + $0xe8] sm:$0xff]
        %v2577 = vld [vmem:[#allocation2 + $0xf0] sm:$0xff]
        %v2578 = vld [vmem:[#allocation2 + $0xf8] sm:$0xff]
        %v2579 = vld [vmem:[%s346] sm:$0xff]
        %v2580 = vld [vmem:[%s346 + $0x8] sm:$0xff]
        %v2582 = vsel %vm473, %v2579, 0
        %v2585 = vsel %vm473, %v2580, 0
        %2587 = vmatprep.subr.mxu0 %v2132
        %2588 = vmatpush1.msra.mxu0 %v2131
        %2589 = vmatprep.subr.mxu0 %v2268
        %2590 = vmatpush1.msra.mxu0 %v2267
        %2591 = vmatprep.subr.mxu0 0.0
        %2592 = vmatpush1.msra.mxu0 0.0
        %2593 = vmatprep.subr.mxu0 0.0
        %2594 = vmatpush1.msra.mxu0 0.0
        %2595 = vmatprep.subr.mxu0 0.0
        %2596 = vmatpush1.msra.mxu0 0.0
        %2597 = vmatprep.subr.mxu0 0.0
        %2598 = vmatpush1.msra.mxu0 0.0
        %2599 = vmatprep.subr.mxu0 0.0
        %2600 = vmatpush1.msra.mxu0 0.0
        %2601 = vmatprep.subr.mxu0 0.0
        %2602 = vmatpush1.msra.mxu0 0.0
        %2603 = vmatprep.subr.mxu0 0.0
        %2604 = vmatpush1.msra.mxu0 0.0
        %2605 = vmatprep.subr.mxu0 0.0
        %2606 = vmatpush1.msra.mxu0 0.0
        %2607 = vmatprep.subr.mxu0 0.0
        %2608 = vmatpush1.msra.mxu0 0.0
        %2609 = vmatprep.subr.mxu0 0.0
        %2610 = vmatpush1.msra.mxu0 0.0
        %2611 = vmatprep.subr.mxu0 0.0
        %2612 = vmatpush1.msra.mxu0 0.0
        %2613 = vmatprep.subr.mxu0 0.0
        %2614 = vmatpush1.msra.mxu0 0.0
        %2615 = vmatprep.subr.mxu0 0.0
        %2616 = vmatpush1.msra.mxu0 0.0
        %2617 = vmatprep.subr.mxu0 0.0
        %2618 = vmatpush1.msra.mxu0 0.0
        %2619 = vmatprep.subr.mxu0 0.0
        %2620 = vmatpush1.msra.mxu0 0.0
        %2621 = vmatprep.subr.mxu0 0.0
        %2622 = vmatpush1.msra.mxu0 0.0
        %2623 = vmatprep.subr.mxu0 0.0
        %2624 = vmatpush1.msra.mxu0 0.0
        %2625 = vmatprep.subr.mxu0 0.0
        %2626 = vmatpush1.msra.mxu0 0.0
        %2627 = vmatprep.subr.mxu0 0.0
        %2628 = vmatpush1.msra.mxu0 0.0
        %2629 = vmatprep.subr.mxu0 0.0
        %2630 = vmatpush1.msra.mxu0 0.0
        %2631 = vmatprep.subr.mxu0 0.0
        %2632 = vmatpush1.msra.mxu0 0.0
        %2633 = vmatprep.subr.mxu0 0.0
        %2634 = vmatpush1.msra.mxu0 0.0
        %2635 = vmatprep.subr.mxu0 0.0
        %2636 = vmatpush1.msra.mxu0 0.0
        %2637 = vmatprep.subr.mxu0 0.0
        %2638 = vmatpush1.msra.mxu0 0.0
        %2639 = vmatprep.subr.mxu0 0.0
        %2640 = vmatpush1.msra.mxu0 0.0
        %2641 = vmatprep.subr.mxu0 0.0
        %2642 = vmatpush1.msra.mxu0 0.0
        %2643 = vmatprep.subr.mxu0 0.0
        %2644 = vmatpush1.msra.mxu0 0.0
        %2645 = vmatprep.subr.mxu0 0.0
        %2646 = vmatpush1.msra.mxu0 0.0
        %2647 = vmatprep.subr.mxu0 0.0
        %2648 = vmatpush1.msra.mxu0 0.0
        %2649 = vmatprep.subr.mxu0 0.0
        %2650 = vmatpush1.msra.mxu0 0.0
        %2651 = vmatprep.mubr.f32.mxu0 0.0
        %2652 = vmatmul.mubr.f32.gmra.mrb[0].mxu0 %v2582
        %v2653 = vpop.f32.mrb[0].mxu0
        %v2654 = vadd.f32 0.0, %v2653
        %v2655 = vpop.f32.mrb[0].mxu0
        %v2656 = vadd.f32 0.0, %v2655
        %2657 = vmatprep.mubr.f32.mxu0 0.0
        %2658 = vmatmul.mubr.f32.gmra.mrb[0].mxu0 %v2585
        %v2659 = vpop.f32.mrb[0].mxu0
        %v2660 = vadd.f32 0.0, %v2659
        %v2661 = vpop.f32.mrb[0].mxu0
        %v2662 = vadd.f32 0.0, %v2661
        %2663 = vdwg.mxu0
        %2664 = vmatprep.subr.mxu0 %v2134
        %2665 = vmatpush1.msra.mxu0 %v2133
        %2666 = vmatprep.subr.mxu0 %v2270
        %2667 = vmatpush1.msra.mxu0 %v2269
        %2668 = vmatprep.subr.mxu0 0.0
        %2669 = vmatpush1.msra.mxu0 0.0
        %2670 = vmatprep.subr.mxu0 0.0
        %2671 = vmatpush1.msra.mxu0 0.0
        %2672 = vmatprep.subr.mxu0 0.0
        %2673 = vmatpush1.msra.mxu0 0.0
        %2674 = vmatprep.subr.mxu0 0.0
        %2675 = vmatpush1.msra.mxu0 0.0
        %2676 = vmatprep.subr.mxu0 0.0
        %2677 = vmatpush1.msra.mxu0 0.0
        %2678 = vmatprep.subr.mxu0 0.0
        %2679 = vmatpush1.msra.mxu0 0.0
        %2680 = vmatprep.subr.mxu0 0.0
        %2681 = vmatpush1.msra.mxu0 0.0
        %2682 = vmatprep.subr.mxu0 0.0
        %2683 = vmatpush1.msra.mxu0 0.0
        %2684 = vmatprep.subr.mxu0 0.0
        %2685 = vmatpush1.msra.mxu0 0.0
        %2686 = vmatprep.subr.mxu0 0.0
        %2687 = vmatpush1.msra.mxu0 0.0
        %2688 = vmatprep.subr.mxu0 0.0
        %2689 = vmatpush1.msra.mxu0 0.0
        %2690 = vmatprep.subr.mxu0 0.0
        %2691 = vmatpush1.msra.mxu0 0.0
        %2692 = vmatprep.subr.mxu0 0.0
        %2693 = vmatpush1.msra.mxu0 0.0
        %2694 = vmatprep.subr.mxu0 0.0
        %2695 = vmatpush1.msra.mxu0 0.0
        %2696 = vmatprep.subr.mxu0 0.0
        %2697 = vmatpush1.msra.mxu0 0.0
        %2698 = vmatprep.subr.mxu0 0.0
        %2699 = vmatpush1.msra.mxu0 0.0
        %2700 = vmatprep.subr.mxu0 0.0
        %2701 = vmatpush1.msra.mxu0 0.0
        %2702 = vmatprep.subr.mxu0 0.0
        %2703 = vmatpush1.msra.mxu0 0.0
        %2704 = vmatprep.subr.mxu0 0.0
        %2705 = vmatpush1.msra.mxu0 0.0
        %2706 = vmatprep.subr.mxu0 0.0
        %2707 = vmatpush1.msra.mxu0 0.0
        %2708 = vmatprep.subr.mxu0 0.0
        %2709 = vmatpush1.msra.mxu0 0.0
        %2710 = vmatprep.subr.mxu0 0.0
        %2711 = vmatpush1.msra.mxu0 0.0
        %2712 = vmatprep.subr.mxu0 0.0
        %2713 = vmatpush1.msra.mxu0 0.0
        %2714 = vmatprep.subr.mxu0 0.0
        %2715 = vmatpush1.msra.mxu0 0.0
        %2716 = vmatprep.subr.mxu0 0.0
        %2717 = vmatpush1.msra.mxu0 0.0
        %2718 = vmatprep.subr.mxu0 0.0
        %2719 = vmatpush1.msra.mxu0 0.0
        %2720 = vmatprep.subr.mxu0 0.0
        %2721 = vmatpush1.msra.mxu0 0.0
        %2722 = vmatprep.subr.mxu0 0.0
        %2723 = vmatpush1.msra.mxu0 0.0
        %2724 = vmatprep.subr.mxu0 0.0
        %2725 = vmatpush1.msra.mxu0 0.0
        %2726 = vmatprep.subr.mxu0 0.0
        %2727 = vmatpush1.msra.mxu0 0.0
        %2728 = vmatprep.mubr.f32.mxu0 0.0
        %2729 = vmatmul.mubr.f32.gmra.mrb[0].mxu0 %v2582
        %v2730 = vpop.f32.mrb[0].mxu0
        %v2731 = vadd.f32 0.0, %v2730
        %v2732 = vpop.f32.mrb[0].mxu0
        %v2733 = vadd.f32 0.0, %v2732
        %2734 = vmatprep.mubr.f32.mxu0 0.0
        %2735 = vmatmul.mubr.f32.gmra.mrb[0].mxu0 %v2585
        %v2736 = vpop.f32.mrb[0].mxu0
        %v2737 = vadd.f32 0.0, %v2736
        %v2738 = vpop.f32.mrb[0].mxu0
        %v2739 = vadd.f32 0.0, %v2738
        %2740 = vdwg.mxu0
        %2741 = vmatprep.subr.mxu0 %v2136
        %2742 = vmatpush1.msra.mxu0 %v2135
        %2743 = vmatprep.subr.mxu0 %v2272
        %2744 = vmatpush1.msra.mxu0 %v2271
        %2745 = vmatprep.subr.mxu0 0.0
        %2746 = vmatpush1.msra.mxu0 0.0
        %2747 = vmatprep.subr.mxu0 0.0
        %2748 = vmatpush1.msra.mxu0 0.0
        %2749 = vmatprep.subr.mxu0 0.0
        %2750 = vmatpush1.msra.mxu0 0.0
        %2751 = vmatprep.subr.mxu0 0.0
        %2752 = vmatpush1.msra.mxu0 0.0
        %2753 = vmatprep.subr.mxu0 0.0
        %2754 = vmatpush1.msra.mxu0 0.0
        %2755 = vmatprep.subr.mxu0 0.0
        %2756 = vmatpush1.msra.mxu0 0.0
        %2757 = vmatprep.subr.mxu0 0.0
        %2758 = vmatpush1.msra.mxu0 0.0
        %2759 = vmatprep.subr.mxu0 0.0
        %2760 = vmatpush1.msra.mxu0 0.0
        %2761 = vmatprep.subr.mxu0 0.0
        %2762 = vmatpush1.msra.mxu0 0.0
        %2763 = vmatprep.subr.mxu0 0.0
        %2764 = vmatpush1.msra.mxu0 0.0
        %2765 = vmatprep.subr.mxu0 0.0
        %2766 = vmatpush1.msra.mxu0 0.0
        %2767 = vmatprep.subr.mxu0 0.0
        %2768 = vmatpush1.msra.mxu0 0.0
        %2769 = vmatprep.subr.mxu0 0.0
        %2770 = vmatpush1.msra.mxu0 0.0
        %2771 = vmatprep.subr.mxu0 0.0
        %2772 = vmatpush1.msra.mxu0 0.0
        %2773 = vmatprep.subr.mxu0 0.0
        %2774 = vmatpush1.msra.mxu0 0.0
        %2775 = vmatprep.subr.mxu0 0.0
        %2776 = vmatpush1.msra.mxu0 0.0
        %2777 = vmatprep.subr.mxu0 0.0
        %2778 = vmatpush1.msra.mxu0 0.0
        %2779 = vmatprep.subr.mxu0 0.0
        %2780 = vmatpush1.msra.mxu0 0.0
        %2781 = vmatprep.subr.mxu0 0.0
        %2782 = vmatpush1.msra.mxu0 0.0
        %2783 = vmatprep.subr.mxu0 0.0
        %2784 = vmatpush1.msra.mxu0 0.0
        %2785 = vmatprep.subr.mxu0 0.0
        %2786 = vmatpush1.msra.mxu0 0.0
        %2787 = vmatprep.subr.mxu0 0.0
        %2788 = vmatpush1.msra.mxu0 0.0
        %2789 = vmatprep.subr.mxu0 0.0
        %2790 = vmatpush1.msra.mxu0 0.0
        %2791 = vmatprep.subr.mxu0 0.0
        %2792 = vmatpush1.msra.mxu0 0.0
        %2793 = vmatprep.subr.mxu0 0.0
        %2794 = vmatpush1.msra.mxu0 0.0
        %2795 = vmatprep.subr.mxu0 0.0
        %2796 = vmatpush1.msra.mxu0 0.0
        %2797 = vmatprep.subr.mxu0 0.0
        %2798 = vmatpush1.msra.mxu0 0.0
        %2799 = vmatprep.subr.mxu0 0.0
        %2800 = vmatpush1.msra.mxu0 0.0
        %2801 = vmatprep.subr.mxu0 0.0
        %2802 = vmatpush1.msra.mxu0 0.0
        %2803 = vmatprep.subr.mxu0 0.0
        %2804 = vmatpush1.msra.mxu0 0.0
        %2805 = vmatprep.mubr.f32.mxu0 0.0
        %2806 = vmatmul.mubr.f32.gmra.mrb[0].mxu0 %v2582
        %v2807 = vpop.f32.mrb[0].mxu0
        %v2808 = vadd.f32 0.0, %v2807
        %v2809 = vpop.f32.mrb[0].mxu0
        %v2810 = vadd.f32 0.0, %v2809
        %2811 = vmatprep.mubr.f32.mxu0 0.0
        %2812 = vmatmul.mubr.f32.gmra.mrb[0].mxu0 %v2585
        %v2813 = vpop.f32.mrb[0].mxu0
        %v2814 = vadd.f32 0.0, %v2813
        %v2815 = vpop.f32.mrb[0].mxu0
        %v2816 = vadd.f32 0.0, %v2815
        %2817 = vdwg.mxu0
        %2818 = vmatprep.subr.mxu0 %v2138
        %2819 = vmatpush1.msra.mxu0 %v2137
        %2820 = vmatprep.subr.mxu0 %v2274
        %2821 = vmatpush1.msra.mxu0 %v2273
        %2822 = vmatprep.subr.mxu0 0.0
        %2823 = vmatpush1.msra.mxu0 0.0
        %2824 = vmatprep.subr.mxu0 0.0
        %2825 = vmatpush1.msra.mxu0 0.0
        %2826 = vmatprep.subr.mxu0 0.0
        %2827 = vmatpush1.msra.mxu0 0.0
        %2828 = vmatprep.subr.mxu0 0.0
        %2829 = vmatpush1.msra.mxu0 0.0
        %2830 = vmatprep.subr.mxu0 0.0
        %2831 = vmatpush1.msra.mxu0 0.0
        %2832 = vmatprep.subr.mxu0 0.0
        %2833 = vmatpush1.msra.mxu0 0.0
        %2834 = vmatprep.subr.mxu0 0.0
        %2835 = vmatpush1.msra.mxu0 0.0
        %2836 = vmatprep.subr.mxu0 0.0
        %2837 = vmatpush1.msra.mxu0 0.0
        %2838 = vmatprep.subr.mxu0 0.0
        %2839 = vmatpush1.msra.mxu0 0.0
        %2840 = vmatprep.subr.mxu0 0.0
        %2841 = vmatpush1.msra.mxu0 0.0
        %2842 = vmatprep.subr.mxu0 0.0
        %2843 = vmatpush1.msra.mxu0 0.0
        %2844 = vmatprep.subr.mxu0 0.0
        %2845 = vmatpush1.msra.mxu0 0.0
        %2846 = vmatprep.subr.mxu0 0.0
        %2847 = vmatpush1.msra.mxu0 0.0
        %2848 = vmatprep.subr.mxu0 0.0
        %2849 = vmatpush1.msra.mxu0 0.0
        %2850 = vmatprep.subr.mxu0 0.0
        %2851 = vmatpush1.msra.mxu0 0.0
        %2852 = vmatprep.subr.mxu0 0.0
        %2853 = vmatpush1.msra.mxu0 0.0
        %2854 = vmatprep.subr.mxu0 0.0
        %2855 = vmatpush1.msra.mxu0 0.0
        %2856 = vmatprep.subr.mxu0 0.0
        %2857 = vmatpush1.msra.mxu0 0.0
        %2858 = vmatprep.subr.mxu0 0.0
        %2859 = vmatpush1.msra.mxu0 0.0
        %2860 = vmatprep.subr.mxu0 0.0
        %2861 = vmatpush1.msra.mxu0 0.0
        %2862 = vmatprep.subr.mxu0 0.0
        %2863 = vmatpush1.msra.mxu0 0.0
        %2864 = vmatprep.subr.mxu0 0.0
        %2865 = vmatpush1.msra.mxu0 0.0
        %2866 = vmatprep.subr.mxu0 0.0
        %2867 = vmatpush1.msra.mxu0 0.0
        %2868 = vmatprep.subr.mxu0 0.0
        %2869 = vmatpush1.msra.mxu0 0.0
        %2870 = vmatprep.subr.mxu0 0.0
        %2871 = vmatpush1.msra.mxu0 0.0
        %2872 = vmatprep.subr.mxu0 0.0
        %2873 = vmatpush1.msra.mxu0 0.0
        %2874 = vmatprep.subr.mxu0 0.0
        %2875 = vmatpush1.msra.mxu0 0.0
        %2876 = vmatprep.subr.mxu0 0.0
        %2877 = vmatpush1.msra.mxu0 0.0
        %2878 = vmatprep.subr.mxu0 0.0
        %2879 = vmatpush1.msra.mxu0 0.0
        %2880 = vmatprep.subr.mxu0 0.0
        %2881 = vmatpush1.msra.mxu0 0.0
        %2882 = vmatprep.mubr.f32.mxu0 0.0
        %2883 = vmatmul.mubr.f32.gmra.mrb[0].mxu0 %v2582
        %v2884 = vpop.f32.mrb[0].mxu0
        %v2885 = vadd.f32 0.0, %v2884
        %v2886 = vpop.f32.mrb[0].mxu0
        %v2887 = vadd.f32 0.0, %v2886
        %2888 = vmatprep.mubr.f32.mxu0 0.0
        %2889 = vmatmul.mubr.f32.gmra.mrb[0].mxu0 %v2585
        %v2890 = vpop.f32.mrb[0].mxu0
        %v2891 = vadd.f32 0.0, %v2890
        %v2892 = vpop.f32.mrb[0].mxu0
        %v2893 = vadd.f32 0.0, %v2892
        %2894 = vdwg.mxu0
        %2895 = vmatprep.subr.mxu0 %v2404
        %2896 = vmatpush1.msra.mxu0 %v2403
        %2897 = vmatprep.subr.mxu0 %v2540
        %2898 = vmatpush1.msra.mxu0 %v2539
        %2899 = vmatprep.subr.mxu0 0.0
        %2900 = vmatpush1.msra.mxu0 0.0
        %2901 = vmatprep.subr.mxu0 0.0
        %2902 = vmatpush1.msra.mxu0 0.0
        %2903 = vmatprep.subr.mxu0 0.0
        %2904 = vmatpush1.msra.mxu0 0.0
        %2905 = vmatprep.subr.mxu0 0.0
        %2906 = vmatpush1.msra.mxu0 0.0
        %2907 = vmatprep.subr.mxu0 0.0
        %2908 = vmatpush1.msra.mxu0 0.0
        %2909 = vmatprep.subr.mxu0 0.0
        %2910 = vmatpush1.msra.mxu0 0.0
        %2911 = vmatprep.subr.mxu0 0.0
        %2912 = vmatpush1.msra.mxu0 0.0
        %2913 = vmatprep.subr.mxu0 0.0
        %2914 = vmatpush1.msra.mxu0 0.0
        %2915 = vmatprep.subr.mxu0 0.0
        %2916 = vmatpush1.msra.mxu0 0.0
        %2917 = vmatprep.subr.mxu0 0.0
        %2918 = vmatpush1.msra.mxu0 0.0
        %2919 = vmatprep.subr.mxu0 0.0
        %2920 = vmatpush1.msra.mxu0 0.0
        %2921 = vmatprep.subr.mxu0 0.0
        %2922 = vmatpush1.msra.mxu0 0.0
        %2923 = vmatprep.subr.mxu0 0.0
        %2924 = vmatpush1.msra.mxu0 0.0
        %2925 = vmatprep.subr.mxu0 0.0
        %2926 = vmatpush1.msra.mxu0 0.0
        %2927 = vmatprep.subr.mxu0 0.0
        %2928 = vmatpush1.msra.mxu0 0.0
        %2929 = vmatprep.subr.mxu0 0.0
        %2930 = vmatpush1.msra.mxu0 0.0
        %2931 = vmatprep.subr.mxu0 0.0
        %2932 = vmatpush1.msra.mxu0 0.0
        %2933 = vmatprep.subr.mxu0 0.0
        %2934 = vmatpush1.msra.mxu0 0.0
        %2935 = vmatprep.subr.mxu0 0.0
        %2936 = vmatpush1.msra.mxu0 0.0
        %2937 = vmatprep.subr.mxu0 0.0
        %2938 = vmatpush1.msra.mxu0 0.0
        %2939 = vmatprep.subr.mxu0 0.0
        %2940 = vmatpush1.msra.mxu0 0.0
        %2941 = vmatprep.subr.mxu0 0.0
        %2942 = vmatpush1.msra.mxu0 0.0
        %2943 = vmatprep.subr.mxu0 0.0
        %2944 = vmatpush1.msra.mxu0 0.0
        %2945 = vmatprep.subr.mxu0 0.0
        %2946 = vmatpush1.msra.mxu0 0.0
        %2947 = vmatprep.subr.mxu0 0.0
        %2948 = vmatpush1.msra.mxu0 0.0
        %2949 = vmatprep.subr.mxu0 0.0
        %2950 = vmatpush1.msra.mxu0 0.0
        %2951 = vmatprep.subr.mxu0 0.0
        %2952 = vmatpush1.msra.mxu0 0.0
        %2953 = vmatprep.subr.mxu0 0.0
        %2954 = vmatpush1.msra.mxu0 0.0
        %2955 = vmatprep.subr.mxu0 0.0
        %2956 = vmatpush1.msra.mxu0 0.0
        %2957 = vmatprep.subr.mxu0 0.0
        %2958 = vmatpush1.msra.mxu0 0.0
        %2959 = vmatprep.mubr.f32.mxu0 0.0
        %2960 = vmatmul.mubr.f32.gmra.mrb[0].mxu0 %v2582
        %v2961 = vpop.f32.mrb[0].mxu0
        %v2962 = vadd.f32 0.0, %v2961
        %v2963 = vpop.f32.mrb[0].mxu0
        %v2964 = vadd.f32 0.0, %v2963
        %2965 = vmatprep.mubr.f32.mxu0 0.0
        %2966 = vmatmul.mubr.f32.gmra.mrb[0].mxu0 %v2585
        %v2967 = vpop.f32.mrb[0].mxu0
        %v2968 = vadd.f32 0.0, %v2967
        %v2969 = vpop.f32.mrb[0].mxu0
        %v2970 = vadd.f32 0.0, %v2969
        %2971 = vdwg.mxu0
        %2972 = vmatprep.subr.mxu0 %v2406
        %2973 = vmatpush1.msra.mxu0 %v2405
        %2974 = vmatprep.subr.mxu0 %v2542
        %2975 = vmatpush1.msra.mxu0 %v2541
        %2976 = vmatprep.subr.mxu0 0.0
        %2977 = vmatpush1.msra.mxu0 0.0
        %2978 = vmatprep.subr.mxu0 0.0
        %2979 = vmatpush1.msra.mxu0 0.0
        %2980 = vmatprep.subr.mxu0 0.0
        %2981 = vmatpush1.msra.mxu0 0.0
        %2982 = vmatprep.subr.mxu0 0.0
        %2983 = vmatpush1.msra.mxu0 0.0
        %2984 = vmatprep.subr.mxu0 0.0
        %2985 = vmatpush1.msra.mxu0 0.0
        %2986 = vmatprep.subr.mxu0 0.0
        %2987 = vmatpush1.msra.mxu0 0.0
        %2988 = vmatprep.subr.mxu0 0.0
        %2989 = vmatpush1.msra.mxu0 0.0
        %2990 = vmatprep.subr.mxu0 0.0
        %2991 = vmatpush1.msra.mxu0 0.0
        %2992 = vmatprep.subr.mxu0 0.0
        %2993 = vmatpush1.msra.mxu0 0.0
        %2994 = vmatprep.subr.mxu0 0.0
        %2995 = vmatpush1.msra.mxu0 0.0
        %2996 = vmatprep.subr.mxu0 0.0
        %2997 = vmatpush1.msra.mxu0 0.0
        %2998 = vmatprep.subr.mxu0 0.0
        %2999 = vmatpush1.msra.mxu0 0.0
        %3000 = vmatprep.subr.mxu0 0.0
        %3001 = vmatpush1.msra.mxu0 0.0
        %3002 = vmatprep.subr.mxu0 0.0
        %3003 = vmatpush1.msra.mxu0 0.0
        %3004 = vmatprep.subr.mxu0 0.0
        %3005 = vmatpush1.msra.mxu0 0.0
        %3006 = vmatprep.subr.mxu0 0.0
        %3007 = vmatpush1.msra.mxu0 0.0
        %3008 = vmatprep.subr.mxu0 0.0
        %3009 = vmatpush1.msra.mxu0 0.0
        %3010 = vmatprep.subr.mxu0 0.0
        %3011 = vmatpush1.msra.mxu0 0.0
        %3012 = vmatprep.subr.mxu0 0.0
        %3013 = vmatpush1.msra.mxu0 0.0
        %3014 = vmatprep.subr.mxu0 0.0
        %3015 = vmatpush1.msra.mxu0 0.0
        %3016 = vmatprep.subr.mxu0 0.0
        %3017 = vmatpush1.msra.mxu0 0.0
        %3018 = vmatprep.subr.mxu0 0.0
        %3019 = vmatpush1.msra.mxu0 0.0
        %3020 = vmatprep.subr.mxu0 0.0
        %3021 = vmatpush1.msra.mxu0 0.0
        %3022 = vmatprep.subr.mxu0 0.0
        %3023 = vmatpush1.msra.mxu0 0.0
        %3024 = vmatprep.subr.mxu0 0.0
        %3025 = vmatpush1.msra.mxu0 0.0
        %3026 = vmatprep.subr.mxu0 0.0
        %3027 = vmatpush1.msra.mxu0 0.0
        %3028 = vmatprep.subr.mxu0 0.0
        %3029 = vmatpush1.msra.mxu0 0.0
        %3030 = vmatprep.subr.mxu0 0.0
        %3031 = vmatpush1.msra.mxu0 0.0
        %3032 = vmatprep.subr.mxu0 0.0
        %3033 = vmatpush1.msra.mxu0 0.0
        %3034 = vmatprep.subr.mxu0 0.0
        %3035 = vmatpush1.msra.mxu0 0.0
        %3036 = vmatprep.mubr.f32.mxu0 0.0
        %3037 = vmatmul.mubr.f32.gmra.mrb[0].mxu0 %v2582
        %v3038 = vpop.f32.mrb[0].mxu0
        %v3039 = vadd.f32 0.0, %v3038
        %v3040 = vpop.f32.mrb[0].mxu0
        %v3041 = vadd.f32 0.0, %v3040
        %3042 = vmatprep.mubr.f32.mxu0 0.0
        %3043 = vmatmul.mubr.f32.gmra.mrb[0].mxu0 %v2585
        %v3044 = vpop.f32.mrb[0].mxu0
        %v3045 = vadd.f32 0.0, %v3044
        %v3046 = vpop.f32.mrb[0].mxu0
        %v3047 = vadd.f32 0.0, %v3046
        %3048 = vdwg.mxu0
        %3049 = vmatprep.subr.mxu0 %v2408
        %3050 = vmatpush1.msra.mxu0 %v2407
        %3051 = vmatprep.subr.mxu0 %v2544
        %3052 = vmatpush1.msra.mxu0 %v2543
        %3053 = vmatprep.subr.mxu0 0.0
        %3054 = vmatpush1.msra.mxu0 0.0
        %3055 = vmatprep.subr.mxu0 0.0
        %3056 = vmatpush1.msra.mxu0 0.0
        %3057 = vmatprep.subr.mxu0 0.0
        %3058 = vmatpush1.msra.mxu0 0.0
        %3059 = vmatprep.subr.mxu0 0.0
        %3060 = vmatpush1.msra.mxu0 0.0
        %3061 = vmatprep.subr.mxu0 0.0
        %3062 = vmatpush1.msra.mxu0 0.0
        %3063 = vmatprep.subr.mxu0 0.0
        %3064 = vmatpush1.msra.mxu0 0.0
        %3065 = vmatprep.subr.mxu0 0.0
        %3066 = vmatpush1.msra.mxu0 0.0
        %3067 = vmatprep.subr.mxu0 0.0
        %3068 = vmatpush1.msra.mxu0 0.0
        %3069 = vmatprep.subr.mxu0 0.0
        %3070 = vmatpush1.msra.mxu0 0.0
        %3071 = vmatprep.subr.mxu0 0.0
        %3072 = vmatpush1.msra.mxu0 0.0
        %3073 = vmatprep.subr.mxu0 0.0
        %3074 = vmatpush1.msra.mxu0 0.0
        %3075 = vmatprep.subr.mxu0 0.0
        %3076 = vmatpush1.msra.mxu0 0.0
        %3077 = vmatprep.subr.mxu0 0.0
        %3078 = vmatpush1.msra.mxu0 0.0
        %3079 = vmatprep.subr.mxu0 0.0
        %3080 = vmatpush1.msra.mxu0 0.0
        %3081 = vmatprep.subr.mxu0 0.0
        %3082 = vmatpush1.msra.mxu0 0.0
        %3083 = vmatprep.subr.mxu0 0.0
        %3084 = vmatpush1.msra.mxu0 0.0
        %3085 = vmatprep.subr.mxu0 0.0
        %3086 = vmatpush1.msra.mxu0 0.0
        %3087 = vmatprep.subr.mxu0 0.0
        %3088 = vmatpush1.msra.mxu0 0.0
        %3089 = vmatprep.subr.mxu0 0.0
        %3090 = vmatpush1.msra.mxu0 0.0
        %3091 = vmatprep.subr.mxu0 0.0
        %3092 = vmatpush1.msra.mxu0 0.0
        %3093 = vmatprep.subr.mxu0 0.0
        %3094 = vmatpush1.msra.mxu0 0.0
        %3095 = vmatprep.subr.mxu0 0.0
        %3096 = vmatpush1.msra.mxu0 0.0
        %3097 = vmatprep.subr.mxu0 0.0
        %3098 = vmatpush1.msra.mxu0 0.0
        %3099 = vmatprep.subr.mxu0 0.0
        %3100 = vmatpush1.msra.mxu0 0.0
        %3101 = vmatprep.subr.mxu0 0.0
        %3102 = vmatpush1.msra.mxu0 0.0
        %3103 = vmatprep.subr.mxu0 0.0
        %3104 = vmatpush1.msra.mxu0 0.0
        %3105 = vmatprep.subr.mxu0 0.0
        %3106 = vmatpush1.msra.mxu0 0.0
        %3107 = vmatprep.subr.mxu0 0.0
        %3108 = vmatpush1.msra.mxu0 0.0
        %3109 = vmatprep.subr.mxu0 0.0
        %3110 = vmatpush1.msra.mxu0 0.0
        %3111 = vmatprep.subr.mxu0 0.0
        %3112 = vmatpush1.msra.mxu0 0.0
        %3113 = vmatprep.mubr.f32.mxu0 0.0
        %3114 = vmatmul.mubr.f32.gmra.mrb[0].mxu0 %v2582
        %v3115 = vpop.f32.mrb[0].mxu0
        %v3116 = vadd.f32 0.0, %v3115
        %v3117 = vpop.f32.mrb[0].mxu0
        %v3118 = vadd.f32 0.0, %v3117
        %3119 = vmatprep.mubr.f32.mxu0 0.0
        %3120 = vmatmul.mubr.f32.gmra.mrb[0].mxu0 %v2585
        %v3121 = vpop.f32.mrb[0].mxu0
        %v3122 = vadd.f32 0.0, %v3121
        %v3123 = vpop.f32.mrb[0].mxu0
        %v3124 = vadd.f32 0.0, %v3123
        %3125 = vdwg.mxu0
        %3126 = vmatprep.subr.mxu0 %v2410
        %3127 = vmatpush1.msra.mxu0 %v2409
        %3128 = vmatprep.subr.mxu0 %v2546
        %3129 = vmatpush1.msra.mxu0 %v2545
        %3130 = vmatprep.subr.mxu0 0.0
        %3131 = vmatpush1.msra.mxu0 0.0
        %3132 = vmatprep.subr.mxu0 0.0
        %3133 = vmatpush1.msra.mxu0 0.0
        %3134 = vmatprep.subr.mxu0 0.0
        %3135 = vmatpush1.msra.mxu0 0.0
        %3136 = vmatprep.subr.mxu0 0.0
        %3137 = vmatpush1.msra.mxu0 0.0
        %3138 = vmatprep.subr.mxu0 0.0
        %3139 = vmatpush1.msra.mxu0 0.0
        %3140 = vmatprep.subr.mxu0 0.0
        %3141 = vmatpush1.msra.mxu0 0.0
        %3142 = vmatprep.subr.mxu0 0.0
        %3143 = vmatpush1.msra.mxu0 0.0
        %3144 = vmatprep.subr.mxu0 0.0
        %3145 = vmatpush1.msra.mxu0 0.0
        %3146 = vmatprep.subr.mxu0 0.0
        %3147 = vmatpush1.msra.mxu0 0.0
        %3148 = vmatprep.subr.mxu0 0.0
        %3149 = vmatpush1.msra.mxu0 0.0
        %3150 = vmatprep.subr.mxu0 0.0
        %3151 = vmatpush1.msra.mxu0 0.0
        %3152 = vmatprep.subr.mxu0 0.0
        %3153 = vmatpush1.msra.mxu0 0.0
        %3154 = vmatprep.subr.mxu0 0.0
        %3155 = vmatpush1.msra.mxu0 0.0
        %3156 = vmatprep.subr.mxu0 0.0
        %3157 = vmatpush1.msra.mxu0 0.0
        %3158 = vmatprep.subr.mxu0 0.0
        %3159 = vmatpush1.msra.mxu0 0.0
        %3160 = vmatprep.subr.mxu0 0.0
        %3161 = vmatpush1.msra.mxu0 0.0
        %3162 = vmatprep.subr.mxu0 0.0
        %3163 = vmatpush1.msra.mxu0 0.0
        %3164 = vmatprep.subr.mxu0 0.0
        %3165 = vmatpush1.msra.mxu0 0.0
        %3166 = vmatprep.subr.mxu0 0.0
        %3167 = vmatpush1.msra.mxu0 0.0
        %3168 = vmatprep.subr.mxu0 0.0
        %3169 = vmatpush1.msra.mxu0 0.0
        %3170 = vmatprep.subr.mxu0 0.0
        %3171 = vmatpush1.msra.mxu0 0.0
        %3172 = vmatprep.subr.mxu0 0.0
        %3173 = vmatpush1.msra.mxu0 0.0
        %3174 = vmatprep.subr.mxu0 0.0
        %3175 = vmatpush1.msra.mxu0 0.0
        %3176 = vmatprep.subr.mxu0 0.0
        %3177 = vmatpush1.msra.mxu0 0.0
        %3178 = vmatprep.subr.mxu0 0.0
        %3179 = vmatpush1.msra.mxu0 0.0
        %3180 = vmatprep.subr.mxu0 0.0
        %3181 = vmatpush1.msra.mxu0 0.0
        %3182 = vmatprep.subr.mxu0 0.0
        %3183 = vmatpush1.msra.mxu0 0.0
        %3184 = vmatprep.subr.mxu0 0.0
        %3185 = vmatpush1.msra.mxu0 0.0
        %3186 = vmatprep.subr.mxu0 0.0
        %3187 = vmatpush1.msra.mxu0 0.0
        %3188 = vmatprep.subr.mxu0 0.0
        %3189 = vmatpush1.msra.mxu0 0.0
        %3190 = vmatprep.mubr.f32.mxu0 0.0
        %3191 = vmatmul.mubr.f32.gmra.mrb[0].mxu0 %v2582
        %v3192 = vpop.f32.mrb[0].mxu0
        %v3193 = vadd.f32 0.0, %v3192
        %v3194 = vpop.f32.mrb[0].mxu0
        %v3195 = vadd.f32 0.0, %v3194
        %3196 = vmatprep.mubr.f32.mxu0 0.0
        %3197 = vmatmul.mubr.f32.gmra.mrb[0].mxu0 %v2585
        %v3198 = vpop.f32.mrb[0].mxu0
        %v3199 = vadd.f32 0.0, %v3198
        %v3200 = vpop.f32.mrb[0].mxu0
        %v3201 = vadd.f32 0.0, %v3200
        %3202 = vdwg.mxu0
        %v3203 = vadd.f32 %v2547, %v2654
        %v3204 = vadd.f32 %v2548, %v2656
        %v3205 = vadd.f32 %v2549, %v2731
        %v3206 = vadd.f32 %v2550, %v2733
        %v3207 = vadd.f32 %v2551, %v2808
        %v3208 = vadd.f32 %v2552, %v2810
        %v3209 = vadd.f32 %v2553, %v2885
        %v3210 = vadd.f32 %v2554, %v2887
        %v3211 = vadd.f32 %v2555, %v2962
        %v3212 = vadd.f32 %v2556, %v2964
        %v3213 = vadd.f32 %v2557, %v3039
        %v3214 = vadd.f32 %v2558, %v3041
        %v3215 = vadd.f32 %v2559, %v3116
        %v3216 = vadd.f32 %v2560, %v3118
        %v3217 = vadd.f32 %v2561, %v3193
        %v3218 = vadd.f32 %v2562, %v3195
        %v3219 = vadd.f32 %v2563, %v2660
        %v3220 = vadd.f32 %v2564, %v2662
        %v3221 = vadd.f32 %v2565, %v2737
        %v3222 = vadd.f32 %v2566, %v2739
        %v3223 = vadd.f32 %v2567, %v2814
        %v3224 = vadd.f32 %v2568, %v2816
        %v3225 = vadd.f32 %v2569, %v2891
        %v3226 = vadd.f32 %v2570, %v2893
        %v3227 = vadd.f32 %v2571, %v2968
        %v3228 = vadd.f32 %v2572, %v2970
        %v3229 = vadd.f32 %v2573, %v3045
        %v3230 = vadd.f32 %v2574, %v3047
        %v3231 = vadd.f32 %v2575, %v3122
        %v3232 = vadd.f32 %v2576, %v3124
        %v3233 = vadd.f32 %v2577, %v3199
        %v3234 = vadd.f32 %v2578, %v3201
        %3235 = vst [vmem:[#allocation2] sm:$0xff] %v3203
        %3236 = vst [vmem:[#allocation2 + $0x8] sm:$0xff] %v3204
        %3237 = vst [vmem:[#allocation2 + $0x10] sm:$0xff] %v3205
        %3238 = vst [vmem:[#allocation2 + $0x18] sm:$0xff] %v3206
        %3239 = vst [vmem:[#allocation2 + $0x20] sm:$0xff] %v3207
        %3240 = vst [vmem:[#allocation2 + $0x28] sm:$0xff] %v3208
        %3241 = vst [vmem:[#allocation2 + $0x30] sm:$0xff] %v3209
        %3242 = vst [vmem:[#allocation2 + $0x38] sm:$0xff] %v3210
        %3243 = vst [vmem:[#allocation2 + $0x40] sm:$0xff] %v3211
        %3244 = vst [vmem:[#allocation2 + $0x48] sm:$0xff] %v3212
        %3245 = vst [vmem:[#allocation2 + $0x50] sm:$0xff] %v3213
        %3246 = vst [vmem:[#allocation2 + $0x58] sm:$0xff] %v3214
        %3247 = vst [vmem:[#allocation2 + $0x60] sm:$0xff] %v3215
        %3248 = vst [vmem:[#allocation2 + $0x68] sm:$0xff] %v3216
        %3249 = vst [vmem:[#allocation2 + $0x70] sm:$0xff] %v3217
        %3250 = vst [vmem:[#allocation2 + $0x78] sm:$0xff] %v3218
        %3251 = vst [vmem:[#allocation2 + $0x80] sm:$0xff] %v3219
        %3252 = vst [vmem:[#allocation2 + $0x88] sm:$0xff] %v3220
        %3253 = vst [vmem:[#allocation2 + $0x90] sm:$0xff] %v3221
        %3254 = vst [vmem:[#allocation2 + $0x98] sm:$0xff] %v3222
        %3255 = vst [vmem:[#allocation2 + $0xa0] sm:$0xff] %v3223
        %3256 = vst [vmem:[#allocation2 + $0xa8] sm:$0xff] %v3224
        %3257 = vst [vmem:[#allocation2 + $0xb0] sm:$0xff] %v3225
        %3258 = vst [vmem:[#allocation2 + $0xb8] sm:$0xff] %v3226
        %3259 = vst [vmem:[#allocation2 + $0xc0] sm:$0xff] %v3227
        %3260 = vst [vmem:[#allocation2 + $0xc8] sm:$0xff] %v3228
        %3261 = vst [vmem:[#allocation2 + $0xd0] sm:$0xff] %v3229
        %3262 = vst [vmem:[#allocation2 + $0xd8] sm:$0xff] %v3230
        %3263 = vst [vmem:[#allocation2 + $0xe0] sm:$0xff] %v3231
        %3264 = vst [vmem:[#allocation2 + $0xe8] sm:$0xff] %v3232
        %3265 = vst [vmem:[#allocation2 + $0xf0] sm:$0xff] %v3233
        %3266 = vst [vmem:[#allocation2 + $0xf8] sm:$0xff] %v3234
        %p3267 = scmp.eq.s32.totalorder %s35, 2
        // Predicated region
        $region65: #{segformer_decoder_forward.1} parent=39 // pred_check
          %p3268 = pneg %p3267
        $region66: #{segformer_decoder_forward.1} parent=39 // pred_check_branch
          %3270 = sbr.rel (%p3268) target = $region68
        $region67: #{segformer_decoder_forward.1} parent=39 // pred_region
          %v3271 = vld [vmem:[#allocation2] sm:$0xff]
          %v3272 = vld [vmem:[#allocation2 + $0x8] sm:$0xff]
          %v3273 = vld [vmem:[#allocation2 + $0x10] sm:$0xff]
          %v3274 = vld [vmem:[#allocation2 + $0x18] sm:$0xff]
          %v3275 = vld [vmem:[#allocation2 + $0x20] sm:$0xff]
          %v3276 = vld [vmem:[#allocation2 + $0x28] sm:$0xff]
          %v3277 = vld [vmem:[#allocation2 + $0x30] sm:$0xff]
          %v3278 = vld [vmem:[#allocation2 + $0x38] sm:$0xff]
          %v3279 = vld [vmem:[#allocation2 + $0x40] sm:$0xff]
          %v3280 = vld [vmem:[#allocation2 + $0x48] sm:$0xff]
          %v3281 = vld [vmem:[#allocation2 + $0x50] sm:$0xff]
          %v3282 = vld [vmem:[#allocation2 + $0x58] sm:$0xff]
          %v3283 = vld [vmem:[#allocation2 + $0x60] sm:$0xff]
          %v3284 = vld [vmem:[#allocation2 + $0x68] sm:$0xff]
          %v3285 = vld [vmem:[#allocation2 + $0x70] sm:$0xff]
          %v3286 = vld [vmem:[#allocation2 + $0x78] sm:$0xff]
          %v3287 = vld [vmem:[#allocation2 + $0x80] sm:$0xff]
          %v3288 = vld [vmem:[#allocation2 + $0x88] sm:$0xff]
          %v3289 = vld [vmem:[#allocation2 + $0x90] sm:$0xff]
          %v3290 = vld [vmem:[#allocation2 + $0x98] sm:$0xff]
          %v3291 = vld [vmem:[#allocation2 + $0xa0] sm:$0xff]
          %v3292 = vld [vmem:[#allocation2 + $0xa8] sm:$0xff]
          %v3293 = vld [vmem:[#allocation2 + $0xb0] sm:$0xff]
          %v3294 = vld [vmem:[#allocation2 + $0xb8] sm:$0xff]
          %v3295 = vld [vmem:[#allocation2 + $0xc0] sm:$0xff]
          %v3296 = vld [vmem:[#allocation2 + $0xc8] sm:$0xff]
          %v3297 = vld [vmem:[#allocation2 + $0xd0] sm:$0xff]
          %v3298 = vld [vmem:[#allocation2 + $0xd8] sm:$0xff]
          %v3299 = vld [vmem:[#allocation2 + $0xe0] sm:$0xff]
          %v3300 = vld [vmem:[#allocation2 + $0xe8] sm:$0xff]
          %v3301 = vld [vmem:[#allocation2 + $0xf0] sm:$0xff]
          %v3302 = vld [vmem:[#allocation2 + $0xf8] sm:$0xff]
          %v3303 = vld [vmem:[#allocation11] sm:$0xff]
          %v3304 = vld [vmem:[#allocation11 + $0x8] sm:$0xff]
          %v3307 = vlaneseq
          %v3308 = vshrl.u32 %v3307, 7
          %v3309 = vsub.s32 0, %v3308
          %v3310 = vrot.slane %v3303, %v3309
          %v3311 = vlaneseq
          %v3312 = vshrl.u32 %v3311, 7
          %v3313 = vsub.s32 1, %v3312
          %v3314 = vrot.slane %v3303, %v3313
          %v3315 = vlaneseq
          %v3316 = vshrl.u32 %v3315, 7
          %v3317 = vsub.s32 2, %v3316
          %v3318 = vrot.slane %v3303, %v3317
          %v3319 = vlaneseq
          %v3320 = vshrl.u32 %v3319, 7
          %v3321 = vsub.s32 3, %v3320
          %v3322 = vrot.slane %v3303, %v3321
          %v3323 = vlaneseq
          %v3324 = vshrl.u32 %v3323, 7
          %v3325 = vsub.s32 4, %v3324
          %v3326 = vrot.slane %v3303, %v3325
          %v3327 = vlaneseq
          %v3328 = vshrl.u32 %v3327, 7
          %v3329 = vsub.s32 5, %v3328
          %v3330 = vrot.slane %v3303, %v3329
          %v3331 = vlaneseq
          %v3332 = vshrl.u32 %v3331, 7
          %v3333 = vsub.s32 6, %v3332
          %v3334 = vrot.slane %v3303, %v3333
          %v3335 = vlaneseq
          %v3336 = vshrl.u32 %v3335, 7
          %v3337 = vsub.s32 7, %v3336
          %v3338 = vrot.slane %v3303, %v3337
          %v3339 = vlaneseq
          %v3340 = vshrl.u32 %v3339, 7
          %v3341 = vsub.s32 0, %v3340
          %v3342 = vrot.slane %v3304, %v3341
          %v3343 = vlaneseq
          %v3344 = vshrl.u32 %v3343, 7
          %v3345 = vsub.s32 1, %v3344
          %v3346 = vrot.slane %v3304, %v3345
          %v3347 = vlaneseq
          %v3348 = vshrl.u32 %v3347, 7
          %v3349 = vsub.s32 2, %v3348
          %v3350 = vrot.slane %v3304, %v3349
          %v3351 = vlaneseq
          %v3352 = vshrl.u32 %v3351, 7
          %v3353 = vsub.s32 3, %v3352
          %v3354 = vrot.slane %v3304, %v3353
          %v3355 = vlaneseq
          %v3356 = vshrl.u32 %v3355, 7
          %v3357 = vsub.s32 4, %v3356
          %v3358 = vrot.slane %v3304, %v3357
          %v3359 = vlaneseq
          %v3360 = vshrl.u32 %v3359, 7
          %v3361 = vsub.s32 5, %v3360
          %v3362 = vrot.slane %v3304, %v3361
          %v3363 = vlaneseq
          %v3364 = vshrl.u32 %v3363, 7
          %v3365 = vsub.s32 6, %v3364
          %v3366 = vrot.slane %v3304, %v3365
          %v3367 = vlaneseq
          %v3368 = vshrl.u32 %v3367, 7
          %v3369 = vsub.s32 7, %v3368
          %v3370 = vrot.slane %v3304, %v3369
          %v3387 = vadd.f32 %v3271, %v3310
          %v3388 = vadd.f32 %v3272, %v3314
          %v3389 = vadd.f32 %v3273, %v3318
          %v3390 = vadd.f32 %v3274, %v3322
          %v3391 = vadd.f32 %v3275, %v3326
          %v3392 = vadd.f32 %v3276, %v3330
          %v3393 = vadd.f32 %v3277, %v3334
          %v3394 = vadd.f32 %v3278, %v3338
          %v3395 = vadd.f32 %v3279, %v3342
          %v3396 = vadd.f32 %v3280, %v3346
          %v3397 = vadd.f32 %v3281, %v3350
          %v3398 = vadd.f32 %v3282, %v3354
          %v3399 = vadd.f32 %v3283, %v3358
          %v3400 = vadd.f32 %v3284, %v3362
          %v3401 = vadd.f32 %v3285, %v3366
          %v3402 = vadd.f32 %v3286, %v3370
          %v3403 = vadd.f32 %v3287, %v3310
          %v3404 = vadd.f32 %v3288, %v3314
          %v3405 = vadd.f32 %v3289, %v3318
          %v3406 = vadd.f32 %v3290, %v3322
          %v3407 = vadd.f32 %v3291, %v3326
          %v3408 = vadd.f32 %v3292, %v3330
          %v3409 = vadd.f32 %v3293, %v3334
          %v3410 = vadd.f32 %v3294, %v3338
          %v3411 = vadd.f32 %v3295, %v3342
          %v3412 = vadd.f32 %v3296, %v3346
          %v3413 = vadd.f32 %v3297, %v3350
          %v3414 = vadd.f32 %v3298, %v3354
          %v3415 = vadd.f32 %v3299, %v3358
          %v3416 = vadd.f32 %v3300, %v3362
          %v3417 = vadd.f32 %v3301, %v3366
          %v3418 = vadd.f32 %v3302, %v3370
          %3419 = vst [vmem:[%s400] sm:$0xff] %v3387
          %3420 = vst [vmem:[%s400 + $0x8] sm:$0xff] %v3388
          %3421 = vst [vmem:[%s400 + $0x10] sm:$0xff] %v3389
          %3422 = vst [vmem:[%s400 + $0x18] sm:$0xff] %v3390
          %3423 = vst [vmem:[%s400 + $0x20] sm:$0xff] %v3391
          %3424 = vst [vmem:[%s400 + $0x28] sm:$0xff] %v3392
          %3425 = vst [vmem:[%s400 + $0x30] sm:$0xff] %v3393
          %3426 = vst [vmem:[%s400 + $0x38] sm:$0xff] %v3394
          %3427 = vst [vmem:[%s400 + $0x40] sm:$0xff] %v3395
          %3428 = vst [vmem:[%s400 + $0x48] sm:$0xff] %v3396
          %3429 = vst [vmem:[%s400 + $0x50] sm:$0xff] %v3397
          %3430 = vst [vmem:[%s400 + $0x58] sm:$0xff] %v3398
          %3431 = vst [vmem:[%s400 + $0x60] sm:$0xff] %v3399
          %3432 = vst [vmem:[%s400 + $0x68] sm:$0xff] %v3400
          %3433 = vst [vmem:[%s400 + $0x70] sm:$0xff] %v3401
          %3434 = vst [vmem:[%s400 + $0x78] sm:$0xff] %v3402
          %3435 = vst [vmem:[%s400 + $0x80] sm:$0xff] %v3403
          %3436 = vst [vmem:[%s400 + $0x88] sm:$0xff] %v3404
          %3437 = vst [vmem:[%s400 + $0x90] sm:$0xff] %v3405
          %3438 = vst [vmem:[%s400 + $0x98] sm:$0xff] %v3406
          %3439 = vst [vmem:[%s400 + $0xa0] sm:$0xff] %v3407
          %3440 = vst [vmem:[%s400 + $0xa8] sm:$0xff] %v3408
          %3441 = vst [vmem:[%s400 + $0xb0] sm:$0xff] %v3409
          %3442 = vst [vmem:[%s400 + $0xb8] sm:$0xff] %v3410
          %3443 = vst [vmem:[%s400 + $0xc0] sm:$0xff] %v3411
          %3444 = vst [vmem:[%s400 + $0xc8] sm:$0xff] %v3412
          %3445 = vst [vmem:[%s400 + $0xd0] sm:$0xff] %v3413
          %3446 = vst [vmem:[%s400 + $0xd8] sm:$0xff] %v3414
          %3447 = vst [vmem:[%s400 + $0xe0] sm:$0xff] %v3415
          %3448 = vst [vmem:[%s400 + $0xe8] sm:$0xff] %v3416
          %3449 = vst [vmem:[%s400 + $0xf0] sm:$0xff] %v3417
          %3450 = vst [vmem:[%s400 + $0xf8] sm:$0xff] %v3418
        $region68: #{segformer_decoder_forward.1} parent=39 // pred_fallthru
          _
        %s3451 = sand.u32 %s186, 1
        %s3452 = scalar_lea.sflag [#allocation5], %s3451
        %s3453 = sand.u32 %s186, 1
        %s3454 = smul.addr %s3453, 256
        %s3455 = scalar_lea.vmem [#allocation12], %s3454
        // Predicated region
        $region69: #{segformer_decoder_forward.1} parent=39 // pred_check
          %p3456 = pneg %p196
        $region70: #{segformer_decoder_forward.1} parent=39 // pred_check_branch
          %3458 = sbr.rel (%p3456) target = $region72
        $region71: #{segformer_decoder_forward.1} parent=39 // pred_region
          %s3459 = smul.u32 2, %s34
          %s3461 = ssub.s32 4096, 4096
          %3462 = vsyncadd %s3452, %s3461
          %s3463 = smul.addr %s3459, 16
          %s3464 = smul.addr %s33, 32
          %s3465 = sadd.s32 %s3463, %s3464
          %s3466 = smul.addr %s3465, 128
          %s3467 = scalar_lea.hbm %s5, %s3466
          %s3468 = sshll.u32 %s3455, 4
          %s3469 = int_to_ptr.vmem [resolvable:$true] %s3468
          %3474 = dma.vmem_to_hbm [thread:$0]  %s3469, 4096, %s3467, %s3452, 2048, 2048, 128
        $region72: #{segformer_decoder_forward.1} parent=39 // pred_fallthru
          _
      $region40: #{segformer_decoder_forward.1} parent=5 // pred_fallthru
        _
      %p3475 = scmp.le.s32.totalorder 2, %s23
      // Predicated region
      $region73: #{segformer_decoder_forward.1} parent=5 // pred_check
        %p3476 = pneg %p3475
      $region74: #{segformer_decoder_forward.1} parent=5 // pred_check_branch
        %3478 = sbr.rel (%p3476) target = $region76
      $region75: #{segformer_decoder_forward.1} parent=5 // pred_region
        %s3479 = ssub.s32 %s23, 2
        // Predicated region
        $region77: #{segformer_decoder_forward.1} parent=75 // pred_check
          %p3480 = pneg %p202
        $region78: #{segformer_decoder_forward.1} parent=75 // pred_check_branch
          %3482 = sbr.rel (%p3480) target = $region80
        $region79: #{segformer_decoder_forward.1} parent=75 // pred_region
          %s3483 = sand.u32 %s187, 1
          %s3484 = scalar_lea.sflag [#allocation5], %s3483
          %s3485 = sand.u32 %s187, 1
          %s3486 = smul.addr %s3485, 256
          %s3487 = scalar_lea.vmem [#allocation12], %s3486
          %3488 = dma.done %s3484, 4096
        $region80: #{segformer_decoder_forward.1} parent=75 // pred_fallthru
          _
      $region76: #{segformer_decoder_forward.1} parent=5 // pred_fallthru
        _
    $region6: #{segformer_decoder_forward.1} parent=1 // loop_footer
      %s27 = sadd.s32 1, %s23
    $region7: #{segformer_decoder_forward.1} parent=1 // loop_footer_branch
      %22 = sbr.rel target = $region3
    $region8: #{segformer_decoder_forward.1} parent=1 // loop_exit
      _
    %3489 = vsyncpa [#allocation4], 1
    %s3490 = scalar_lea.sflag [#allocation4], 1
    %3491 = vsyncpa %s3490, 1
    %3492 = vsyncpa [#allocation7], 1
    %s3493 = scalar_lea.sflag [#allocation7], 1
    %3494 = vsyncpa %s3493, 1
    %3495 = vsyncpa [#allocation10], 1
    %s3496 = scalar_lea.sflag [#allocation10], 1
    %3497 = vsyncpa %s3496, 1
    %3498 = vsyncpa [#allocation5], 1
    %s3499 = scalar_lea.sflag [#allocation5], 1
    %3500 = vsyncpa %s3499, 1

</llo_original>
